<compile_context>
chip_gen: v7x
topology: tpu7x:2x2x1
jax: 0.10.0
libtpu: 0.0.40
codegen_flags: <defaults>
</compile_context>

<pallas_src>
import functools
import math

import jax
import jax.numpy as jnp
from jax.experimental import pallas as pl
from jax.experimental.pallas import tpu as pltpu


# ----------------------------------------------------------------------------
# Pallas kernel
# ----------------------------------------------------------------------------
def cross_modal_attention_kernel(rgb_ref, dep_ref,
                                 wq_ref, bq_ref, wk_ref, bk_ref,
                                 wv_ref, bv_ref, wo_ref, bo_ref,
                                 o_ref, ctx_ref, *, num_heads, mxu_dtype):
    bt, S, D = rgb_ref.shape            # block: (batch_block, seq, feature)
    H = num_heads
    dh = D // H
    scale = 1.0 / math.sqrt(dh)

    # Flat (bt*S, D) activations; only leading dims are merged (no lane relayout).
    rgb = rgb_ref[...].reshape(bt * S, D)
    dep = dep_ref[...].reshape(bt * S, D)

    # ---- Q/K/V projections: one (bt*S, D) @ (D, D) matmul each, f32 accumulation.
    #      The 1/sqrt(dh) softmax scale is folded into Q (one small VPU multiply
    #      instead of scaling the (S, S) score tensor per head).
    q = (jnp.dot(rgb, wq_ref[...], preferred_element_type=jnp.float32)
         + bq_ref[...]) * scale
    k = jnp.dot(dep, wk_ref[...], preferred_element_type=jnp.float32) + bk_ref[...]
    v = jnp.dot(dep, wv_ref[...], preferred_element_type=jnp.float32) + bv_ref[...]
    q = q.astype(mxu_dtype)
    k = k.astype(mxu_dtype)
    v = v.astype(mxu_dtype)

    # ---- Per-head scaled dot-product attention (H is small & static -> this
    #      Python loop is fully unrolled at trace time).  Head h occupies
    #      feature columns [h*dh, (h+1)*dh) of the flat Q/K/V, which matches
    #      torch's .view(B, S, H, dh).transpose(1, 2) split exactly.
    # NOTE: the full (bt, S, S) score tile per head is materialized; for large S
    # this should become a flash-style online-softmax over a KV grid axis.
    for h in range(H):
        lo = h * dh
        qh = q[:, lo:lo + dh].reshape(bt, S, dh)
        kh = k[:, lo:lo + dh].reshape(bt, S, dh)
        vh = v[:, lo:lo + dh].reshape(bt, S, dh)

        s = jnp.einsum('bqd,bkd->bqk', qh, kh,
                       preferred_element_type=jnp.float32)
        s = s - jnp.max(s, axis=-1, keepdims=True)
        p = jnp.exp(s)                                         # f32 softmax math
        p = p * pl.reciprocal(jnp.sum(p, axis=-1, keepdims=True), approx=True)

        ctx_h = jnp.einsum('bqk,bkd->bqd', p.astype(mxu_dtype), vh,
                           preferred_element_type=jnp.float32)
        # Write the head's context into the flat scratch (same feature ordering
        # as torch's transpose(1,2).contiguous().view(B, S, D)), so the output
        # projection below is one flat matmul with K = D.
        ctx_ref[:, lo:lo + dh] = ctx_h.reshape(bt * S, dh).astype(ctx_ref.dtype)

    out = jnp.dot(ctx_ref[...], wo_ref[...],
                  preferred_element_type=jnp.float32) + bo_ref[...]
    o_ref[...] = out.reshape(bt, S, D).astype(o_ref.dtype)


# ----------------------------------------------------------------------------
# Host wrapper (layout plumbing done once, outside the kernel)
# ----------------------------------------------------------------------------
def cross_modal_attention(rgb, depth, params, *, num_heads, batch_block=8,
                          mxu_dtype=jnp.bfloat16, out_dtype=None,
                          vmem_limit_bytes=None):
    B, S, D = rgb.shape
    assert depth.shape == rgb.shape, "rgb / depth feature shapes must match"
    assert D % num_heads == 0, "feature_dim must be divisible by num_heads"
    out_dtype = out_dtype or rgb.dtype

    # Pick the batch block: keep at least 2 grid steps (so ("parallel",) can
    # split across v7x's two TensorCores) and make it divide B.
    bt = max(1, min(batch_block, B))
    if B >= 2:
        bt = min(bt, max(1, B // 2))
    while B % bt:           # NOTE: prime B silently degrades toward bt=1
        bt -= 1             # (still correct, just a perf cliff — pad B upstream).

    # torch nn.Linear stores (out, in); pre-transpose to (in, out) so the kernel
    # never transposes.  Weights in the MXU dtype (halves weight DMA for bf16);
    # biases stay f32 (added to the f32 accumulators).
    weights = (
        params["wq"].T.astype(mxu_dtype), params["bq"].reshape(1, D).astype(jnp.float32),
        params["wk"].T.astype(mxu_dtype), params["bk"].reshape(1, D).astype(jnp.float32),
        params["wv"].T.astype(mxu_dtype), params["bv"].reshape(1, D).astype(jnp.float32),
        params["wo"].T.astype(mxu_dtype), params["bo"].reshape(1, D).astype(jnp.float32),
    )

    x_spec = pl.BlockSpec((bt, S, D), lambda b: (b, 0, 0))
    # Grid-invariant operands: single-buffer them (constant index_map, nothing to
    # prefetch), halving their VMEM reservation.
    w_specs = [pl.BlockSpec(w.shape, lambda b: (0, 0),
                            pipeline_mode=pl.Buffered(1))
               for w in weights]

    kernel = functools.partial(cross_modal_attention_kernel,
                               num_heads=num_heads, mxu_dtype=mxu_dtype)
    return pl.pallas_call(
        kernel,
        out_shape=jax.ShapeDtypeStruct((B, S, D), out_dtype),
        grid=(B // bt,),
        in_specs=[x_spec, x_spec] + w_specs,
        out_specs=pl.BlockSpec((bt, S, D), lambda b: (b, 0, 0)),
        scratch_shapes=[pltpu.VMEM((bt * S, D), mxu_dtype)],   # flat head-concat ctx
        compiler_params=pltpu.CompilerParams(
            dimension_semantics=("parallel",),
            # At production S/D, set this to ~64-96 MiB on v6e (32 MiB default),
            # and shrink batch_block instead on v7x (64 MiB physical) / v5e.
            vmem_limit_bytes=vmem_limit_bytes),
    )(rgb.astype(mxu_dtype), depth.astype(mxu_dtype), *weights)


# ----------------------------------------------------------------------------
# Pure-JAX reference (exact PyTorch semantics) + deterministic init
# ----------------------------------------------------------------------------
def reference_forward(rgb, depth, params, *, num_heads):
    B, S, D = rgb.shape
    dh = D // num_heads
    q = rgb @ params["wq"].T + params["bq"]
    k = depth @ params["wk"].T + params["bk"]
    v = depth @ params["wv"].T + params["bv"]

    def split(t):
        return t.reshape(B, S, num_heads, dh).transpose(0, 2, 1, 3)

    qh, kh, vh = split(q), split(k), split(v)
    s = jnp.einsum('bhqd,bhkd->bhqk', qh, kh) / jnp.sqrt(jnp.float32(dh))
    p = jax.nn.softmax(s, axis=-1)
    ctx = jnp.einsum('bhqk,bhkd->bhqd', p, vh)
    ctx = ctx.transpose(0, 2, 1, 3).reshape(B, S, D)
    return ctx @ params["wo"].T + params["bo"]


def init_params(key, feature_dim):
    D = feature_dim
    ks = jax.random.split(key, 8)

    def nrm(k, shape, scale=0.1):
        return scale * jax.random.normal(k, shape, jnp.float32)

    return {
        "wq": nrm(ks[0], (D, D)), "bq": nrm(ks[1], (D,)),
        "wk": nrm(ks[2], (D, D)), "bk": nrm(ks[3], (D,)),
        "wv": nrm(ks[4], (D, D)), "bv": nrm(ks[5], (D,)),
        "wo": nrm(ks[6], (D, D)), "bo": nrm(ks[7], (D,)),
    }


if __name__ == "__main__":
    B, S, D, H = 4, 8, 32, 8

    key = jax.random.PRNGKey(0)
    k_rgb, k_dep, k_par = jax.random.split(key, 3)
    rgb = jax.random.normal(k_rgb, (B, S, D), jnp.float32)
    depth = jax.random.normal(k_dep, (B, S, D), jnp.float32)
    params = init_params(k_par, D)

    ref = jax.block_until_ready(reference_forward(rgb, depth, params, num_heads=H))

    # Exact f32 MXU path.
    out_f32 = jax.block_until_ready(cross_modal_attention(
        rgb, depth, params, num_heads=H, batch_block=2, mxu_dtype=jnp.float32))
    assert out_f32.shape == (B, S, D)
    err_f32 = float(jnp.max(jnp.abs(out_f32 - ref)))
    assert err_f32 < 1e-2, f"f32 path: max abs error vs reference: {err_f32}"

    # bf16 MXU path (production default: f32 accumulation / softmax, bf16 operands).
    out_bf16 = jax.block_until_ready(cross_modal_attention(
        rgb, depth, params, num_heads=H, batch_block=2))
    err_bf16 = float(jnp.max(jnp.abs(out_bf16.astype(jnp.float32) - ref)))
    assert err_bf16 < 5e-2, f"bf16 path: max abs error vs reference: {err_bf16}"

    print("KERNEL_OK")
</pallas_src>

<mosaic_0001>
module attributes {stable_mosaic.version = 11 : i64} {
  func.func @cross_modal_attention_kernel(%arg0: i32, %arg1: memref<2x8x32xf32, #tpu.memory_space<vmem>>, %arg2: memref<2x8x32xf32, #tpu.memory_space<vmem>>, %arg3: memref<32x32xf32, #tpu.memory_space<vmem>>, %arg4: memref<1x32xf32, #tpu.memory_space<vmem>>, %arg5: memref<32x32xf32, #tpu.memory_space<vmem>>, %arg6: memref<1x32xf32, #tpu.memory_space<vmem>>, %arg7: memref<32x32xf32, #tpu.memory_space<vmem>>, %arg8: memref<1x32xf32, #tpu.memory_space<vmem>>, %arg9: memref<32x32xf32, #tpu.memory_space<vmem>>, %arg10: memref<1x32xf32, #tpu.memory_space<vmem>>, %arg11: memref<2x8x32xf32, #tpu.memory_space<vmem>>, %arg12: memref<16x32xf32, #tpu.memory_space<vmem>>) attributes {dimension_semantics = [#tpu.dimension_semantics<parallel>], iteration_bounds = array<i64: 2>, scalar_prefetch = 0 : i64, scratch_operands = 1 : i64, tpu.core_type = #tpu.core_type<tc>, window_params = [{transform_indices = @transform_0, window_bounds = array<i64: 2, 8, 32>}, {transform_indices = @transform_1, window_bounds = array<i64: 2, 8, 32>}, {pipeline_mode = #tpu.pipeline_mode<synchronous>, transform_indices = @transform_2, window_bounds = array<i64: 32, 32>}, {pipeline_mode = #tpu.pipeline_mode<synchronous>, transform_indices = @transform_3, window_bounds = array<i64: 1, 32>}, {pipeline_mode = #tpu.pipeline_mode<synchronous>, transform_indices = @transform_4, window_bounds = array<i64: 32, 32>}, {pipeline_mode = #tpu.pipeline_mode<synchronous>, transform_indices = @transform_5, window_bounds = array<i64: 1, 32>}, {pipeline_mode = #tpu.pipeline_mode<synchronous>, transform_indices = @transform_6, window_bounds = array<i64: 32, 32>}, {pipeline_mode = #tpu.pipeline_mode<synchronous>, transform_indices = @transform_7, window_bounds = array<i64: 1, 32>}, {pipeline_mode = #tpu.pipeline_mode<synchronous>, transform_indices = @transform_8, window_bounds = array<i64: 32, 32>}, {pipeline_mode = #tpu.pipeline_mode<synchronous>, transform_indices = @transform_9, window_bounds = array<i64: 1, 32>}, {transform_indices = @transform_10, window_bounds = array<i64: 2, 8, 32>}]} {
    %c0 = arith.constant 0 : index
    %c0_0 = arith.constant 0 : index
    %c0_1 = arith.constant 0 : index
    %0 = vector.load %arg1[%c0, %c0_0, %c0_1] : memref<2x8x32xf32, #tpu.memory_space<vmem>>, vector<2x8x32xf32>
    %1 = vector.shape_cast %0 : vector<2x8x32xf32> to vector<16x32xf32>
    %c0_2 = arith.constant 0 : index
    %c0_3 = arith.constant 0 : index
    %c0_4 = arith.constant 0 : index
    %2 = vector.load %arg2[%c0_2, %c0_3, %c0_4] : memref<2x8x32xf32, #tpu.memory_space<vmem>>, vector<2x8x32xf32>
    %3 = vector.shape_cast %2 : vector<2x8x32xf32> to vector<16x32xf32>
    %c0_5 = arith.constant 0 : index
    %c0_6 = arith.constant 0 : index
    %4 = vector.load %arg3[%c0_5, %c0_6] : memref<32x32xf32, #tpu.memory_space<vmem>>, vector<32x32xf32>
    %cst = arith.constant dense<0.000000e+00> : vector<16x32xf32>
    %5 = tpu.matmul %1, %4, %cst {dimension_numbers = #tpu.dot_dimension_numbers<[1], [0], [0], [1], [0, 0, 1, 1], [], []>} : vector<16x32xf32>, vector<32x32xf32>, vector<16x32xf32> -> vector<16x32xf32>
    %c0_7 = arith.constant 0 : index
    %c0_8 = arith.constant 0 : index
    %6 = vector.load %arg4[%c0_7, %c0_8] : memref<1x32xf32, #tpu.memory_space<vmem>>, vector<1x32xf32>
    %7 = vector.broadcast %6 : vector<1x32xf32> to vector<16x32xf32>
    %8 = arith.addf %5, %7 : vector<16x32xf32>
    %cst_9 = arith.constant 5.000000e-01 : f32
    %9 = vector.broadcast %cst_9 : f32 to vector<16x32xf32>
    %10 = arith.mulf %8, %9 : vector<16x32xf32>
    %c0_10 = arith.constant 0 : index
    %c0_11 = arith.constant 0 : index
    %11 = vector.load %arg5[%c0_10, %c0_11] : memref<32x32xf32, #tpu.memory_space<vmem>>, vector<32x32xf32>
    %cst_12 = arith.constant dense<0.000000e+00> : vector<16x32xf32>
    %12 = tpu.matmul %3, %11, %cst_12 {dimension_numbers = #tpu.dot_dimension_numbers<[1], [0], [0], [1], [0, 0, 1, 1], [], []>} : vector<16x32xf32>, vector<32x32xf32>, vector<16x32xf32> -> vector<16x32xf32>
    %c0_13 = arith.constant 0 : index
    %c0_14 = arith.constant 0 : index
    %13 = vector.load %arg6[%c0_13, %c0_14] : memref<1x32xf32, #tpu.memory_space<vmem>>, vector<1x32xf32>
    %14 = vector.broadcast %13 : vector<1x32xf32> to vector<16x32xf32>
    %15 = arith.addf %12, %14 : vector<16x32xf32>
    %c0_15 = arith.constant 0 : index
    %c0_16 = arith.constant 0 : index
    %16 = vector.load %arg7[%c0_15, %c0_16] : memref<32x32xf32, #tpu.memory_space<vmem>>, vector<32x32xf32>
    %cst_17 = arith.constant dense<0.000000e+00> : vector<16x32xf32>
    %17 = tpu.matmul %3, %16, %cst_17 {dimension_numbers = #tpu.dot_dimension_numbers<[1], [0], [0], [1], [0, 0, 1, 1], [], []>} : vector<16x32xf32>, vector<32x32xf32>, vector<16x32xf32> -> vector<16x32xf32>
    %c0_18 = arith.constant 0 : index
    %c0_19 = arith.constant 0 : index
    %18 = vector.load %arg8[%c0_18, %c0_19] : memref<1x32xf32, #tpu.memory_space<vmem>>, vector<1x32xf32>
    %19 = vector.broadcast %18 : vector<1x32xf32> to vector<16x32xf32>
    %20 = arith.addf %17, %19 : vector<16x32xf32>
    %21 = vector.extract_strided_slice %10 {offsets = [0, 0], sizes = [16, 4], strides = [1, 1]} : vector<16x32xf32> to vector<16x4xf32>
    %22 = vector.shape_cast %21 : vector<16x4xf32> to vector<2x8x4xf32>
    %23 = vector.extract_strided_slice %15 {offsets = [0, 0], sizes = [16, 4], strides = [1, 1]} : vector<16x32xf32> to vector<16x4xf32>
    %24 = vector.shape_cast %23 : vector<16x4xf32> to vector<2x8x4xf32>
    %25 = vector.extract_strided_slice %20 {offsets = [0, 0], sizes = [16, 4], strides = [1, 1]} : vector<16x32xf32> to vector<16x4xf32>
    %26 = vector.shape_cast %25 : vector<16x4xf32> to vector<2x8x4xf32>
    "tpu.trace_start"() <{level = 10 : i32, message = "bqd,bkd->bqk"}> : () -> ()
    %cst_20 = arith.constant dense<0.000000e+00> : vector<2x8x8xf32>
    %27 = tpu.matmul %22, %24, %cst_20 {dimension_numbers = #tpu.dot_dimension_numbers<[2], [2], [1], [1], [0, 0, 0, 1, 1, 1], [0], [0]>} : vector<2x8x4xf32>, vector<2x8x4xf32>, vector<2x8x8xf32> -> vector<2x8x8xf32>
    "tpu.trace_stop"() : () -> ()
    %cst_21 = arith.constant dense<0xFF800000> : vector<2x8xf32>
    %28 = vector.multi_reduction <maximumf>, %27, %cst_21 [2] : vector<2x8x8xf32> to vector<2x8xf32>
    %29 = vector.shape_cast %28 : vector<2x8xf32> to vector<2x8x1xf32>
    %30 = vector.broadcast %29 : vector<2x8x1xf32> to vector<2x8x8xf32>
    %31 = arith.subf %27, %30 : vector<2x8x8xf32>
    %32 = math.exp %31 : vector<2x8x8xf32>
    %cst_22 = arith.constant dense<0.000000e+00> : vector<2x8xf32>
    %33 = vector.multi_reduction <add>, %32, %cst_22 [2] : vector<2x8x8xf32> to vector<2x8xf32>
    %34 = vector.shape_cast %33 : vector<2x8xf32> to vector<2x8x1xf32>
    %35 = tpu.reciprocal %34 {approx = true} : vector<2x8x1xf32> -> vector<2x8x1xf32>
    %36 = vector.broadcast %35 : vector<2x8x1xf32> to vector<2x8x8xf32>
    %37 = arith.mulf %32, %36 : vector<2x8x8xf32>
    "tpu.trace_start"() <{level = 10 : i32, message = "bqk,bkd->bqd"}> : () -> ()
    %cst_23 = arith.constant dense<0.000000e+00> : vector<2x8x4xf32>
    %38 = tpu.matmul %37, %26, %cst_23 {dimension_numbers = #tpu.dot_dimension_numbers<[2], [1], [1], [2], [0, 0, 0, 1, 1, 2], [0], [0]>} : vector<2x8x8xf32>, vector<2x8x4xf32>, vector<2x8x4xf32> -> vector<2x8x4xf32>
    "tpu.trace_stop"() : () -> ()
    %39 = vector.shape_cast %38 : vector<2x8x4xf32> to vector<16x4xf32>
    %c0_24 = arith.constant 0 : index
    %c0_25 = arith.constant 0 : index
    %40 = vector.load %arg12[%c0_24, %c0_25] : memref<16x32xf32, #tpu.memory_space<vmem>>, vector<16x4xf32>
    tpu.vector_store %arg12[%c0_24, %c0_25], %39 {strides = array<i32>} : memref<16x32xf32, #tpu.memory_space<vmem>>, vector<16x4xf32>,
    %41 = vector.extract_strided_slice %10 {offsets = [0, 4], sizes = [16, 4], strides = [1, 1]} : vector<16x32xf32> to vector<16x4xf32>
    %42 = vector.shape_cast %41 : vector<16x4xf32> to vector<2x8x4xf32>
    %43 = vector.extract_strided_slice %15 {offsets = [0, 4], sizes = [16, 4], strides = [1, 1]} : vector<16x32xf32> to vector<16x4xf32>
    %44 = vector.shape_cast %43 : vector<16x4xf32> to vector<2x8x4xf32>
    %45 = vector.extract_strided_slice %20 {offsets = [0, 4], sizes = [16, 4], strides = [1, 1]} : vector<16x32xf32> to vector<16x4xf32>
    %46 = vector.shape_cast %45 : vector<16x4xf32> to vector<2x8x4xf32>
    "tpu.trace_start"() <{level = 10 : i32, message = "bqd,bkd->bqk"}> : () -> ()
    %cst_26 = arith.constant dense<0.000000e+00> : vector<2x8x8xf32>
    %47 = tpu.matmul %42, %44, %cst_26 {dimension_numbers = #tpu.dot_dimension_numbers<[2], [2], [1], [1], [0, 0, 0, 1, 1, 1], [0], [0]>} : vector<2x8x4xf32>, vector<2x8x4xf32>, vector<2x8x8xf32> -> vector<2x8x8xf32>
    "tpu.trace_stop"() : () -> ()
    %cst_27 = arith.constant dense<0xFF800000> : vector<2x8xf32>
    %48 = vector.multi_reduction <maximumf>, %47, %cst_27 [2] : vector<2x8x8xf32> to vector<2x8xf32>
    %49 = vector.shape_cast %48 : vector<2x8xf32> to vector<2x8x1xf32>
    %50 = vector.broadcast %49 : vector<2x8x1xf32> to vector<2x8x8xf32>
    %51 = arith.subf %47, %50 : vector<2x8x8xf32>
    %52 = math.exp %51 : vector<2x8x8xf32>
    %cst_28 = arith.constant dense<0.000000e+00> : vector<2x8xf32>
    %53 = vector.multi_reduction <add>, %52, %cst_28 [2] : vector<2x8x8xf32> to vector<2x8xf32>
    %54 = vector.shape_cast %53 : vector<2x8xf32> to vector<2x8x1xf32>
    %55 = tpu.reciprocal %54 {approx = true} : vector<2x8x1xf32> -> vector<2x8x1xf32>
    %56 = vector.broadcast %55 : vector<2x8x1xf32> to vector<2x8x8xf32>
    %57 = arith.mulf %52, %56 : vector<2x8x8xf32>
    "tpu.trace_start"() <{level = 10 : i32, message = "bqk,bkd->bqd"}> : () -> ()
    %cst_29 = arith.constant dense<0.000000e+00> : vector<2x8x4xf32>
    %58 = tpu.matmul %57, %46, %cst_29 {dimension_numbers = #tpu.dot_dimension_numbers<[2], [1], [1], [2], [0, 0, 0, 1, 1, 2], [0], [0]>} : vector<2x8x8xf32>, vector<2x8x4xf32>, vector<2x8x4xf32> -> vector<2x8x4xf32>
    "tpu.trace_stop"() : () -> ()
    %59 = vector.shape_cast %58 : vector<2x8x4xf32> to vector<16x4xf32>
    %c0_30 = arith.constant 0 : index
    %c4 = arith.constant 4 : index
    %60 = vector.load %arg12[%c0_30, %c4] : memref<16x32xf32, #tpu.memory_space<vmem>>, vector<16x4xf32>
    tpu.vector_store %arg12[%c0_30, %c4], %59 {strides = array<i32>} : memref<16x32xf32, #tpu.memory_space<vmem>>, vector<16x4xf32>,
    %61 = vector.extract_strided_slice %10 {offsets = [0, 8], sizes = [16, 4], strides = [1, 1]} : vector<16x32xf32> to vector<16x4xf32>
    %62 = vector.shape_cast %61 : vector<16x4xf32> to vector<2x8x4xf32>
    %63 = vector.extract_strided_slice %15 {offsets = [0, 8], sizes = [16, 4], strides = [1, 1]} : vector<16x32xf32> to vector<16x4xf32>
    %64 = vector.shape_cast %63 : vector<16x4xf32> to vector<2x8x4xf32>
    %65 = vector.extract_strided_slice %20 {offsets = [0, 8], sizes = [16, 4], strides = [1, 1]} : vector<16x32xf32> to vector<16x4xf32>
    %66 = vector.shape_cast %65 : vector<16x4xf32> to vector<2x8x4xf32>
    "tpu.trace_start"() <{level = 10 : i32, message = "bqd,bkd->bqk"}> : () -> ()
    %cst_31 = arith.constant dense<0.000000e+00> : vector<2x8x8xf32>
    %67 = tpu.matmul %62, %64, %cst_31 {dimension_numbers = #tpu.dot_dimension_numbers<[2], [2], [1], [1], [0, 0, 0, 1, 1, 1], [0], [0]>} : vector<2x8x4xf32>, vector<2x8x4xf32>, vector<2x8x8xf32> -> vector<2x8x8xf32>
    "tpu.trace_stop"() : () -> ()
    %cst_32 = arith.constant dense<0xFF800000> : vector<2x8xf32>
    %68 = vector.multi_reduction <maximumf>, %67, %cst_32 [2] : vector<2x8x8xf32> to vector<2x8xf32>
    %69 = vector.shape_cast %68 : vector<2x8xf32> to vector<2x8x1xf32>
    %70 = vector.broadcast %69 : vector<2x8x1xf32> to vector<2x8x8xf32>
    %71 = arith.subf %67, %70 : vector<2x8x8xf32>
    %72 = math.exp %71 : vector<2x8x8xf32>
    %cst_33 = arith.constant dense<0.000000e+00> : vector<2x8xf32>
    %73 = vector.multi_reduction <add>, %72, %cst_33 [2] : vector<2x8x8xf32> to vector<2x8xf32>
    %74 = vector.shape_cast %73 : vector<2x8xf32> to vector<2x8x1xf32>
    %75 = tpu.reciprocal %74 {approx = true} : vector<2x8x1xf32> -> vector<2x8x1xf32>
    %76 = vector.broadcast %75 : vector<2x8x1xf32> to vector<2x8x8xf32>
    %77 = arith.mulf %72, %76 : vector<2x8x8xf32>
    "tpu.trace_start"() <{level = 10 : i32, message = "bqk,bkd->bqd"}> : () -> ()
    %cst_34 = arith.constant dense<0.000000e+00> : vector<2x8x4xf32>
    %78 = tpu.matmul %77, %66, %cst_34 {dimension_numbers = #tpu.dot_dimension_numbers<[2], [1], [1], [2], [0, 0, 0, 1, 1, 2], [0], [0]>} : vector<2x8x8xf32>, vector<2x8x4xf32>, vector<2x8x4xf32> -> vector<2x8x4xf32>
    "tpu.trace_stop"() : () -> ()
    %79 = vector.shape_cast %78 : vector<2x8x4xf32> to vector<16x4xf32>
    %c0_35 = arith.constant 0 : index
    %c8 = arith.constant 8 : index
    %80 = vector.load %arg12[%c0_35, %c8] : memref<16x32xf32, #tpu.memory_space<vmem>>, vector<16x4xf32>
    tpu.vector_store %arg12[%c0_35, %c8], %79 {strides = array<i32>} : memref<16x32xf32, #tpu.memory_space<vmem>>, vector<16x4xf32>,
    %81 = vector.extract_strided_slice %10 {offsets = [0, 12], sizes = [16, 4], strides = [1, 1]} : vector<16x32xf32> to vector<16x4xf32>
    %82 = vector.shape_cast %81 : vector<16x4xf32> to vector<2x8x4xf32>
    %83 = vector.extract_strided_slice %15 {offsets = [0, 12], sizes = [16, 4], strides = [1, 1]} : vector<16x32xf32> to vector<16x4xf32>
    %84 = vector.shape_cast %83 : vector<16x4xf32> to vector<2x8x4xf32>
    %85 = vector.extract_strided_slice %20 {offsets = [0, 12], sizes = [16, 4], strides = [1, 1]} : vector<16x32xf32> to vector<16x4xf32>
    %86 = vector.shape_cast %85 : vector<16x4xf32> to vector<2x8x4xf32>
    "tpu.trace_start"() <{level = 10 : i32, message = "bqd,bkd->bqk"}> : () -> ()
    %cst_36 = arith.constant dense<0.000000e+00> : vector<2x8x8xf32>
    %87 = tpu.matmul %82, %84, %cst_36 {dimension_numbers = #tpu.dot_dimension_numbers<[2], [2], [1], [1], [0, 0, 0, 1, 1, 1], [0], [0]>} : vector<2x8x4xf32>, vector<2x8x4xf32>, vector<2x8x8xf32> -> vector<2x8x8xf32>
    "tpu.trace_stop"() : () -> ()
    %cst_37 = arith.constant dense<0xFF800000> : vector<2x8xf32>
    %88 = vector.multi_reduction <maximumf>, %87, %cst_37 [2] : vector<2x8x8xf32> to vector<2x8xf32>
    %89 = vector.shape_cast %88 : vector<2x8xf32> to vector<2x8x1xf32>
    %90 = vector.broadcast %89 : vector<2x8x1xf32> to vector<2x8x8xf32>
    %91 = arith.subf %87, %90 : vector<2x8x8xf32>
    %92 = math.exp %91 : vector<2x8x8xf32>
    %cst_38 = arith.constant dense<0.000000e+00> : vector<2x8xf32>
    %93 = vector.multi_reduction <add>, %92, %cst_38 [2] : vector<2x8x8xf32> to vector<2x8xf32>
    %94 = vector.shape_cast %93 : vector<2x8xf32> to vector<2x8x1xf32>
    %95 = tpu.reciprocal %94 {approx = true} : vector<2x8x1xf32> -> vector<2x8x1xf32>
    %96 = vector.broadcast %95 : vector<2x8x1xf32> to vector<2x8x8xf32>
    %97 = arith.mulf %92, %96 : vector<2x8x8xf32>
    "tpu.trace_start"() <{level = 10 : i32, message = "bqk,bkd->bqd"}> : () -> ()
    %cst_39 = arith.constant dense<0.000000e+00> : vector<2x8x4xf32>
    %98 = tpu.matmul %97, %86, %cst_39 {dimension_numbers = #tpu.dot_dimension_numbers<[2], [1], [1], [2], [0, 0, 0, 1, 1, 2], [0], [0]>} : vector<2x8x8xf32>, vector<2x8x4xf32>, vector<2x8x4xf32> -> vector<2x8x4xf32>
    "tpu.trace_stop"() : () -> ()
    %99 = vector.shape_cast %98 : vector<2x8x4xf32> to vector<16x4xf32>
    %c0_40 = arith.constant 0 : index
    %c12 = arith.constant 12 : index
    %100 = vector.load %arg12[%c0_40, %c12] : memref<16x32xf32, #tpu.memory_space<vmem>>, vector<16x4xf32>
    tpu.vector_store %arg12[%c0_40, %c12], %99 {strides = array<i32>} : memref<16x32xf32, #tpu.memory_space<vmem>>, vector<16x4xf32>,
    %101 = vector.extract_strided_slice %10 {offsets = [0, 16], sizes = [16, 4], strides = [1, 1]} : vector<16x32xf32> to vector<16x4xf32>
    %102 = vector.shape_cast %101 : vector<16x4xf32> to vector<2x8x4xf32>
    %103 = vector.extract_strided_slice %15 {offsets = [0, 16], sizes = [16, 4], strides = [1, 1]} : vector<16x32xf32> to vector<16x4xf32>
    %104 = vector.shape_cast %103 : vector<16x4xf32> to vector<2x8x4xf32>
    %105 = vector.extract_strided_slice %20 {offsets = [0, 16], sizes = [16, 4], strides = [1, 1]} : vector<16x32xf32> to vector<16x4xf32>
    %106 = vector.shape_cast %105 : vector<16x4xf32> to vector<2x8x4xf32>
    "tpu.trace_start"() <{level = 10 : i32, message = "bqd,bkd->bqk"}> : () -> ()
    %cst_41 = arith.constant dense<0.000000e+00> : vector<2x8x8xf32>
    %107 = tpu.matmul %102, %104, %cst_41 {dimension_numbers = #tpu.dot_dimension_numbers<[2], [2], [1], [1], [0, 0, 0, 1, 1, 1], [0], [0]>} : vector<2x8x4xf32>, vector<2x8x4xf32>, vector<2x8x8xf32> -> vector<2x8x8xf32>
    "tpu.trace_stop"() : () -> ()
    %cst_42 = arith.constant dense<0xFF800000> : vector<2x8xf32>
    %108 = vector.multi_reduction <maximumf>, %107, %cst_42 [2] : vector<2x8x8xf32> to vector<2x8xf32>
    %109 = vector.shape_cast %108 : vector<2x8xf32> to vector<2x8x1xf32>
    %110 = vector.broadcast %109 : vector<2x8x1xf32> to vector<2x8x8xf32>
    %111 = arith.subf %107, %110 : vector<2x8x8xf32>
    %112 = math.exp %111 : vector<2x8x8xf32>
    %cst_43 = arith.constant dense<0.000000e+00> : vector<2x8xf32>
    %113 = vector.multi_reduction <add>, %112, %cst_43 [2] : vector<2x8x8xf32> to vector<2x8xf32>
    %114 = vector.shape_cast %113 : vector<2x8xf32> to vector<2x8x1xf32>
    %115 = tpu.reciprocal %114 {approx = true} : vector<2x8x1xf32> -> vector<2x8x1xf32>
    %116 = vector.broadcast %115 : vector<2x8x1xf32> to vector<2x8x8xf32>
    %117 = arith.mulf %112, %116 : vector<2x8x8xf32>
    "tpu.trace_start"() <{level = 10 : i32, message = "bqk,bkd->bqd"}> : () -> ()
    %cst_44 = arith.constant dense<0.000000e+00> : vector<2x8x4xf32>
    %118 = tpu.matmul %117, %106, %cst_44 {dimension_numbers = #tpu.dot_dimension_numbers<[2], [1], [1], [2], [0, 0, 0, 1, 1, 2], [0], [0]>} : vector<2x8x8xf32>, vector<2x8x4xf32>, vector<2x8x4xf32> -> vector<2x8x4xf32>
    "tpu.trace_stop"() : () -> ()
    %119 = vector.shape_cast %118 : vector<2x8x4xf32> to vector<16x4xf32>
    %c0_45 = arith.constant 0 : index
    %c16 = arith.constant 16 : index
    %120 = vector.load %arg12[%c0_45, %c16] : memref<16x32xf32, #tpu.memory_space<vmem>>, vector<16x4xf32>
    tpu.vector_store %arg12[%c0_45, %c16], %119 {strides = array<i32>} : memref<16x32xf32, #tpu.memory_space<vmem>>, vector<16x4xf32>,
    %121 = vector.extract_strided_slice %10 {offsets = [0, 20], sizes = [16, 4], strides = [1, 1]} : vector<16x32xf32> to vector<16x4xf32>
    %122 = vector.shape_cast %121 : vector<16x4xf32> to vector<2x8x4xf32>
    %123 = vector.extract_strided_slice %15 {offsets = [0, 20], sizes = [16, 4], strides = [1, 1]} : vector<16x32xf32> to vector<16x4xf32>
    %124 = vector.shape_cast %123 : vector<16x4xf32> to vector<2x8x4xf32>
    %125 = vector.extract_strided_slice %20 {offsets = [0, 20], sizes = [16, 4], strides = [1, 1]} : vector<16x32xf32> to vector<16x4xf32>
    %126 = vector.shape_cast %125 : vector<16x4xf32> to vector<2x8x4xf32>
    "tpu.trace_start"() <{level = 10 : i32, message = "bqd,bkd->bqk"}> : () -> ()
    %cst_46 = arith.constant dense<0.000000e+00> : vector<2x8x8xf32>
    %127 = tpu.matmul %122, %124, %cst_46 {dimension_numbers = #tpu.dot_dimension_numbers<[2], [2], [1], [1], [0, 0, 0, 1, 1, 1], [0], [0]>} : vector<2x8x4xf32>, vector<2x8x4xf32>, vector<2x8x8xf32> -> vector<2x8x8xf32>
    "tpu.trace_stop"() : () -> ()
    %cst_47 = arith.constant dense<0xFF800000> : vector<2x8xf32>
    %128 = vector.multi_reduction <maximumf>, %127, %cst_47 [2] : vector<2x8x8xf32> to vector<2x8xf32>
    %129 = vector.shape_cast %128 : vector<2x8xf32> to vector<2x8x1xf32>
    %130 = vector.broadcast %129 : vector<2x8x1xf32> to vector<2x8x8xf32>
    %131 = arith.subf %127, %130 : vector<2x8x8xf32>
    %132 = math.exp %131 : vector<2x8x8xf32>
    %cst_48 = arith.constant dense<0.000000e+00> : vector<2x8xf32>
    %133 = vector.multi_reduction <add>, %132, %cst_48 [2] : vector<2x8x8xf32> to vector<2x8xf32>
    %134 = vector.shape_cast %133 : vector<2x8xf32> to vector<2x8x1xf32>
    %135 = tpu.reciprocal %134 {approx = true} : vector<2x8x1xf32> -> vector<2x8x1xf32>
    %136 = vector.broadcast %135 : vector<2x8x1xf32> to vector<2x8x8xf32>
    %137 = arith.mulf %132, %136 : vector<2x8x8xf32>
    "tpu.trace_start"() <{level = 10 : i32, message = "bqk,bkd->bqd"}> : () -> ()
    %cst_49 = arith.constant dense<0.000000e+00> : vector<2x8x4xf32>
    %138 = tpu.matmul %137, %126, %cst_49 {dimension_numbers = #tpu.dot_dimension_numbers<[2], [1], [1], [2], [0, 0, 0, 1, 1, 2], [0], [0]>} : vector<2x8x8xf32>, vector<2x8x4xf32>, vector<2x8x4xf32> -> vector<2x8x4xf32>
    "tpu.trace_stop"() : () -> ()
    %139 = vector.shape_cast %138 : vector<2x8x4xf32> to vector<16x4xf32>
    %c0_50 = arith.constant 0 : index
    %c20 = arith.constant 20 : index
    %140 = vector.load %arg12[%c0_50, %c20] : memref<16x32xf32, #tpu.memory_space<vmem>>, vector<16x4xf32>
    tpu.vector_store %arg12[%c0_50, %c20], %139 {strides = array<i32>} : memref<16x32xf32, #tpu.memory_space<vmem>>, vector<16x4xf32>,
    %141 = vector.extract_strided_slice %10 {offsets = [0, 24], sizes = [16, 4], strides = [1, 1]} : vector<16x32xf32> to vector<16x4xf32>
    %142 = vector.shape_cast %141 : vector<16x4xf32> to vector<2x8x4xf32>
    %143 = vector.extract_strided_slice %15 {offsets = [0, 24], sizes = [16, 4], strides = [1, 1]} : vector<16x32xf32> to vector<16x4xf32>
    %144 = vector.shape_cast %143 : vector<16x4xf32> to vector<2x8x4xf32>
    %145 = vector.extract_strided_slice %20 {offsets = [0, 24], sizes = [16, 4], strides = [1, 1]} : vector<16x32xf32> to vector<16x4xf32>
    %146 = vector.shape_cast %145 : vector<16x4xf32> to vector<2x8x4xf32>
    "tpu.trace_start"() <{level = 10 : i32, message = "bqd,bkd->bqk"}> : () -> ()
    %cst_51 = arith.constant dense<0.000000e+00> : vector<2x8x8xf32>
    %147 = tpu.matmul %142, %144, %cst_51 {dimension_numbers = #tpu.dot_dimension_numbers<[2], [2], [1], [1], [0, 0, 0, 1, 1, 1], [0], [0]>} : vector<2x8x4xf32>, vector<2x8x4xf32>, vector<2x8x8xf32> -> vector<2x8x8xf32>
    "tpu.trace_stop"() : () -> ()
    %cst_52 = arith.constant dense<0xFF800000> : vector<2x8xf32>
    %148 = vector.multi_reduction <maximumf>, %147, %cst_52 [2] : vector<2x8x8xf32> to vector<2x8xf32>
    %149 = vector.shape_cast %148 : vector<2x8xf32> to vector<2x8x1xf32>
    %150 = vector.broadcast %149 : vector<2x8x1xf32> to vector<2x8x8xf32>
    %151 = arith.subf %147, %150 : vector<2x8x8xf32>
    %152 = math.exp %151 : vector<2x8x8xf32>
    %cst_53 = arith.constant dense<0.000000e+00> : vector<2x8xf32>
    %153 = vector.multi_reduction <add>, %152, %cst_53 [2] : vector<2x8x8xf32> to vector<2x8xf32>
    %154 = vector.shape_cast %153 : vector<2x8xf32> to vector<2x8x1xf32>
    %155 = tpu.reciprocal %154 {approx = true} : vector<2x8x1xf32> -> vector<2x8x1xf32>
    %156 = vector.broadcast %155 : vector<2x8x1xf32> to vector<2x8x8xf32>
    %157 = arith.mulf %152, %156 : vector<2x8x8xf32>
    "tpu.trace_start"() <{level = 10 : i32, message = "bqk,bkd->bqd"}> : () -> ()
    %cst_54 = arith.constant dense<0.000000e+00> : vector<2x8x4xf32>
    %158 = tpu.matmul %157, %146, %cst_54 {dimension_numbers = #tpu.dot_dimension_numbers<[2], [1], [1], [2], [0, 0, 0, 1, 1, 2], [0], [0]>} : vector<2x8x8xf32>, vector<2x8x4xf32>, vector<2x8x4xf32> -> vector<2x8x4xf32>
    "tpu.trace_stop"() : () -> ()
    %159 = vector.shape_cast %158 : vector<2x8x4xf32> to vector<16x4xf32>
    %c0_55 = arith.constant 0 : index
    %c24 = arith.constant 24 : index
    %160 = vector.load %arg12[%c0_55, %c24] : memref<16x32xf32, #tpu.memory_space<vmem>>, vector<16x4xf32>
    tpu.vector_store %arg12[%c0_55, %c24], %159 {strides = array<i32>} : memref<16x32xf32, #tpu.memory_space<vmem>>, vector<16x4xf32>,
    %161 = vector.extract_strided_slice %10 {offsets = [0, 28], sizes = [16, 4], strides = [1, 1]} : vector<16x32xf32> to vector<16x4xf32>
    %162 = vector.shape_cast %161 : vector<16x4xf32> to vector<2x8x4xf32>
    %163 = vector.extract_strided_slice %15 {offsets = [0, 28], sizes = [16, 4], strides = [1, 1]} : vector<16x32xf32> to vector<16x4xf32>
    %164 = vector.shape_cast %163 : vector<16x4xf32> to vector<2x8x4xf32>
    %165 = vector.extract_strided_slice %20 {offsets = [0, 28], sizes = [16, 4], strides = [1, 1]} : vector<16x32xf32> to vector<16x4xf32>
    %166 = vector.shape_cast %165 : vector<16x4xf32> to vector<2x8x4xf32>
    "tpu.trace_start"() <{level = 10 : i32, message = "bqd,bkd->bqk"}> : () -> ()
    %cst_56 = arith.constant dense<0.000000e+00> : vector<2x8x8xf32>
    %167 = tpu.matmul %162, %164, %cst_56 {dimension_numbers = #tpu.dot_dimension_numbers<[2], [2], [1], [1], [0, 0, 0, 1, 1, 1], [0], [0]>} : vector<2x8x4xf32>, vector<2x8x4xf32>, vector<2x8x8xf32> -> vector<2x8x8xf32>
    "tpu.trace_stop"() : () -> ()
    %cst_57 = arith.constant dense<0xFF800000> : vector<2x8xf32>
    %168 = vector.multi_reduction <maximumf>, %167, %cst_57 [2] : vector<2x8x8xf32> to vector<2x8xf32>
    %169 = vector.shape_cast %168 : vector<2x8xf32> to vector<2x8x1xf32>
    %170 = vector.broadcast %169 : vector<2x8x1xf32> to vector<2x8x8xf32>
    %171 = arith.subf %167, %170 : vector<2x8x8xf32>
    %172 = math.exp %171 : vector<2x8x8xf32>
    %cst_58 = arith.constant dense<0.000000e+00> : vector<2x8xf32>
    %173 = vector.multi_reduction <add>, %172, %cst_58 [2] : vector<2x8x8xf32> to vector<2x8xf32>
    %174 = vector.shape_cast %173 : vector<2x8xf32> to vector<2x8x1xf32>
    %175 = tpu.reciprocal %174 {approx = true} : vector<2x8x1xf32> -> vector<2x8x1xf32>
    %176 = vector.broadcast %175 : vector<2x8x1xf32> to vector<2x8x8xf32>
    %177 = arith.mulf %172, %176 : vector<2x8x8xf32>
    "tpu.trace_start"() <{level = 10 : i32, message = "bqk,bkd->bqd"}> : () -> ()
    %cst_59 = arith.constant dense<0.000000e+00> : vector<2x8x4xf32>
    %178 = tpu.matmul %177, %166, %cst_59 {dimension_numbers = #tpu.dot_dimension_numbers<[2], [1], [1], [2], [0, 0, 0, 1, 1, 2], [0], [0]>} : vector<2x8x8xf32>, vector<2x8x4xf32>, vector<2x8x4xf32> -> vector<2x8x4xf32>
    "tpu.trace_stop"() : () -> ()
    %179 = vector.shape_cast %178 : vector<2x8x4xf32> to vector<16x4xf32>
    %c0_60 = arith.constant 0 : index
    %c28 = arith.constant 28 : index
    %180 = vector.load %arg12[%c0_60, %c28] : memref<16x32xf32, #tpu.memory_space<vmem>>, vector<16x4xf32>
    tpu.vector_store %arg12[%c0_60, %c28], %179 {strides = array<i32>} : memref<16x32xf32, #tpu.memory_space<vmem>>, vector<16x4xf32>,
    %c0_61 = arith.constant 0 : index
    %c0_62 = arith.constant 0 : index
    %181 = vector.load %arg12[%c0_61, %c0_62] : memref<16x32xf32, #tpu.memory_space<vmem>>, vector<16x32xf32>
    %c0_63 = arith.constant 0 : index
    %c0_64 = arith.constant 0 : index
    %182 = vector.load %arg9[%c0_63, %c0_64] : memref<32x32xf32, #tpu.memory_space<vmem>>, vector<32x32xf32>
    %cst_65 = arith.constant dense<0.000000e+00> : vector<16x32xf32>
    %183 = tpu.matmul %181, %182, %cst_65 {dimension_numbers = #tpu.dot_dimension_numbers<[1], [0], [0], [1], [0, 0, 1, 1], [], []>} : vector<16x32xf32>, vector<32x32xf32>, vector<16x32xf32> -> vector<16x32xf32>
    %c0_66 = arith.constant 0 : index
    %c0_67 = arith.constant 0 : index
    %184 = vector.load %arg10[%c0_66, %c0_67] : memref<1x32xf32, #tpu.memory_space<vmem>>, vector<1x32xf32>
    %185 = vector.broadcast %184 : vector<1x32xf32> to vector<16x32xf32>
    %186 = arith.addf %183, %185 : vector<16x32xf32>
    %187 = vector.shape_cast %186 : vector<16x32xf32> to vector<2x8x32xf32>
    %c0_68 = arith.constant 0 : index
    %c0_69 = arith.constant 0 : index
    %c0_70 = arith.constant 0 : index
    %188 = vector.load %arg11[%c0_68, %c0_69, %c0_70] : memref<2x8x32xf32, #tpu.memory_space<vmem>>, vector<2x8x32xf32>
    tpu.vector_store %arg11[%c0_68, %c0_69, %c0_70], %187 {strides = array<i32>} : memref<2x8x32xf32, #tpu.memory_space<vmem>>, vector<2x8x32xf32>,
    return
  }
  func.func @transform_0(%arg0: i32) -> (i32, i32, i32) {
    %c0_i32 = arith.constant 0 : i32
    %c0_i32_0 = arith.constant 0 : i32
    %c0_i32_1 = arith.constant 0 : i32
    return %arg0, %c0_i32, %c0_i32_0 : i32, i32, i32
  }
  func.func @transform_1(%arg0: i32) -> (i32, i32, i32) {
    %c0_i32 = arith.constant 0 : i32
    %c0_i32_0 = arith.constant 0 : i32
    %c0_i32_1 = arith.constant 0 : i32
    return %arg0, %c0_i32, %c0_i32_0 : i32, i32, i32
  }
  func.func @transform_2(%arg0: i32) -> (i32, i32) {
    %c0_i32 = arith.constant 0 : i32
    %c0_i32_0 = arith.constant 0 : i32
    %c0_i32_1 = arith.constant 0 : i32
    return %c0_i32, %c0_i32_0 : i32, i32
  }
  func.func @transform_3(%arg0: i32) -> (i32, i32) {
    %c0_i32 = arith.constant 0 : i32
    %c0_i32_0 = arith.constant 0 : i32
    %c0_i32_1 = arith.constant 0 : i32
    return %c0_i32, %c0_i32_0 : i32, i32
  }
  func.func @transform_4(%arg0: i32) -> (i32, i32) {
    %c0_i32 = arith.constant 0 : i32
    %c0_i32_0 = arith.constant 0 : i32
    %c0_i32_1 = arith.constant 0 : i32
    return %c0_i32, %c0_i32_0 : i32, i32
  }
  func.func @transform_5(%arg0: i32) -> (i32, i32) {
    %c0_i32 = arith.constant 0 : i32
    %c0_i32_0 = arith.constant 0 : i32
    %c0_i32_1 = arith.constant 0 : i32
    return %c0_i32, %c0_i32_0 : i32, i32
  }
  func.func @transform_6(%arg0: i32) -> (i32, i32) {
    %c0_i32 = arith.constant 0 : i32
    %c0_i32_0 = arith.constant 0 : i32
    %c0_i32_1 = arith.constant 0 : i32
    return %c0_i32, %c0_i32_0 : i32, i32
  }
  func.func @transform_7(%arg0: i32) -> (i32, i32) {
    %c0_i32 = arith.constant 0 : i32
    %c0_i32_0 = arith.constant 0 : i32
    %c0_i32_1 = arith.constant 0 : i32
    return %c0_i32, %c0_i32_0 : i32, i32
  }
  func.func @transform_8(%arg0: i32) -> (i32, i32) {
    %c0_i32 = arith.constant 0 : i32
    %c0_i32_0 = arith.constant 0 : i32
    %c0_i32_1 = arith.constant 0 : i32
    return %c0_i32, %c0_i32_0 : i32, i32
  }
  func.func @transform_9(%arg0: i32) -> (i32, i32) {
    %c0_i32 = arith.constant 0 : i32
    %c0_i32_0 = arith.constant 0 : i32
    %c0_i32_1 = arith.constant 0 : i32
    return %c0_i32, %c0_i32_0 : i32, i32
  }
  func.func @transform_10(%arg0: i32) -> (i32, i32, i32) {
    %c0_i32 = arith.constant 0 : i32
    %c0_i32_0 = arith.constant 0 : i32
    %c0_i32_1 = arith.constant 0 : i32
    return %arg0, %c0_i32, %c0_i32_0 : i32, i32, i32
  }
}

</mosaic_0001>

<llo_original>
// kernel: tpu_custom_call.1
$region0: #{tpu_custom_call.1}
  #allocation0 [shape = 'u32[]', space=smem, size = 0x4, offset = 0x4, fixed_abs, tag = 'smem constant byte address 0x4 - core index']
  #allocation1 [shape = 'u32[144,128]{1,0:T(1,128)}', space=vmem, size = 0x12000, scoped, tag = 'internal scratch']
  #allocation2 [shape = 'f32[16,32]{1,0:T(8,128)}', space=vmem, size = 0x2000, scoped, tag = 'scratch operand']
  %s0 = inlined_call_operand.hbm [shape: f32[4,8,32], index: 0, kind: input, shape index: {}]
  %s1 = inlined_call_operand.hbm [shape: f32[4,8,32], index: 1, kind: input, shape index: {}]
  %s2 = inlined_call_operand.hbm [shape: f32[32,32], index: 2, kind: input, shape index: {}]
  %s3 = inlined_call_operand.vmem [shape: f32[1,32], index: 3, kind: input, shape index: {}]
  %s4 = inlined_call_operand.hbm [shape: f32[32,32], index: 4, kind: input, shape index: {}]
  %s5 = inlined_call_operand.vmem [shape: f32[1,32], index: 5, kind: input, shape index: {}]
  %s6 = inlined_call_operand.hbm [shape: f32[32,32], index: 6, kind: input, shape index: {}]
  %s7 = inlined_call_operand.vmem [shape: f32[1,32], index: 7, kind: input, shape index: {}]
  %s8 = inlined_call_operand.hbm [shape: f32[32,32], index: 8, kind: input, shape index: {}]
  %s9 = inlined_call_operand.vmem [shape: f32[1,32], index: 9, kind: input, shape index: {}]
  %s10 = inlined_call_operand.hbm [shape: f32[4,8,32], index: 10, kind: output, shape index: {}]
  %s11 = sld [smem:[#allocation0]]
  $region97: #{tpu_custom_call.1} parent=0
    _
  %s13 = ssub.s32 1, %s11
  %s14 = scalar_select 0, %s13, %s11
  $region1: #{tpu_custom_call.1} parent=0
    #allocation3 [shape = 'u8[16384]{0}', space=vmem, size = 0x4000, scoped, tag = 'input window, operand 0']
    #allocation4 [shape = 's32[2]{0}', space=sflag, size = 0x8, scoped, tag = 'scoped memory for tpu_custom_call.1']
    #allocation5 [shape = 's32[2]{0}', space=sflag, size = 0x8, scoped, tag = 'scoped memory for tpu_custom_call.1']
    #allocation6 [shape = 'u8[16384]{0}', space=vmem, size = 0x4000, scoped, tag = 'input window, operand 1']
    #allocation7 [shape = 's32[2]{0}', space=sflag, size = 0x8, scoped, tag = 'scoped memory for tpu_custom_call.1']
    #allocation8 [shape = 'u8[16384]{0}', space=vmem, size = 0x4000, scoped, tag = 'input window, operand 2, single buffered']
    #allocation9 [shape = 'u8[16384]{0}', space=vmem, size = 0x4000, scoped, tag = 'input window, operand 4, single buffered']
    #allocation10 [shape = 's32[1]{0}', space=sflag, size = 0x4, scoped, tag = 'scoped memory for tpu_custom_call.1']
    #allocation11 [shape = 'u8[16384]{0}', space=vmem, size = 0x4000, scoped, tag = 'input window, operand 6, single buffered']
    #allocation12 [shape = 'u8[16384]{0}', space=vmem, size = 0x4000, scoped, tag = 'input window, operand 8, single buffered']
    #allocation13 [shape = 's32[1]{0}', space=sflag, size = 0x4, scoped, tag = 'scoped memory for tpu_custom_call.1']
    #allocation14 [shape = 'u8[16384]{0}', space=vmem, size = 0x4000, scoped, tag = 'output window, operand 0']
    %15 = vsyncpa [#allocation4], 0
    %s16 = scalar_lea.sflag [#allocation4], 1
    %17 = vsyncpa %s16, 0
    %18 = vsyncpa [#allocation7], 0
    %s19 = scalar_lea.sflag [#allocation7], 1
    %20 = vsyncpa %s19, 0
    %21 = vsyncpa [#allocation10], 0
    %22 = vsyncpa [#allocation13], 0
    %23 = vsyncpa [#allocation5], 0
    %s24 = scalar_lea.sflag [#allocation5], 1
    %25 = vsyncpa %s24, 0
    loop: start=0, step=1, limit=4
    $region2: #{tpu_custom_call.1} parent=1 // loop_pre_header
      _
    $region3: #{tpu_custom_call.1} parent=1 // loop_header
      %s27 = sphi 0, %s31
      %p28 = scmp.ge.s32.totalorder %s27, 4
      %s37 = sphi 0, %s39
      %s40 = sphi 0, %s37
      %s41 = sphi 0, %s40
      %s57 = sphi 0, %s41
      %s63 = sphi 0, %s65
      %s66 = sphi 0, %s63
      %s67 = sphi 0, %s66
      %s83 = sphi 0, %s67
      %s87 = sphi 0, %s87
      %s89 = sphi 0, %s87
      %s90 = sphi 0, %s89
      %s104 = sphi 0, %s90
      %s108 = sphi 0, %s108
      %s110 = sphi 0, %s108
      %s111 = sphi 0, %s110
      %s125 = sphi 0, %s111
      %s129 = sphi 0, %s129
      %s131 = sphi 0, %s129
      %s132 = sphi 0, %s131
      %s146 = sphi 0, %s132
      %s150 = sphi 0, %s150
      %s152 = sphi 0, %s150
      %s153 = sphi 0, %s152
      %s167 = sphi 0, %s153
      %s171 = sphi 0, %s171
      %s173 = sphi 0, %s171
      %s174 = sphi 0, %s173
      %s188 = sphi 0, %s174
      %s192 = sphi 0, %s192
      %s194 = sphi 0, %s192
      %s195 = sphi 0, %s194
      %s209 = sphi 0, %s195
      %s213 = sphi 0, %s213
      %s215 = sphi 0, %s213
      %s216 = sphi 0, %s215
      %s230 = sphi 0, %s216
      %s234 = sphi 0, %s234
      %s236 = sphi 0, %s234
      %s237 = sphi 0, %s236
      %s251 = sphi 0, %s237
      %s257 = sphi 0, %s259
      %s260 = sphi 0, %s257
      %s261 = sphi 0, %s260
      %s277 = sphi 0, %s261
    $region4: #{tpu_custom_call.1} parent=1 // loop_header_branch
      %30 = sbr.rel (%p28) target = $region8
    $region5: #{tpu_custom_call.1} parent=1 // loop_body
      %s32 = ssub.s32 %s27, 1
      %s33 = ssub.s32 %s27, 2
      %s34 = sadd.s32 %s27, 1
      %s35 = ssub.s32 %s27, %s34
      %p36 = scmp.eq.s32.totalorder %s35, 0
      %s38 = sadd.s32 %s37, 1
      %s39 = scalar_select %p36, %s37, %s38
      %p42 = pneg %p36
      %p43 = scmp.eq.s32.totalorder %s27, 1
      %p44 = por %p42, %p43
      %p45 = scmp.ne.s32.totalorder %s37, %s40
      %p46 = scmp.eq.s32.totalorder %s27, 0
      %p47 = por %p45, %p46
      %p48 = scmp.ne.s32.totalorder %s37, %s40
      %p49 = scmp.eq.s32.totalorder %s32, 1
      %p50 = por %p48, %p49
      %p51 = scmp.ne.s32.totalorder %s40, %s41
      %p52 = scmp.eq.s32.totalorder %s32, 0
      %p53 = por %p51, %p52
      %p54 = scmp.ne.s32.totalorder %s40, %s41
      %p55 = scmp.eq.s32.totalorder %s33, 1
      %p56 = por %p54, %p55
      %p58 = scmp.ne.s32.totalorder %s41, %s57
      %p59 = scmp.eq.s32.totalorder %s33, 0
      %p60 = por %p58, %p59
      %s61 = ssub.s32 %s27, %s34
      %p62 = scmp.eq.s32.totalorder %s61, 0
      %s64 = sadd.s32 %s63, 1
      %s65 = scalar_select %p62, %s63, %s64
      %p68 = pneg %p62
      %p69 = scmp.eq.s32.totalorder %s27, 1
      %p70 = por %p68, %p69
      %p71 = scmp.ne.s32.totalorder %s63, %s66
      %p72 = scmp.eq.s32.totalorder %s27, 0
      %p73 = por %p71, %p72
      %p74 = scmp.ne.s32.totalorder %s63, %s66
      %p75 = scmp.eq.s32.totalorder %s32, 1
      %p76 = por %p74, %p75
      %p77 = scmp.ne.s32.totalorder %s66, %s67
      %p78 = scmp.eq.s32.totalorder %s32, 0
      %p79 = por %p77, %p78
      %p80 = scmp.ne.s32.totalorder %s66, %s67
      %p81 = scmp.eq.s32.totalorder %s33, 1
      %p82 = por %p80, %p81
      %p84 = scmp.ne.s32.totalorder %s67, %s83
      %p85 = scmp.eq.s32.totalorder %s33, 0
      %p86 = por %p84, %p85
      %s88 = sadd.s32 %s87, 1
      %p91 = scmp.eq.s32.totalorder %s27, 1
      %p92 = scmp.ne.s32.totalorder %s87, %s89
      %p93 = scmp.eq.s32.totalorder %s27, 0
      %p94 = por %p92, %p93
      %p95 = scmp.ne.s32.totalorder %s87, %s89
      %p96 = scmp.eq.s32.totalorder %s32, 1
      %p97 = por %p95, %p96
      %p98 = scmp.ne.s32.totalorder %s89, %s90
      %p99 = scmp.eq.s32.totalorder %s32, 0
      %p100 = por %p98, %p99
      %p101 = scmp.ne.s32.totalorder %s89, %s90
      %p102 = scmp.eq.s32.totalorder %s33, 1
      %p103 = por %p101, %p102
      %p105 = scmp.ne.s32.totalorder %s90, %s104
      %p106 = scmp.eq.s32.totalorder %s33, 0
      %p107 = por %p105, %p106
      %s109 = sadd.s32 %s108, 1
      %p112 = scmp.eq.s32.totalorder %s27, 1
      %p113 = scmp.ne.s32.totalorder %s108, %s110
      %p114 = scmp.eq.s32.totalorder %s27, 0
      %p115 = por %p113, %p114
      %p116 = scmp.ne.s32.totalorder %s108, %s110
      %p117 = scmp.eq.s32.totalorder %s32, 1
      %p118 = por %p116, %p117
      %p119 = scmp.ne.s32.totalorder %s110, %s111
      %p120 = scmp.eq.s32.totalorder %s32, 0
      %p121 = por %p119, %p120
      %p122 = scmp.ne.s32.totalorder %s110, %s111
      %p123 = scmp.eq.s32.totalorder %s33, 1
      %p124 = por %p122, %p123
      %p126 = scmp.ne.s32.totalorder %s111, %s125
      %p127 = scmp.eq.s32.totalorder %s33, 0
      %p128 = por %p126, %p127
      %s130 = sadd.s32 %s129, 1
      %p133 = scmp.eq.s32.totalorder %s27, 1
      %p134 = scmp.ne.s32.totalorder %s129, %s131
      %p135 = scmp.eq.s32.totalorder %s27, 0
      %p136 = por %p134, %p135
      %p137 = scmp.ne.s32.totalorder %s129, %s131
      %p138 = scmp.eq.s32.totalorder %s32, 1
      %p139 = por %p137, %p138
      %p140 = scmp.ne.s32.totalorder %s131, %s132
      %p141 = scmp.eq.s32.totalorder %s32, 0
      %p142 = por %p140, %p141
      %p143 = scmp.ne.s32.totalorder %s131, %s132
      %p144 = scmp.eq.s32.totalorder %s33, 1
      %p145 = por %p143, %p144
      %p147 = scmp.ne.s32.totalorder %s132, %s146
      %p148 = scmp.eq.s32.totalorder %s33, 0
      %p149 = por %p147, %p148
      %s151 = sadd.s32 %s150, 1
      %p154 = scmp.eq.s32.totalorder %s27, 1
      %p155 = scmp.ne.s32.totalorder %s150, %s152
      %p156 = scmp.eq.s32.totalorder %s27, 0
      %p157 = por %p155, %p156
      %p158 = scmp.ne.s32.totalorder %s150, %s152
      %p159 = scmp.eq.s32.totalorder %s32, 1
      %p160 = por %p158, %p159
      %p161 = scmp.ne.s32.totalorder %s152, %s153
      %p162 = scmp.eq.s32.totalorder %s32, 0
      %p163 = por %p161, %p162
      %p164 = scmp.ne.s32.totalorder %s152, %s153
      %p165 = scmp.eq.s32.totalorder %s33, 1
      %p166 = por %p164, %p165
      %p168 = scmp.ne.s32.totalorder %s153, %s167
      %p169 = scmp.eq.s32.totalorder %s33, 0
      %p170 = por %p168, %p169
      %s172 = sadd.s32 %s171, 1
      %p175 = scmp.eq.s32.totalorder %s27, 1
      %p176 = scmp.ne.s32.totalorder %s171, %s173
      %p177 = scmp.eq.s32.totalorder %s27, 0
      %p178 = por %p176, %p177
      %p179 = scmp.ne.s32.totalorder %s171, %s173
      %p180 = scmp.eq.s32.totalorder %s32, 1
      %p181 = por %p179, %p180
      %p182 = scmp.ne.s32.totalorder %s173, %s174
      %p183 = scmp.eq.s32.totalorder %s32, 0
      %p184 = por %p182, %p183
      %p185 = scmp.ne.s32.totalorder %s173, %s174
      %p186 = scmp.eq.s32.totalorder %s33, 1
      %p187 = por %p185, %p186
      %p189 = scmp.ne.s32.totalorder %s174, %s188
      %p190 = scmp.eq.s32.totalorder %s33, 0
      %p191 = por %p189, %p190
      %s193 = sadd.s32 %s192, 1
      %p196 = scmp.eq.s32.totalorder %s27, 1
      %p197 = scmp.ne.s32.totalorder %s192, %s194
      %p198 = scmp.eq.s32.totalorder %s27, 0
      %p199 = por %p197, %p198
      %p200 = scmp.ne.s32.totalorder %s192, %s194
      %p201 = scmp.eq.s32.totalorder %s32, 1
      %p202 = por %p200, %p201
      %p203 = scmp.ne.s32.totalorder %s194, %s195
      %p204 = scmp.eq.s32.totalorder %s32, 0
      %p205 = por %p203, %p204
      %p206 = scmp.ne.s32.totalorder %s194, %s195
      %p207 = scmp.eq.s32.totalorder %s33, 1
      %p208 = por %p206, %p207
      %p210 = scmp.ne.s32.totalorder %s195, %s209
      %p211 = scmp.eq.s32.totalorder %s33, 0
      %p212 = por %p210, %p211
      %s214 = sadd.s32 %s213, 1
      %p217 = scmp.eq.s32.totalorder %s27, 1
      %p218 = scmp.ne.s32.totalorder %s213, %s215
      %p219 = scmp.eq.s32.totalorder %s27, 0
      %p220 = por %p218, %p219
      %p221 = scmp.ne.s32.totalorder %s213, %s215
      %p222 = scmp.eq.s32.totalorder %s32, 1
      %p223 = por %p221, %p222
      %p224 = scmp.ne.s32.totalorder %s215, %s216
      %p225 = scmp.eq.s32.totalorder %s32, 0
      %p226 = por %p224, %p225
      %p227 = scmp.ne.s32.totalorder %s215, %s216
      %p228 = scmp.eq.s32.totalorder %s33, 1
      %p229 = por %p227, %p228
      %p231 = scmp.ne.s32.totalorder %s216, %s230
      %p232 = scmp.eq.s32.totalorder %s33, 0
      %p233 = por %p231, %p232
      %s235 = sadd.s32 %s234, 1
      %p238 = scmp.eq.s32.totalorder %s27, 1
      %p239 = scmp.ne.s32.totalorder %s234, %s236
      %p240 = scmp.eq.s32.totalorder %s27, 0
      %p241 = por %p239, %p240
      %p242 = scmp.ne.s32.totalorder %s234, %s236
      %p243 = scmp.eq.s32.totalorder %s32, 1
      %p244 = por %p242, %p243
      %p245 = scmp.ne.s32.totalorder %s236, %s237
      %p246 = scmp.eq.s32.totalorder %s32, 0
      %p247 = por %p245, %p246
      %p248 = scmp.ne.s32.totalorder %s236, %s237
      %p249 = scmp.eq.s32.totalorder %s33, 1
      %p250 = por %p248, %p249
      %p252 = scmp.ne.s32.totalorder %s237, %s251
      %p253 = scmp.eq.s32.totalorder %s33, 0
      %p254 = por %p252, %p253
      %s255 = ssub.s32 %s27, %s34
      %p256 = scmp.eq.s32.totalorder %s255, 0
      %s258 = sadd.s32 %s257, 1
      %s259 = scalar_select %p256, %s257, %s258
      %p262 = pneg %p256
      %p263 = scmp.eq.s32.totalorder %s27, 1
      %p264 = por %p262, %p263
      %p265 = scmp.ne.s32.totalorder %s257, %s260
      %p266 = scmp.eq.s32.totalorder %s27, 0
      %p267 = por %p265, %p266
      %p268 = scmp.ne.s32.totalorder %s257, %s260
      %p269 = scmp.eq.s32.totalorder %s32, 1
      %p270 = por %p268, %p269
      %p271 = scmp.ne.s32.totalorder %s260, %s261
      %p272 = scmp.eq.s32.totalorder %s32, 0
      %p273 = por %p271, %p272
      %p274 = scmp.ne.s32.totalorder %s260, %s261
      %p275 = scmp.eq.s32.totalorder %s33, 1
      %p276 = por %p274, %p275
      %p278 = scmp.ne.s32.totalorder %s261, %s277
      %p279 = scmp.eq.s32.totalorder %s33, 0
      %p280 = por %p278, %p279
      %p281 = scmp.le.s32.totalorder 1, %s27
      %p282 = scmp.lt.s32.totalorder %s27, 3
      %p283 = pnand %p281, %p282
      %p284 = pneg %p283
      // Predicated region
      $region9: #{tpu_custom_call.1} parent=5 // pred_check
        _
      $region10: #{tpu_custom_call.1} parent=5 // pred_check_branch
        %286 = sbr.rel (%p283) target = $region12
      $region11: #{tpu_custom_call.1} parent=5 // pred_region
        %s287 = ssub.s32 %s27, 1
        // Predicated region
        $region13: #{tpu_custom_call.1} parent=11 // pred_check
          %p288 = pneg %p100
        $region14: #{tpu_custom_call.1} parent=11 // pred_check_branch
          %290 = sbr.rel (%p288) target = $region16
        $region15: #{tpu_custom_call.1} parent=11 // pred_region
          %s292 = ssub.s32 512, 512
          %293 = vsyncadd [#allocation7], %s292
          %s294 = sshll.u32 [#allocation8], 4
          %s295 = int_to_ptr.vmem [resolvable:$true] %s294
          %300 = dma.hbm_to_vmem [thread:$0]  %s2, 512, %s295, [#allocation7], 128, 128, 8
        $region16: #{tpu_custom_call.1} parent=11 // pred_fallthru
          _
        // Predicated region
        $region17: #{tpu_custom_call.1} parent=11 // pred_check
          %p301 = pneg %p121
        $region18: #{tpu_custom_call.1} parent=11 // pred_check_branch
          %303 = sbr.rel (%p301) target = $region20
        $region19: #{tpu_custom_call.1} parent=11 // pred_region
          _
        $region20: #{tpu_custom_call.1} parent=11 // pred_fallthru
          _
        // Predicated region
        $region21: #{tpu_custom_call.1} parent=11 // pred_check
          %p304 = pneg %p142
        $region22: #{tpu_custom_call.1} parent=11 // pred_check_branch
          %306 = sbr.rel (%p304) target = $region24
        $region23: #{tpu_custom_call.1} parent=11 // pred_region
          %s308 = ssub.s32 512, 512
          %309 = vsyncadd [#allocation10], %s308
          %s310 = sshll.u32 [#allocation9], 4
          %s311 = int_to_ptr.vmem [resolvable:$true] %s310
          %316 = dma.hbm_to_vmem [thread:$0]  %s4, 512, %s311, [#allocation10], 128, 128, 8
        $region24: #{tpu_custom_call.1} parent=11 // pred_fallthru
          _
        // Predicated region
        $region25: #{tpu_custom_call.1} parent=11 // pred_check
          %p317 = pneg %p163
        $region26: #{tpu_custom_call.1} parent=11 // pred_check_branch
          %319 = sbr.rel (%p317) target = $region28
        $region27: #{tpu_custom_call.1} parent=11 // pred_region
          _
        $region28: #{tpu_custom_call.1} parent=11 // pred_fallthru
          _
        // Predicated region
        $region29: #{tpu_custom_call.1} parent=11 // pred_check
          %p320 = pneg %p184
        $region30: #{tpu_custom_call.1} parent=11 // pred_check_branch
          %322 = sbr.rel (%p320) target = $region32
        $region31: #{tpu_custom_call.1} parent=11 // pred_region
          %s324 = ssub.s32 512, 512
          %325 = vsyncadd [#allocation10], %s324
          %s326 = sshll.u32 [#allocation11], 4
          %s327 = int_to_ptr.vmem [resolvable:$true] %s326
          %332 = dma.hbm_to_vmem [thread:$0]  %s6, 512, %s327, [#allocation10], 128, 128, 8
        $region32: #{tpu_custom_call.1} parent=11 // pred_fallthru
          _
        // Predicated region
        $region33: #{tpu_custom_call.1} parent=11 // pred_check
          %p333 = pneg %p205
        $region34: #{tpu_custom_call.1} parent=11 // pred_check_branch
          %335 = sbr.rel (%p333) target = $region36
        $region35: #{tpu_custom_call.1} parent=11 // pred_region
          _
        $region36: #{tpu_custom_call.1} parent=11 // pred_fallthru
          _
        // Predicated region
        $region37: #{tpu_custom_call.1} parent=11 // pred_check
          %p336 = pneg %p226
        $region38: #{tpu_custom_call.1} parent=11 // pred_check_branch
          %338 = sbr.rel (%p336) target = $region40
        $region39: #{tpu_custom_call.1} parent=11 // pred_region
          %s340 = ssub.s32 512, 512
          %341 = vsyncadd [#allocation13], %s340
          %s342 = sshll.u32 [#allocation12], 4
          %s343 = int_to_ptr.vmem [resolvable:$true] %s342
          %348 = dma.hbm_to_vmem [thread:$0]  %s8, 512, %s343, [#allocation13], 128, 128, 8
        $region40: #{tpu_custom_call.1} parent=11 // pred_fallthru
          _
        // Predicated region
        $region41: #{tpu_custom_call.1} parent=11 // pred_check
          %p349 = pneg %p247
        $region42: #{tpu_custom_call.1} parent=11 // pred_check_branch
          %351 = sbr.rel (%p349) target = $region44
        $region43: #{tpu_custom_call.1} parent=11 // pred_region
          _
        $region44: #{tpu_custom_call.1} parent=11 // pred_fallthru
          _
      $region12: #{tpu_custom_call.1} parent=5 // pred_fallthru
        _
      %p352 = scmp.lt.s32.totalorder %s27, 2
      // Predicated region
      $region45: #{tpu_custom_call.1} parent=5 // pred_check
        %p353 = pneg %p352
      $region46: #{tpu_custom_call.1} parent=5 // pred_check_branch
        %355 = sbr.rel (%p353) target = $region48
      $region47: #{tpu_custom_call.1} parent=5 // pred_region
        // Predicated region
        $region49: #{tpu_custom_call.1} parent=47 // pred_check
          %p356 = pneg %p47
        $region50: #{tpu_custom_call.1} parent=47 // pred_check_branch
          %358 = sbr.rel (%p356) target = $region52
        $region51: #{tpu_custom_call.1} parent=47 // pred_region
          %s359 = sand.u32 %s37, 1
          %s360 = scalar_lea.sflag [#allocation4], %s359
          %s361 = sand.u32 %s37, 1
          %s362 = smul.addr %s361, 16
          %s363 = scalar_lea.vmem [#allocation3], %s362
          %s364 = smul.u32 2, %s27
          %s366 = ssub.s32 256, 256
          %367 = vsyncadd %s360, %s366
          %s368 = smul.addr %s364, 128
          %s369 = scalar_lea.hbm %s0, %s368
          %s370 = sshll.u32 %s363, 4
          %s371 = int_to_ptr.vmem [resolvable:$true] %s370
          %376 = dma.hbm_to_vmem [thread:$0]  %s369, 256, %s371, %s360, 128, 128, 8
        $region52: #{tpu_custom_call.1} parent=47 // pred_fallthru
          _
        // Predicated region
        $region53: #{tpu_custom_call.1} parent=47 // pred_check
          %p377 = pneg %p73
        $region54: #{tpu_custom_call.1} parent=47 // pred_check_branch
          %379 = sbr.rel (%p377) target = $region56
        $region55: #{tpu_custom_call.1} parent=47 // pred_region
          %s380 = sand.u32 %s27, 1
          %s381 = scalar_lea.sflag [#allocation7], %s380
          %s382 = sand.u32 %s63, 1
          %s383 = smul.addr %s382, 16
          %s384 = scalar_lea.vmem [#allocation6], %s383
          %s385 = smul.u32 2, %s27
          %s387 = ssub.s32 256, 256
          %388 = vsyncadd %s381, %s387
          %s389 = smul.addr %s385, 128
          %s390 = scalar_lea.hbm %s1, %s389
          %s391 = sshll.u32 %s384, 4
          %s392 = int_to_ptr.vmem [resolvable:$true] %s391
          %397 = dma.hbm_to_vmem [thread:$0]  %s390, 256, %s392, %s381, 128, 128, 8
        $region56: #{tpu_custom_call.1} parent=47 // pred_fallthru
          _
      $region48: #{tpu_custom_call.1} parent=5 // pred_fallthru
        _
      %p398 = scmp.le.s32.totalorder 1, %s27
      %p399 = scmp.lt.s32.totalorder %s27, 3
      %p400 = pnand %p398, %p399
      %p401 = pneg %p400
      // Predicated region
      $region57: #{tpu_custom_call.1} parent=5 // pred_check
        _
      $region58: #{tpu_custom_call.1} parent=5 // pred_check_branch
        %403 = sbr.rel (%p400) target = $region60
      $region59: #{tpu_custom_call.1} parent=5 // pred_region
        %s404 = ssub.s32 %s27, 1
        %s405 = sand.u32 %s40, 1
        %s406 = scalar_lea.sflag [#allocation4], %s405
        %s407 = sand.u32 %s40, 1
        %s408 = smul.addr %s407, 16
        %s409 = scalar_lea.vmem [#allocation3], %s408
        // Predicated region
        $region61: #{tpu_custom_call.1} parent=59 // pred_check
          %p410 = pneg %p53
        $region62: #{tpu_custom_call.1} parent=59 // pred_check_branch
          %412 = sbr.rel (%p410) target = $region64
        $region63: #{tpu_custom_call.1} parent=59 // pred_region
          %413 = dma.done %s406, 256
        $region64: #{tpu_custom_call.1} parent=59 // pred_fallthru
          _
        %s414 = sand.u32 %s32, 1
        %s415 = scalar_lea.sflag [#allocation7], %s414
        %s416 = sand.u32 %s66, 1
        %s417 = smul.addr %s416, 16
        %s418 = scalar_lea.vmem [#allocation6], %s417
        // Predicated region
        $region65: #{tpu_custom_call.1} parent=59 // pred_check
          %p419 = pneg %p79
        $region66: #{tpu_custom_call.1} parent=59 // pred_check_branch
          %421 = sbr.rel (%p419) target = $region68
        $region67: #{tpu_custom_call.1} parent=59 // pred_region
          %422 = dma.done %s415, 256
        $region68: #{tpu_custom_call.1} parent=59 // pred_fallthru
          _
        // Predicated region
        $region69: #{tpu_custom_call.1} parent=59 // pred_check
          %p423 = pneg %p100
        $region70: #{tpu_custom_call.1} parent=59 // pred_check_branch
          %425 = sbr.rel (%p423) target = $region72
        $region71: #{tpu_custom_call.1} parent=59 // pred_region
          %426 = dma.done [#allocation7], 512
        $region72: #{tpu_custom_call.1} parent=59 // pred_fallthru
          _
        // Predicated region
        $region73: #{tpu_custom_call.1} parent=59 // pred_check
          %p427 = pneg %p142
        $region74: #{tpu_custom_call.1} parent=59 // pred_check_branch
          %429 = sbr.rel (%p427) target = $region76
        $region75: #{tpu_custom_call.1} parent=59 // pred_region
          %430 = dma.done [#allocation10], 512
        $region76: #{tpu_custom_call.1} parent=59 // pred_fallthru
          _
        // Predicated region
        $region77: #{tpu_custom_call.1} parent=59 // pred_check
          %p431 = pneg %p184
        $region78: #{tpu_custom_call.1} parent=59 // pred_check_branch
          %433 = sbr.rel (%p431) target = $region80
        $region79: #{tpu_custom_call.1} parent=59 // pred_region
          %434 = dma.done [#allocation10], 512
        $region80: #{tpu_custom_call.1} parent=59 // pred_fallthru
          _
        // Predicated region
        $region81: #{tpu_custom_call.1} parent=59 // pred_check
          %p435 = pneg %p226
        $region82: #{tpu_custom_call.1} parent=59 // pred_check_branch
          %437 = sbr.rel (%p435) target = $region84
        $region83: #{tpu_custom_call.1} parent=59 // pred_region
          %438 = dma.done [#allocation13], 512
        $region84: #{tpu_custom_call.1} parent=59 // pred_fallthru
          _
        %s439 = sand.u32 %s40, 1
        %s440 = scalar_lea.sflag [#allocation4], %s439
        %s441 = sand.u32 %s40, 1
        %s442 = smul.addr %s441, 16
        %s443 = scalar_lea.vmem [#allocation3], %s442
        %p444 = pneg %p53
        %p445 = pneg %p50
        %s446 = sand.u32 %s32, 1
        %s447 = scalar_lea.sflag [#allocation7], %s446
        %s448 = sand.u32 %s66, 1
        %s449 = smul.addr %s448, 16
        %s450 = scalar_lea.vmem [#allocation6], %s449
        %p451 = pneg %p79
        %p452 = pneg %p76
        %p453 = pneg %p100
        %p454 = pneg %p97
        %p455 = pneg %p121
        %p456 = pneg %p118
        %p457 = pneg %p142
        %p458 = pneg %p139
        %p459 = pneg %p163
        %p460 = pneg %p160
        %p461 = pneg %p184
        %p462 = pneg %p181
        %p463 = pneg %p205
        %p464 = pneg %p202
        %p465 = pneg %p226
        %p466 = pneg %p223
        %p467 = pneg %p247
        %p468 = pneg %p244
        %p469 = pneg %p273
        %p470 = pneg %p270
        %s471 = sand.u32 %s260, 1
        %s472 = scalar_lea.sflag [#allocation5], %s471
        %s473 = sand.u32 %s260, 1
        %s474 = smul.addr %s473, 16
        %s475 = scalar_lea.vmem [#allocation14], %s474
        %s476 = smul.u32 2, %s32
        %s477 = smul.u32 2, %s32
        %s478 = smul.u32 2, %s32
        %v479 = vld [vmem:[%s409] sm:$0xff]
        %v480 = vld [vmem:[%s409 + $0x8] sm:$0xff]
        %v481 = vld [vmem:[%s418] sm:$0xff]
        %v482 = vld [vmem:[%s418 + $0x8] sm:$0xff]
        %v483 = vld [vmem:[#allocation8] sm:$0xff]
        %v484 = vld [vmem:[#allocation8 + $0x8] sm:$0xff]
        %v485 = vld [vmem:[#allocation8 + $0x10] sm:$0xff]
        %v486 = vld [vmem:[#allocation8 + $0x18] sm:$0xff]
        %v487 = vld [vmem:[%s3] sm:$0x1]
        %v489 = vlaneseq
        %v490 = vshrl.u32 %v489, 7
        %v491 = vsub.s32 0, %v490
        %v492 = vrot.slane %v487, %v491
        %vm494 = vcmask 261120
        %v496 = vsel %vm494, %v479, 0
        %v499 = vsel %vm494, %v480, 0
        %501 = vmatprep.subr.mxu0 0.0
        %502 = vmatpush1.msra.mxu0 %v483
        %503 = vmatprep.subr.mxu0 0.0
        %504 = vmatpush1.msra.mxu0 %v484
        %505 = vmatprep.subr.mxu0 0.0
        %506 = vmatpush1.msra.mxu0 %v485
        %507 = vmatprep.subr.mxu0 0.0
        %508 = vmatpush1.msra.mxu0 %v486
        %509 = vmatprep.subr.mxu0 0.0
        %510 = vmatpush1.msra.mxu0 0.0
        %511 = vmatprep.subr.mxu0 0.0
        %512 = vmatpush1.msra.mxu0 0.0
        %513 = vmatprep.subr.mxu0 0.0
        %514 = vmatpush1.msra.mxu0 0.0
        %515 = vmatprep.subr.mxu0 0.0
        %516 = vmatpush1.msra.mxu0 0.0
        %517 = vmatprep.subr.mxu0 0.0
        %518 = vmatpush1.msra.mxu0 0.0
        %519 = vmatprep.subr.mxu0 0.0
        %520 = vmatpush1.msra.mxu0 0.0
        %521 = vmatprep.subr.mxu0 0.0
        %522 = vmatpush1.msra.mxu0 0.0
        %523 = vmatprep.subr.mxu0 0.0
        %524 = vmatpush1.msra.mxu0 0.0
        %525 = vmatprep.subr.mxu0 0.0
        %526 = vmatpush1.msra.mxu0 0.0
        %527 = vmatprep.subr.mxu0 0.0
        %528 = vmatpush1.msra.mxu0 0.0
        %529 = vmatprep.subr.mxu0 0.0
        %530 = vmatpush1.msra.mxu0 0.0
        %531 = vmatprep.subr.mxu0 0.0
        %532 = vmatpush1.msra.mxu0 0.0
        %533 = vmatprep.subr.mxu0 0.0
        %534 = vmatpush1.msra.mxu0 0.0
        %535 = vmatprep.subr.mxu0 0.0
        %536 = vmatpush1.msra.mxu0 0.0
        %537 = vmatprep.subr.mxu0 0.0
        %538 = vmatpush1.msra.mxu0 0.0
        %539 = vmatprep.subr.mxu0 0.0
        %540 = vmatpush1.msra.mxu0 0.0
        %541 = vmatprep.subr.mxu0 0.0
        %542 = vmatpush1.msra.mxu0 0.0
        %543 = vmatprep.subr.mxu0 0.0
        %544 = vmatpush1.msra.mxu0 0.0
        %545 = vmatprep.subr.mxu0 0.0
        %546 = vmatpush1.msra.mxu0 0.0
        %547 = vmatprep.subr.mxu0 0.0
        %548 = vmatpush1.msra.mxu0 0.0
        %549 = vmatprep.subr.mxu0 0.0
        %550 = vmatpush1.msra.mxu0 0.0
        %551 = vmatprep.subr.mxu0 0.0
        %552 = vmatpush1.msra.mxu0 0.0
        %553 = vmatprep.subr.mxu0 0.0
        %554 = vmatpush1.msra.mxu0 0.0
        %555 = vmatprep.subr.mxu0 0.0
        %556 = vmatpush1.msra.mxu0 0.0
        %557 = vmatprep.subr.mxu0 0.0
        %558 = vmatpush1.msra.mxu0 0.0
        %559 = vmatprep.subr.mxu0 0.0
        %560 = vmatpush1.msra.mxu0 0.0
        %561 = vmatprep.subr.mxu0 0.0
        %562 = vmatpush1.msra.mxu0 0.0
        %563 = vmatprep.subr.mxu0 0.0
        %564 = vmatpush1.msra.mxu0 0.0
        %565 = vmatprep.mubr.f32.mxu0 0.0
        %566 = vmatmul.mubr.f32.gmra.mrb[0].mxu0 %v496
        %v567 = vpop.f32.mrb[0].mxu0
        %v568 = vadd.f32 %v492, %v567
        %v569 = vpop.f32.mrb[0].mxu0
        %570 = vmatprep.mubr.f32.mxu0 0.0
        %571 = vmatmul.mubr.f32.gmra.mrb[0].mxu0 %v499
        %v572 = vpop.f32.mrb[0].mxu0
        %v573 = vadd.f32 %v492, %v572
        %v574 = vpop.f32.mrb[0].mxu0
        %575 = vdwg.mxu0
        %v576 = vmul.f32 %v568, 0.5
        %v577 = vmul.f32 %v573, 0.5
        %v578 = vld [vmem:[#allocation9] sm:$0xff]
        %v579 = vld [vmem:[#allocation9 + $0x8] sm:$0xff]
        %v580 = vld [vmem:[#allocation9 + $0x10] sm:$0xff]
        %v581 = vld [vmem:[#allocation9 + $0x18] sm:$0xff]
        %v582 = vld [vmem:[%s5] sm:$0x1]
        %v584 = vlaneseq
        %v585 = vshrl.u32 %v584, 7
        %v586 = vsub.s32 0, %v585
        %v587 = vrot.slane %v582, %v586
        %v590 = vsel %vm494, %v481, 0
        %v593 = vsel %vm494, %v482, 0
        %595 = vmatprep.subr.mxu0 0.0
        %596 = vmatpush1.msra.mxu0 %v578
        %597 = vmatprep.subr.mxu0 0.0
        %598 = vmatpush1.msra.mxu0 %v579
        %599 = vmatprep.subr.mxu0 0.0
        %600 = vmatpush1.msra.mxu0 %v580
        %601 = vmatprep.subr.mxu0 0.0
        %602 = vmatpush1.msra.mxu0 %v581
        %603 = vmatprep.subr.mxu0 0.0
        %604 = vmatpush1.msra.mxu0 0.0
        %605 = vmatprep.subr.mxu0 0.0
        %606 = vmatpush1.msra.mxu0 0.0
        %607 = vmatprep.subr.mxu0 0.0
        %608 = vmatpush1.msra.mxu0 0.0
        %609 = vmatprep.subr.mxu0 0.0
        %610 = vmatpush1.msra.mxu0 0.0
        %611 = vmatprep.subr.mxu0 0.0
        %612 = vmatpush1.msra.mxu0 0.0
        %613 = vmatprep.subr.mxu0 0.0
        %614 = vmatpush1.msra.mxu0 0.0
        %615 = vmatprep.subr.mxu0 0.0
        %616 = vmatpush1.msra.mxu0 0.0
        %617 = vmatprep.subr.mxu0 0.0
        %618 = vmatpush1.msra.mxu0 0.0
        %619 = vmatprep.subr.mxu0 0.0
        %620 = vmatpush1.msra.mxu0 0.0
        %621 = vmatprep.subr.mxu0 0.0
        %622 = vmatpush1.msra.mxu0 0.0
        %623 = vmatprep.subr.mxu0 0.0
        %624 = vmatpush1.msra.mxu0 0.0
        %625 = vmatprep.subr.mxu0 0.0
        %626 = vmatpush1.msra.mxu0 0.0
        %627 = vmatprep.subr.mxu0 0.0
        %628 = vmatpush1.msra.mxu0 0.0
        %629 = vmatprep.subr.mxu0 0.0
        %630 = vmatpush1.msra.mxu0 0.0
        %631 = vmatprep.subr.mxu0 0.0
        %632 = vmatpush1.msra.mxu0 0.0
        %633 = vmatprep.subr.mxu0 0.0
        %634 = vmatpush1.msra.mxu0 0.0
        %635 = vmatprep.subr.mxu0 0.0
        %636 = vmatpush1.msra.mxu0 0.0
        %637 = vmatprep.subr.mxu0 0.0
        %638 = vmatpush1.msra.mxu0 0.0
        %639 = vmatprep.subr.mxu0 0.0
        %640 = vmatpush1.msra.mxu0 0.0
        %641 = vmatprep.subr.mxu0 0.0
        %642 = vmatpush1.msra.mxu0 0.0
        %643 = vmatprep.subr.mxu0 0.0
        %644 = vmatpush1.msra.mxu0 0.0
        %645 = vmatprep.subr.mxu0 0.0
        %646 = vmatpush1.msra.mxu0 0.0
        %647 = vmatprep.subr.mxu0 0.0
        %648 = vmatpush1.msra.mxu0 0.0
        %649 = vmatprep.subr.mxu0 0.0
        %650 = vmatpush1.msra.mxu0 0.0
        %651 = vmatprep.subr.mxu0 0.0
        %652 = vmatpush1.msra.mxu0 0.0
        %653 = vmatprep.subr.mxu0 0.0
        %654 = vmatpush1.msra.mxu0 0.0
        %655 = vmatprep.subr.mxu0 0.0
        %656 = vmatpush1.msra.mxu0 0.0
        %657 = vmatprep.subr.mxu0 0.0
        %658 = vmatpush1.msra.mxu0 0.0
        %659 = vmatprep.mubr.f32.mxu0 0.0
        %660 = vmatmul.mubr.f32.gmra.mrb[0].mxu0 %v590
        %v661 = vpop.f32.mrb[0].mxu0
        %v662 = vadd.f32 %v587, %v661
        %v663 = vpop.f32.mrb[0].mxu0
        %664 = vmatprep.mubr.f32.mxu0 0.0
        %665 = vmatmul.mubr.f32.gmra.mrb[0].mxu0 %v593
        %v666 = vpop.f32.mrb[0].mxu0
        %v667 = vadd.f32 %v587, %v666
        %v668 = vpop.f32.mrb[0].mxu0
        %669 = vdwg.mxu0
        %v670 = vld [vmem:[#allocation11] sm:$0xff]
        %v671 = vld [vmem:[#allocation11 + $0x8] sm:$0xff]
        %v672 = vld [vmem:[#allocation11 + $0x10] sm:$0xff]
        %v673 = vld [vmem:[#allocation11 + $0x18] sm:$0xff]
        %v674 = vld [vmem:[%s7] sm:$0x1]
        %v676 = vlaneseq
        %v677 = vshrl.u32 %v676, 7
        %v678 = vsub.s32 0, %v677
        %v679 = vrot.slane %v674, %v678
        %681 = vmatprep.subr.mxu0 0.0
        %682 = vmatpush1.msra.mxu0 %v670
        %683 = vmatprep.subr.mxu0 0.0
        %684 = vmatpush1.msra.mxu0 %v671
        %685 = vmatprep.subr.mxu0 0.0
        %686 = vmatpush1.msra.mxu0 %v672
        %687 = vmatprep.subr.mxu0 0.0
        %688 = vmatpush1.msra.mxu0 %v673
        %689 = vmatprep.subr.mxu0 0.0
        %690 = vmatpush1.msra.mxu0 0.0
        %691 = vmatprep.subr.mxu0 0.0
        %692 = vmatpush1.msra.mxu0 0.0
        %693 = vmatprep.subr.mxu0 0.0
        %694 = vmatpush1.msra.mxu0 0.0
        %695 = vmatprep.subr.mxu0 0.0
        %696 = vmatpush1.msra.mxu0 0.0
        %697 = vmatprep.subr.mxu0 0.0
        %698 = vmatpush1.msra.mxu0 0.0
        %699 = vmatprep.subr.mxu0 0.0
        %700 = vmatpush1.msra.mxu0 0.0
        %701 = vmatprep.subr.mxu0 0.0
        %702 = vmatpush1.msra.mxu0 0.0
        %703 = vmatprep.subr.mxu0 0.0
        %704 = vmatpush1.msra.mxu0 0.0
        %705 = vmatprep.subr.mxu0 0.0
        %706 = vmatpush1.msra.mxu0 0.0
        %707 = vmatprep.subr.mxu0 0.0
        %708 = vmatpush1.msra.mxu0 0.0
        %709 = vmatprep.subr.mxu0 0.0
        %710 = vmatpush1.msra.mxu0 0.0
        %711 = vmatprep.subr.mxu0 0.0
        %712 = vmatpush1.msra.mxu0 0.0
        %713 = vmatprep.subr.mxu0 0.0
        %714 = vmatpush1.msra.mxu0 0.0
        %715 = vmatprep.subr.mxu0 0.0
        %716 = vmatpush1.msra.mxu0 0.0
        %717 = vmatprep.subr.mxu0 0.0
        %718 = vmatpush1.msra.mxu0 0.0
        %719 = vmatprep.subr.mxu0 0.0
        %720 = vmatpush1.msra.mxu0 0.0
        %721 = vmatprep.subr.mxu0 0.0
        %722 = vmatpush1.msra.mxu0 0.0
        %723 = vmatprep.subr.mxu0 0.0
        %724 = vmatpush1.msra.mxu0 0.0
        %725 = vmatprep.subr.mxu0 0.0
        %726 = vmatpush1.msra.mxu0 0.0
        %727 = vmatprep.subr.mxu0 0.0
        %728 = vmatpush1.msra.mxu0 0.0
        %729 = vmatprep.subr.mxu0 0.0
        %730 = vmatpush1.msra.mxu0 0.0
        %731 = vmatprep.subr.mxu0 0.0
        %732 = vmatpush1.msra.mxu0 0.0
        %733 = vmatprep.subr.mxu0 0.0
        %734 = vmatpush1.msra.mxu0 0.0
        %735 = vmatprep.subr.mxu0 0.0
        %736 = vmatpush1.msra.mxu0 0.0
        %737 = vmatprep.subr.mxu0 0.0
        %738 = vmatpush1.msra.mxu0 0.0
        %739 = vmatprep.subr.mxu0 0.0
        %740 = vmatpush1.msra.mxu0 0.0
        %741 = vmatprep.subr.mxu0 0.0
        %742 = vmatpush1.msra.mxu0 0.0
        %743 = vmatprep.subr.mxu0 0.0
        %744 = vmatpush1.msra.mxu0 0.0
        %745 = vmatprep.mubr.f32.mxu0 0.0
        %746 = vmatmul.mubr.f32.gmra.mrb[0].mxu0 %v590
        %v747 = vpop.f32.mrb[0].mxu0
        %v748 = vadd.f32 %v679, %v747
        %v749 = vpop.f32.mrb[0].mxu0
        %750 = vmatprep.mubr.f32.mxu0 0.0
        %751 = vmatmul.mubr.f32.gmra.mrb[0].mxu0 %v593
        %v752 = vpop.f32.mrb[0].mxu0
        %v753 = vadd.f32 %v679, %v752
        %v754 = vpop.f32.mrb[0].mxu0
        %755 = vdwg.mxu0
        %vm756 = vcmask 31744
        %v758 = vsel %vm756, %v576, 0
        %v761 = vsel %vm756, %v662, 0
        %763 = vmatprep.subr.mxu0 0.0
        %764 = vmatpush1.xpose.msra.mxu0 %v761
        %765 = vmatprep.subr.mxu0 0.0
        %766 = vmatpush1.xpose.msra.mxu0 0.0
        %767 = vmatprep.subr.mxu0 0.0
        %768 = vmatpush1.xpose.msra.mxu0 0.0
        %769 = vmatprep.subr.mxu0 0.0
        %770 = vmatpush1.xpose.msra.mxu0 0.0
        %771 = vmatprep.subr.mxu0 0.0
        %772 = vmatpush1.xpose.msra.mxu0 0.0
        %773 = vmatprep.subr.mxu0 0.0
        %774 = vmatpush1.xpose.msra.mxu0 0.0
        %775 = vmatprep.subr.mxu0 0.0
        %776 = vmatpush1.xpose.msra.mxu0 0.0
        %777 = vmatprep.subr.mxu0 0.0
        %778 = vmatpush1.xpose.msra.mxu0 0.0
        %779 = vmatprep.subr.mxu0 0.0
        %780 = vmatpush1.xpose.msra.mxu0 0.0
        %781 = vmatprep.subr.mxu0 0.0
        %782 = vmatpush1.xpose.msra.mxu0 0.0
        %783 = vmatprep.subr.mxu0 0.0
        %784 = vmatpush1.xpose.msra.mxu0 0.0
        %785 = vmatprep.subr.mxu0 0.0
        %786 = vmatpush1.xpose.msra.mxu0 0.0
        %787 = vmatprep.subr.mxu0 0.0
        %788 = vmatpush1.xpose.msra.mxu0 0.0
        %789 = vmatprep.subr.mxu0 0.0
        %790 = vmatpush1.xpose.msra.mxu0 0.0
        %791 = vmatprep.subr.mxu0 0.0
        %792 = vmatpush1.xpose.msra.mxu0 0.0
        %793 = vmatprep.subr.mxu0 0.0
        %794 = vmatpush1.xpose.msra.mxu0 0.0
        %795 = vmatprep.subr.mxu0 0.0
        %796 = vmatpush1.xpose.msra.mxu0 0.0
        %797 = vmatprep.subr.mxu0 0.0
        %798 = vmatpush1.xpose.msra.mxu0 0.0
        %799 = vmatprep.subr.mxu0 0.0
        %800 = vmatpush1.xpose.msra.mxu0 0.0
        %801 = vmatprep.subr.mxu0 0.0
        %802 = vmatpush1.xpose.msra.mxu0 0.0
        %803 = vmatprep.subr.mxu0 0.0
        %804 = vmatpush1.xpose.msra.mxu0 0.0
        %805 = vmatprep.subr.mxu0 0.0
        %806 = vmatpush1.xpose.msra.mxu0 0.0
        %807 = vmatprep.subr.mxu0 0.0
        %808 = vmatpush1.xpose.msra.mxu0 0.0
        %809 = vmatprep.subr.mxu0 0.0
        %810 = vmatpush1.xpose.msra.mxu0 0.0
        %811 = vmatprep.subr.mxu0 0.0
        %812 = vmatpush1.xpose.msra.mxu0 0.0
        %813 = vmatprep.subr.mxu0 0.0
        %814 = vmatpush1.xpose.msra.mxu0 0.0
        %815 = vmatprep.subr.mxu0 0.0
        %816 = vmatpush1.xpose.msra.mxu0 0.0
        %817 = vmatprep.subr.mxu0 0.0
        %818 = vmatpush1.xpose.msra.mxu0 0.0
        %819 = vmatprep.subr.mxu0 0.0
        %820 = vmatpush1.xpose.msra.mxu0 0.0
        %821 = vmatprep.subr.mxu0 0.0
        %822 = vmatpush1.xpose.msra.mxu0 0.0
        %823 = vmatprep.subr.mxu0 0.0
        %824 = vmatpush1.xpose.msra.mxu0 0.0
        %825 = vmatprep.subr.mxu0 0.0
        %826 = vmatpush1.xpose.msra.mxu0 0.0
        %827 = vmatprep.mubr.f32.mxu0 0.0
        %828 = vmatmul.mubr.f32.gmra.mrb[0].mxu0 %v758
        %v829 = vpop.f32.mrb[0].mxu0
        %v830 = vadd.f32 0.0, %v829
        %v831 = vpop.f32.mrb[0].mxu0
        %832 = vdwg.mxu0
        %v834 = vsel %vm756, %v577, 0
        %v837 = vsel %vm756, %v667, 0
        %839 = vmatprep.subr.mxu0 0.0
        %840 = vmatpush1.xpose.msra.mxu0 %v837
        %841 = vmatprep.subr.mxu0 0.0
        %842 = vmatpush1.xpose.msra.mxu0 0.0
        %843 = vmatprep.subr.mxu0 0.0
        %844 = vmatpush1.xpose.msra.mxu0 0.0
        %845 = vmatprep.subr.mxu0 0.0
        %846 = vmatpush1.xpose.msra.mxu0 0.0
        %847 = vmatprep.subr.mxu0 0.0
        %848 = vmatpush1.xpose.msra.mxu0 0.0
        %849 = vmatprep.subr.mxu0 0.0
        %850 = vmatpush1.xpose.msra.mxu0 0.0
        %851 = vmatprep.subr.mxu0 0.0
        %852 = vmatpush1.xpose.msra.mxu0 0.0
        %853 = vmatprep.subr.mxu0 0.0
        %854 = vmatpush1.xpose.msra.mxu0 0.0
        %855 = vmatprep.subr.mxu0 0.0
        %856 = vmatpush1.xpose.msra.mxu0 0.0
        %857 = vmatprep.subr.mxu0 0.0
        %858 = vmatpush1.xpose.msra.mxu0 0.0
        %859 = vmatprep.subr.mxu0 0.0
        %860 = vmatpush1.xpose.msra.mxu0 0.0
        %861 = vmatprep.subr.mxu0 0.0
        %862 = vmatpush1.xpose.msra.mxu0 0.0
        %863 = vmatprep.subr.mxu0 0.0
        %864 = vmatpush1.xpose.msra.mxu0 0.0
        %865 = vmatprep.subr.mxu0 0.0
        %866 = vmatpush1.xpose.msra.mxu0 0.0
        %867 = vmatprep.subr.mxu0 0.0
        %868 = vmatpush1.xpose.msra.mxu0 0.0
        %869 = vmatprep.subr.mxu0 0.0
        %870 = vmatpush1.xpose.msra.mxu0 0.0
        %871 = vmatprep.subr.mxu0 0.0
        %872 = vmatpush1.xpose.msra.mxu0 0.0
        %873 = vmatprep.subr.mxu0 0.0
        %874 = vmatpush1.xpose.msra.mxu0 0.0
        %875 = vmatprep.subr.mxu0 0.0
        %876 = vmatpush1.xpose.msra.mxu0 0.0
        %877 = vmatprep.subr.mxu0 0.0
        %878 = vmatpush1.xpose.msra.mxu0 0.0
        %879 = vmatprep.subr.mxu0 0.0
        %880 = vmatpush1.xpose.msra.mxu0 0.0
        %881 = vmatprep.subr.mxu0 0.0
        %882 = vmatpush1.xpose.msra.mxu0 0.0
        %883 = vmatprep.subr.mxu0 0.0
        %884 = vmatpush1.xpose.msra.mxu0 0.0
        %885 = vmatprep.subr.mxu0 0.0
        %886 = vmatpush1.xpose.msra.mxu0 0.0
        %887 = vmatprep.subr.mxu0 0.0
        %888 = vmatpush1.xpose.msra.mxu0 0.0
        %889 = vmatprep.subr.mxu0 0.0
        %890 = vmatpush1.xpose.msra.mxu0 0.0
        %891 = vmatprep.subr.mxu0 0.0
        %892 = vmatpush1.xpose.msra.mxu0 0.0
        %893 = vmatprep.subr.mxu0 0.0
        %894 = vmatpush1.xpose.msra.mxu0 0.0
        %895 = vmatprep.subr.mxu0 0.0
        %896 = vmatpush1.xpose.msra.mxu0 0.0
        %897 = vmatprep.subr.mxu0 0.0
        %898 = vmatpush1.xpose.msra.mxu0 0.0
        %899 = vmatprep.subr.mxu0 0.0
        %900 = vmatpush1.xpose.msra.mxu0 0.0
        %901 = vmatprep.subr.mxu0 0.0
        %902 = vmatpush1.xpose.msra.mxu0 0.0
        %903 = vmatprep.mubr.f32.mxu0 0.0
        %904 = vmatmul.mubr.f32.gmra.mrb[0].mxu0 %v834
        %v905 = vpop.f32.mrb[0].mxu0
        %v906 = vadd.f32 0.0, %v905
        %v907 = vpop.f32.mrb[0].mxu0
        %908 = vdwg.mxu0
        %vm909 = vcmask 64512
        %v910 = vsel %vm909, %v830, -inf
        %911 = vmax.xlane.f32.xlu0 %v910
        %v912 = vpop.xlane.xlu0 %911
        %v913 = vsel %vm909, %v906, -inf
        %914 = vmax.xlane.f32.xlu0 %v913
        %v915 = vpop.xlane.xlu0 %914
        %v916 = vsub.f32 %v830, %v912
        %v917 = vsub.f32 %v906, %v915
        %v918 = vmul.f32 %v916, 1.442695
        %v919 = vpow.pop %v918
        %v920 = vmul.f32 %v917, 1.442695
        %v921 = vpow.pop %v920
        %v922 = vsel %vm909, %v919, 0.0
        %923 = vadd.xlane.f32.xlu0 %v922
        %v924 = vpop.xlane.xlu0 %923
        %v925 = vsel %vm909, %v921, 0.0
        %926 = vadd.xlane.f32.xlu0 %v925
        %v927 = vpop.xlane.xlu0 %926
        %v928 = vrcp.pop %v924
        %v929 = vrcp.pop %v927
        %v930 = vmul.f32 %v919, %v928
        %v931 = vmul.f32 %v921, %v929
        %v933 = vsel %vm909, %v930, 0
        %935 = vmatprep.subr.mxu0 0.0
        %936 = vmatpush1.msra.mxu0 %v748
        %937 = vmatprep.subr.mxu0 0.0
        %938 = vmatpush1.msra.mxu0 0.0
        %939 = vmatprep.subr.mxu0 0.0
        %940 = vmatpush1.msra.mxu0 0.0
        %941 = vmatprep.subr.mxu0 0.0
        %942 = vmatpush1.msra.mxu0 0.0
        %943 = vmatprep.subr.mxu0 0.0
        %944 = vmatpush1.msra.mxu0 0.0
        %945 = vmatprep.subr.mxu0 0.0
        %946 = vmatpush1.msra.mxu0 0.0
        %947 = vmatprep.subr.mxu0 0.0
        %948 = vmatpush1.msra.mxu0 0.0
        %949 = vmatprep.subr.mxu0 0.0
        %950 = vmatpush1.msra.mxu0 0.0
        %951 = vmatprep.subr.mxu0 0.0
        %952 = vmatpush1.msra.mxu0 0.0
        %953 = vmatprep.subr.mxu0 0.0
        %954 = vmatpush1.msra.mxu0 0.0
        %955 = vmatprep.subr.mxu0 0.0
        %956 = vmatpush1.msra.mxu0 0.0
        %957 = vmatprep.subr.mxu0 0.0
        %958 = vmatpush1.msra.mxu0 0.0
        %959 = vmatprep.subr.mxu0 0.0
        %960 = vmatpush1.msra.mxu0 0.0
        %961 = vmatprep.subr.mxu0 0.0
        %962 = vmatpush1.msra.mxu0 0.0
        %963 = vmatprep.subr.mxu0 0.0
        %964 = vmatpush1.msra.mxu0 0.0
        %965 = vmatprep.subr.mxu0 0.0
        %966 = vmatpush1.msra.mxu0 0.0
        %967 = vmatprep.subr.mxu0 0.0
        %968 = vmatpush1.msra.mxu0 0.0
        %969 = vmatprep.subr.mxu0 0.0
        %970 = vmatpush1.msra.mxu0 0.0
        %971 = vmatprep.subr.mxu0 0.0
        %972 = vmatpush1.msra.mxu0 0.0
        %973 = vmatprep.subr.mxu0 0.0
        %974 = vmatpush1.msra.mxu0 0.0
        %975 = vmatprep.subr.mxu0 0.0
        %976 = vmatpush1.msra.mxu0 0.0
        %977 = vmatprep.subr.mxu0 0.0
        %978 = vmatpush1.msra.mxu0 0.0
        %979 = vmatprep.subr.mxu0 0.0
        %980 = vmatpush1.msra.mxu0 0.0
        %981 = vmatprep.subr.mxu0 0.0
        %982 = vmatpush1.msra.mxu0 0.0
        %983 = vmatprep.subr.mxu0 0.0
        %984 = vmatpush1.msra.mxu0 0.0
        %985 = vmatprep.subr.mxu0 0.0
        %986 = vmatpush1.msra.mxu0 0.0
        %987 = vmatprep.subr.mxu0 0.0
        %988 = vmatpush1.msra.mxu0 0.0
        %989 = vmatprep.subr.mxu0 0.0
        %990 = vmatpush1.msra.mxu0 0.0
        %991 = vmatprep.subr.mxu0 0.0
        %992 = vmatpush1.msra.mxu0 0.0
        %993 = vmatprep.subr.mxu0 0.0
        %994 = vmatpush1.msra.mxu0 0.0
        %995 = vmatprep.subr.mxu0 0.0
        %996 = vmatpush1.msra.mxu0 0.0
        %997 = vmatprep.subr.mxu0 0.0
        %998 = vmatpush1.msra.mxu0 0.0
        %999 = vmatprep.mubr.f32.mxu0 0.0
        %1000 = vmatmul.mubr.f32.gmra.mrb[0].mxu0 %v933
        %v1001 = vpop.f32.mrb[0].mxu0
        %v1002 = vadd.f32 0.0, %v1001
        %v1003 = vpop.f32.mrb[0].mxu0
        %1004 = vdwg.mxu0
        %v1006 = vsel %vm909, %v931, 0
        %1008 = vmatprep.subr.mxu0 0.0
        %1009 = vmatpush1.msra.mxu0 %v753
        %1010 = vmatprep.subr.mxu0 0.0
        %1011 = vmatpush1.msra.mxu0 0.0
        %1012 = vmatprep.subr.mxu0 0.0
        %1013 = vmatpush1.msra.mxu0 0.0
        %1014 = vmatprep.subr.mxu0 0.0
        %1015 = vmatpush1.msra.mxu0 0.0
        %1016 = vmatprep.subr.mxu0 0.0
        %1017 = vmatpush1.msra.mxu0 0.0
        %1018 = vmatprep.subr.mxu0 0.0
        %1019 = vmatpush1.msra.mxu0 0.0
        %1020 = vmatprep.subr.mxu0 0.0
        %1021 = vmatpush1.msra.mxu0 0.0
        %1022 = vmatprep.subr.mxu0 0.0
        %1023 = vmatpush1.msra.mxu0 0.0
        %1024 = vmatprep.subr.mxu0 0.0
        %1025 = vmatpush1.msra.mxu0 0.0
        %1026 = vmatprep.subr.mxu0 0.0
        %1027 = vmatpush1.msra.mxu0 0.0
        %1028 = vmatprep.subr.mxu0 0.0
        %1029 = vmatpush1.msra.mxu0 0.0
        %1030 = vmatprep.subr.mxu0 0.0
        %1031 = vmatpush1.msra.mxu0 0.0
        %1032 = vmatprep.subr.mxu0 0.0
        %1033 = vmatpush1.msra.mxu0 0.0
        %1034 = vmatprep.subr.mxu0 0.0
        %1035 = vmatpush1.msra.mxu0 0.0
        %1036 = vmatprep.subr.mxu0 0.0
        %1037 = vmatpush1.msra.mxu0 0.0
        %1038 = vmatprep.subr.mxu0 0.0
        %1039 = vmatpush1.msra.mxu0 0.0
        %1040 = vmatprep.subr.mxu0 0.0
        %1041 = vmatpush1.msra.mxu0 0.0
        %1042 = vmatprep.subr.mxu0 0.0
        %1043 = vmatpush1.msra.mxu0 0.0
        %1044 = vmatprep.subr.mxu0 0.0
        %1045 = vmatpush1.msra.mxu0 0.0
        %1046 = vmatprep.subr.mxu0 0.0
        %1047 = vmatpush1.msra.mxu0 0.0
        %1048 = vmatprep.subr.mxu0 0.0
        %1049 = vmatpush1.msra.mxu0 0.0
        %1050 = vmatprep.subr.mxu0 0.0
        %1051 = vmatpush1.msra.mxu0 0.0
        %1052 = vmatprep.subr.mxu0 0.0
        %1053 = vmatpush1.msra.mxu0 0.0
        %1054 = vmatprep.subr.mxu0 0.0
        %1055 = vmatpush1.msra.mxu0 0.0
        %1056 = vmatprep.subr.mxu0 0.0
        %1057 = vmatpush1.msra.mxu0 0.0
        %1058 = vmatprep.subr.mxu0 0.0
        %1059 = vmatpush1.msra.mxu0 0.0
        %1060 = vmatprep.subr.mxu0 0.0
        %1061 = vmatpush1.msra.mxu0 0.0
        %1062 = vmatprep.subr.mxu0 0.0
        %1063 = vmatpush1.msra.mxu0 0.0
        %1064 = vmatprep.subr.mxu0 0.0
        %1065 = vmatpush1.msra.mxu0 0.0
        %1066 = vmatprep.subr.mxu0 0.0
        %1067 = vmatpush1.msra.mxu0 0.0
        %1068 = vmatprep.subr.mxu0 0.0
        %1069 = vmatpush1.msra.mxu0 0.0
        %1070 = vmatprep.subr.mxu0 0.0
        %1071 = vmatpush1.msra.mxu0 0.0
        %1072 = vmatprep.mubr.f32.mxu0 0.0
        %1073 = vmatmul.mubr.f32.gmra.mrb[0].mxu0 %v1006
        %v1074 = vpop.f32.mrb[0].mxu0
        %v1075 = vadd.f32 0.0, %v1074
        %v1076 = vpop.f32.mrb[0].mxu0
        %1077 = vdwg.mxu0
        %1078 = vst.msk [vmem:[#allocation2] sm:$0xff] %vm756, %v1002
        %1079 = vst.msk [vmem:[#allocation2 + $0x8] sm:$0xff] %vm756, %v1075
        %1080 = vrot.lane.b32.xlu0 %v576, 124
        %v1081 = vpop.permute.xlu0 %1080
        %1082 = vrot.lane.b32.xlu0 %v662, 124
        %v1083 = vpop.permute.xlu0 %1082
        %v1084 = vsel %vm756, %v1081, 0
        %v1086 = vsel %vm756, %v1083, 0
        %1088 = vmatprep.subr.mxu0 0.0
        %1089 = vmatpush1.xpose.msra.mxu0 %v1086
        %1090 = vmatprep.subr.mxu0 0.0
        %1091 = vmatpush1.xpose.msra.mxu0 0.0
        %1092 = vmatprep.subr.mxu0 0.0
        %1093 = vmatpush1.xpose.msra.mxu0 0.0
        %1094 = vmatprep.subr.mxu0 0.0
        %1095 = vmatpush1.xpose.msra.mxu0 0.0
        %1096 = vmatprep.subr.mxu0 0.0
        %1097 = vmatpush1.xpose.msra.mxu0 0.0
        %1098 = vmatprep.subr.mxu0 0.0
        %1099 = vmatpush1.xpose.msra.mxu0 0.0
        %1100 = vmatprep.subr.mxu0 0.0
        %1101 = vmatpush1.xpose.msra.mxu0 0.0
        %1102 = vmatprep.subr.mxu0 0.0
        %1103 = vmatpush1.xpose.msra.mxu0 0.0
        %1104 = vmatprep.subr.mxu0 0.0
        %1105 = vmatpush1.xpose.msra.mxu0 0.0
        %1106 = vmatprep.subr.mxu0 0.0
        %1107 = vmatpush1.xpose.msra.mxu0 0.0
        %1108 = vmatprep.subr.mxu0 0.0
        %1109 = vmatpush1.xpose.msra.mxu0 0.0
        %1110 = vmatprep.subr.mxu0 0.0
        %1111 = vmatpush1.xpose.msra.mxu0 0.0
        %1112 = vmatprep.subr.mxu0 0.0
        %1113 = vmatpush1.xpose.msra.mxu0 0.0
        %1114 = vmatprep.subr.mxu0 0.0
        %1115 = vmatpush1.xpose.msra.mxu0 0.0
        %1116 = vmatprep.subr.mxu0 0.0
        %1117 = vmatpush1.xpose.msra.mxu0 0.0
        %1118 = vmatprep.subr.mxu0 0.0
        %1119 = vmatpush1.xpose.msra.mxu0 0.0
        %1120 = vmatprep.subr.mxu0 0.0
        %1121 = vmatpush1.xpose.msra.mxu0 0.0
        %1122 = vmatprep.subr.mxu0 0.0
        %1123 = vmatpush1.xpose.msra.mxu0 0.0
        %1124 = vmatprep.subr.mxu0 0.0
        %1125 = vmatpush1.xpose.msra.mxu0 0.0
        %1126 = vmatprep.subr.mxu0 0.0
        %1127 = vmatpush1.xpose.msra.mxu0 0.0
        %1128 = vmatprep.subr.mxu0 0.0
        %1129 = vmatpush1.xpose.msra.mxu0 0.0
        %1130 = vmatprep.subr.mxu0 0.0
        %1131 = vmatpush1.xpose.msra.mxu0 0.0
        %1132 = vmatprep.subr.mxu0 0.0
        %1133 = vmatpush1.xpose.msra.mxu0 0.0
        %1134 = vmatprep.subr.mxu0 0.0
        %1135 = vmatpush1.xpose.msra.mxu0 0.0
        %1136 = vmatprep.subr.mxu0 0.0
        %1137 = vmatpush1.xpose.msra.mxu0 0.0
        %1138 = vmatprep.subr.mxu0 0.0
        %1139 = vmatpush1.xpose.msra.mxu0 0.0
        %1140 = vmatprep.subr.mxu0 0.0
        %1141 = vmatpush1.xpose.msra.mxu0 0.0
        %1142 = vmatprep.subr.mxu0 0.0
        %1143 = vmatpush1.xpose.msra.mxu0 0.0
        %1144 = vmatprep.subr.mxu0 0.0
        %1145 = vmatpush1.xpose.msra.mxu0 0.0
        %1146 = vmatprep.subr.mxu0 0.0
        %1147 = vmatpush1.xpose.msra.mxu0 0.0
        %1148 = vmatprep.subr.mxu0 0.0
        %1149 = vmatpush1.xpose.msra.mxu0 0.0
        %1150 = vmatprep.subr.mxu0 0.0
        %1151 = vmatpush1.xpose.msra.mxu0 0.0
        %1152 = vmatprep.mubr.f32.mxu0 0.0
        %1153 = vmatmul.mubr.f32.gmra.mrb[0].mxu0 %v1084
        %v1154 = vpop.f32.mrb[0].mxu0
        %v1155 = vadd.f32 0.0, %v1154
        %v1156 = vpop.f32.mrb[0].mxu0
        %1157 = vdwg.mxu0
        %1158 = vrot.lane.b32.xlu0 %v577, 124
        %v1159 = vpop.permute.xlu0 %1158
        %1160 = vrot.lane.b32.xlu0 %v667, 124
        %v1161 = vpop.permute.xlu0 %1160
        %v1162 = vsel %vm756, %v1159, 0
        %v1164 = vsel %vm756, %v1161, 0
        %1166 = vmatprep.subr.mxu0 0.0
        %1167 = vmatpush1.xpose.msra.mxu0 %v1164
        %1168 = vmatprep.subr.mxu0 0.0
        %1169 = vmatpush1.xpose.msra.mxu0 0.0
        %1170 = vmatprep.subr.mxu0 0.0
        %1171 = vmatpush1.xpose.msra.mxu0 0.0
        %1172 = vmatprep.subr.mxu0 0.0
        %1173 = vmatpush1.xpose.msra.mxu0 0.0
        %1174 = vmatprep.subr.mxu0 0.0
        %1175 = vmatpush1.xpose.msra.mxu0 0.0
        %1176 = vmatprep.subr.mxu0 0.0
        %1177 = vmatpush1.xpose.msra.mxu0 0.0
        %1178 = vmatprep.subr.mxu0 0.0
        %1179 = vmatpush1.xpose.msra.mxu0 0.0
        %1180 = vmatprep.subr.mxu0 0.0
        %1181 = vmatpush1.xpose.msra.mxu0 0.0
        %1182 = vmatprep.subr.mxu0 0.0
        %1183 = vmatpush1.xpose.msra.mxu0 0.0
        %1184 = vmatprep.subr.mxu0 0.0
        %1185 = vmatpush1.xpose.msra.mxu0 0.0
        %1186 = vmatprep.subr.mxu0 0.0
        %1187 = vmatpush1.xpose.msra.mxu0 0.0
        %1188 = vmatprep.subr.mxu0 0.0
        %1189 = vmatpush1.xpose.msra.mxu0 0.0
        %1190 = vmatprep.subr.mxu0 0.0
        %1191 = vmatpush1.xpose.msra.mxu0 0.0
        %1192 = vmatprep.subr.mxu0 0.0
        %1193 = vmatpush1.xpose.msra.mxu0 0.0
        %1194 = vmatprep.subr.mxu0 0.0
        %1195 = vmatpush1.xpose.msra.mxu0 0.0
        %1196 = vmatprep.subr.mxu0 0.0
        %1197 = vmatpush1.xpose.msra.mxu0 0.0
        %1198 = vmatprep.subr.mxu0 0.0
        %1199 = vmatpush1.xpose.msra.mxu0 0.0
        %1200 = vmatprep.subr.mxu0 0.0
        %1201 = vmatpush1.xpose.msra.mxu0 0.0
        %1202 = vmatprep.subr.mxu0 0.0
        %1203 = vmatpush1.xpose.msra.mxu0 0.0
        %1204 = vmatprep.subr.mxu0 0.0
        %1205 = vmatpush1.xpose.msra.mxu0 0.0
        %1206 = vmatprep.subr.mxu0 0.0
        %1207 = vmatpush1.xpose.msra.mxu0 0.0
        %1208 = vmatprep.subr.mxu0 0.0
        %1209 = vmatpush1.xpose.msra.mxu0 0.0
        %1210 = vmatprep.subr.mxu0 0.0
        %1211 = vmatpush1.xpose.msra.mxu0 0.0
        %1212 = vmatprep.subr.mxu0 0.0
        %1213 = vmatpush1.xpose.msra.mxu0 0.0
        %1214 = vmatprep.subr.mxu0 0.0
        %1215 = vmatpush1.xpose.msra.mxu0 0.0
        %1216 = vmatprep.subr.mxu0 0.0
        %1217 = vmatpush1.xpose.msra.mxu0 0.0
        %1218 = vmatprep.subr.mxu0 0.0
        %1219 = vmatpush1.xpose.msra.mxu0 0.0
        %1220 = vmatprep.subr.mxu0 0.0
        %1221 = vmatpush1.xpose.msra.mxu0 0.0
        %1222 = vmatprep.subr.mxu0 0.0
        %1223 = vmatpush1.xpose.msra.mxu0 0.0
        %1224 = vmatprep.subr.mxu0 0.0
        %1225 = vmatpush1.xpose.msra.mxu0 0.0
        %1226 = vmatprep.subr.mxu0 0.0
        %1227 = vmatpush1.xpose.msra.mxu0 0.0
        %1228 = vmatprep.subr.mxu0 0.0
        %1229 = vmatpush1.xpose.msra.mxu0 0.0
        %1230 = vmatprep.mubr.f32.mxu0 0.0
        %1231 = vmatmul.mubr.f32.gmra.mrb[0].mxu0 %v1162
        %v1232 = vpop.f32.mrb[0].mxu0
        %v1233 = vadd.f32 0.0, %v1232
        %v1234 = vpop.f32.mrb[0].mxu0
        %1235 = vdwg.mxu0
        %v1236 = vsel %vm909, %v1155, -inf
        %1237 = vmax.xlane.f32.xlu0 %v1236
        %v1238 = vpop.xlane.xlu0 %1237
        %v1239 = vsel %vm909, %v1233, -inf
        %1240 = vmax.xlane.f32.xlu0 %v1239
        %v1241 = vpop.xlane.xlu0 %1240
        %v1242 = vsub.f32 %v1155, %v1238
        %v1243 = vsub.f32 %v1233, %v1241
        %v1244 = vmul.f32 %v1242, 1.442695
        %v1245 = vpow.pop %v1244
        %v1246 = vmul.f32 %v1243, 1.442695
        %v1247 = vpow.pop %v1246
        %v1248 = vsel %vm909, %v1245, 0.0
        %1249 = vadd.xlane.f32.xlu0 %v1248
        %v1250 = vpop.xlane.xlu0 %1249
        %v1251 = vsel %vm909, %v1247, 0.0
        %1252 = vadd.xlane.f32.xlu0 %v1251
        %v1253 = vpop.xlane.xlu0 %1252
        %v1254 = vrcp.pop %v1250
        %v1255 = vrcp.pop %v1253
        %v1256 = vmul.f32 %v1245, %v1254
        %v1257 = vmul.f32 %v1247, %v1255
        %1259 = vrot.lane.b32.xlu0 %v748, 124
        %v1260 = vpop.permute.xlu0 %1259
        %v1263 = vsel %vm909, %v1256, 0
        %1265 = vmatprep.subr.mxu0 0.0
        %1266 = vmatpush1.msra.mxu0 %v1260
        %1267 = vmatprep.subr.mxu0 0.0
        %1268 = vmatpush1.msra.mxu0 0.0
        %1269 = vmatprep.subr.mxu0 0.0
        %1270 = vmatpush1.msra.mxu0 0.0
        %1271 = vmatprep.subr.mxu0 0.0
        %1272 = vmatpush1.msra.mxu0 0.0
        %1273 = vmatprep.subr.mxu0 0.0
        %1274 = vmatpush1.msra.mxu0 0.0
        %1275 = vmatprep.subr.mxu0 0.0
        %1276 = vmatpush1.msra.mxu0 0.0
        %1277 = vmatprep.subr.mxu0 0.0
        %1278 = vmatpush1.msra.mxu0 0.0
        %1279 = vmatprep.subr.mxu0 0.0
        %1280 = vmatpush1.msra.mxu0 0.0
        %1281 = vmatprep.subr.mxu0 0.0
        %1282 = vmatpush1.msra.mxu0 0.0
        %1283 = vmatprep.subr.mxu0 0.0
        %1284 = vmatpush1.msra.mxu0 0.0
        %1285 = vmatprep.subr.mxu0 0.0
        %1286 = vmatpush1.msra.mxu0 0.0
        %1287 = vmatprep.subr.mxu0 0.0
        %1288 = vmatpush1.msra.mxu0 0.0
        %1289 = vmatprep.subr.mxu0 0.0
        %1290 = vmatpush1.msra.mxu0 0.0
        %1291 = vmatprep.subr.mxu0 0.0
        %1292 = vmatpush1.msra.mxu0 0.0
        %1293 = vmatprep.subr.mxu0 0.0
        %1294 = vmatpush1.msra.mxu0 0.0
        %1295 = vmatprep.subr.mxu0 0.0
        %1296 = vmatpush1.msra.mxu0 0.0
        %1297 = vmatprep.subr.mxu0 0.0
        %1298 = vmatpush1.msra.mxu0 0.0
        %1299 = vmatprep.subr.mxu0 0.0
        %1300 = vmatpush1.msra.mxu0 0.0
        %1301 = vmatprep.subr.mxu0 0.0
        %1302 = vmatpush1.msra.mxu0 0.0
        %1303 = vmatprep.subr.mxu0 0.0
        %1304 = vmatpush1.msra.mxu0 0.0
        %1305 = vmatprep.subr.mxu0 0.0
        %1306 = vmatpush1.msra.mxu0 0.0
        %1307 = vmatprep.subr.mxu0 0.0
        %1308 = vmatpush1.msra.mxu0 0.0
        %1309 = vmatprep.subr.mxu0 0.0
        %1310 = vmatpush1.msra.mxu0 0.0
        %1311 = vmatprep.subr.mxu0 0.0
        %1312 = vmatpush1.msra.mxu0 0.0
        %1313 = vmatprep.subr.mxu0 0.0
        %1314 = vmatpush1.msra.mxu0 0.0
        %1315 = vmatprep.subr.mxu0 0.0
        %1316 = vmatpush1.msra.mxu0 0.0
        %1317 = vmatprep.subr.mxu0 0.0
        %1318 = vmatpush1.msra.mxu0 0.0
        %1319 = vmatprep.subr.mxu0 0.0
        %1320 = vmatpush1.msra.mxu0 0.0
        %1321 = vmatprep.subr.mxu0 0.0
        %1322 = vmatpush1.msra.mxu0 0.0
        %1323 = vmatprep.subr.mxu0 0.0
        %1324 = vmatpush1.msra.mxu0 0.0
        %1325 = vmatprep.subr.mxu0 0.0
        %1326 = vmatpush1.msra.mxu0 0.0
        %1327 = vmatprep.subr.mxu0 0.0
        %1328 = vmatpush1.msra.mxu0 0.0
        %1329 = vmatprep.mubr.f32.mxu0 0.0
        %1330 = vmatmul.mubr.f32.gmra.mrb[0].mxu0 %v1263
        %v1331 = vpop.f32.mrb[0].mxu0
        %v1332 = vadd.f32 0.0, %v1331
        %v1333 = vpop.f32.mrb[0].mxu0
        %1334 = vdwg.mxu0
        %1336 = vrot.lane.b32.xlu0 %v753, 124
        %v1337 = vpop.permute.xlu0 %1336
        %v1340 = vsel %vm909, %v1257, 0
        %1342 = vmatprep.subr.mxu0 0.0
        %1343 = vmatpush1.msra.mxu0 %v1337
        %1344 = vmatprep.subr.mxu0 0.0
        %1345 = vmatpush1.msra.mxu0 0.0
        %1346 = vmatprep.subr.mxu0 0.0
        %1347 = vmatpush1.msra.mxu0 0.0
        %1348 = vmatprep.subr.mxu0 0.0
        %1349 = vmatpush1.msra.mxu0 0.0
        %1350 = vmatprep.subr.mxu0 0.0
        %1351 = vmatpush1.msra.mxu0 0.0
        %1352 = vmatprep.subr.mxu0 0.0
        %1353 = vmatpush1.msra.mxu0 0.0
        %1354 = vmatprep.subr.mxu0 0.0
        %1355 = vmatpush1.msra.mxu0 0.0
        %1356 = vmatprep.subr.mxu0 0.0
        %1357 = vmatpush1.msra.mxu0 0.0
        %1358 = vmatprep.subr.mxu0 0.0
        %1359 = vmatpush1.msra.mxu0 0.0
        %1360 = vmatprep.subr.mxu0 0.0
        %1361 = vmatpush1.msra.mxu0 0.0
        %1362 = vmatprep.subr.mxu0 0.0
        %1363 = vmatpush1.msra.mxu0 0.0
        %1364 = vmatprep.subr.mxu0 0.0
        %1365 = vmatpush1.msra.mxu0 0.0
        %1366 = vmatprep.subr.mxu0 0.0
        %1367 = vmatpush1.msra.mxu0 0.0
        %1368 = vmatprep.subr.mxu0 0.0
        %1369 = vmatpush1.msra.mxu0 0.0
        %1370 = vmatprep.subr.mxu0 0.0
        %1371 = vmatpush1.msra.mxu0 0.0
        %1372 = vmatprep.subr.mxu0 0.0
        %1373 = vmatpush1.msra.mxu0 0.0
        %1374 = vmatprep.subr.mxu0 0.0
        %1375 = vmatpush1.msra.mxu0 0.0
        %1376 = vmatprep.subr.mxu0 0.0
        %1377 = vmatpush1.msra.mxu0 0.0
        %1378 = vmatprep.subr.mxu0 0.0
        %1379 = vmatpush1.msra.mxu0 0.0
        %1380 = vmatprep.subr.mxu0 0.0
        %1381 = vmatpush1.msra.mxu0 0.0
        %1382 = vmatprep.subr.mxu0 0.0
        %1383 = vmatpush1.msra.mxu0 0.0
        %1384 = vmatprep.subr.mxu0 0.0
        %1385 = vmatpush1.msra.mxu0 0.0
        %1386 = vmatprep.subr.mxu0 0.0
        %1387 = vmatpush1.msra.mxu0 0.0
        %1388 = vmatprep.subr.mxu0 0.0
        %1389 = vmatpush1.msra.mxu0 0.0
        %1390 = vmatprep.subr.mxu0 0.0
        %1391 = vmatpush1.msra.mxu0 0.0
        %1392 = vmatprep.subr.mxu0 0.0
        %1393 = vmatpush1.msra.mxu0 0.0
        %1394 = vmatprep.subr.mxu0 0.0
        %1395 = vmatpush1.msra.mxu0 0.0
        %1396 = vmatprep.subr.mxu0 0.0
        %1397 = vmatpush1.msra.mxu0 0.0
        %1398 = vmatprep.subr.mxu0 0.0
        %1399 = vmatpush1.msra.mxu0 0.0
        %1400 = vmatprep.subr.mxu0 0.0
        %1401 = vmatpush1.msra.mxu0 0.0
        %1402 = vmatprep.subr.mxu0 0.0
        %1403 = vmatpush1.msra.mxu0 0.0
        %1404 = vmatprep.subr.mxu0 0.0
        %1405 = vmatpush1.msra.mxu0 0.0
        %1406 = vmatprep.mubr.f32.mxu0 0.0
        %1407 = vmatmul.mubr.f32.gmra.mrb[0].mxu0 %v1340
        %v1408 = vpop.f32.mrb[0].mxu0
        %v1409 = vadd.f32 0.0, %v1408
        %v1410 = vpop.f32.mrb[0].mxu0
        %1411 = vdwg.mxu0
        %1414 = vrot.lane.b32.xlu0 %v1332, 4
        %v1415 = vpop.permute.xlu0 %1414
        %1416 = vrot.lane.b32.xlu0 %v1409, 4
        %v1417 = vpop.permute.xlu0 %1416
        %vm1420 = vcmask 64544
        %1421 = vst.msk [vmem:[#allocation2] sm:$0xff] %vm1420, %v1415
        %1422 = vst.msk [vmem:[#allocation2 + $0x8] sm:$0xff] %vm1420, %v1417
        %1423 = vrot.lane.b32.xlu0 %v576, 120
        %v1424 = vpop.permute.xlu0 %1423
        %1425 = vrot.lane.b32.xlu0 %v662, 120
        %v1426 = vpop.permute.xlu0 %1425
        %v1427 = vsel %vm756, %v1424, 0
        %v1429 = vsel %vm756, %v1426, 0
        %1431 = vmatprep.subr.mxu0 0.0
        %1432 = vmatpush1.xpose.msra.mxu0 %v1429
        %1433 = vmatprep.subr.mxu0 0.0
        %1434 = vmatpush1.xpose.msra.mxu0 0.0
        %1435 = vmatprep.subr.mxu0 0.0
        %1436 = vmatpush1.xpose.msra.mxu0 0.0
        %1437 = vmatprep.subr.mxu0 0.0
        %1438 = vmatpush1.xpose.msra.mxu0 0.0
        %1439 = vmatprep.subr.mxu0 0.0
        %1440 = vmatpush1.xpose.msra.mxu0 0.0
        %1441 = vmatprep.subr.mxu0 0.0
        %1442 = vmatpush1.xpose.msra.mxu0 0.0
        %1443 = vmatprep.subr.mxu0 0.0
        %1444 = vmatpush1.xpose.msra.mxu0 0.0
        %1445 = vmatprep.subr.mxu0 0.0
        %1446 = vmatpush1.xpose.msra.mxu0 0.0
        %1447 = vmatprep.subr.mxu0 0.0
        %1448 = vmatpush1.xpose.msra.mxu0 0.0
        %1449 = vmatprep.subr.mxu0 0.0
        %1450 = vmatpush1.xpose.msra.mxu0 0.0
        %1451 = vmatprep.subr.mxu0 0.0
        %1452 = vmatpush1.xpose.msra.mxu0 0.0
        %1453 = vmatprep.subr.mxu0 0.0
        %1454 = vmatpush1.xpose.msra.mxu0 0.0
        %1455 = vmatprep.subr.mxu0 0.0
        %1456 = vmatpush1.xpose.msra.mxu0 0.0
        %1457 = vmatprep.subr.mxu0 0.0
        %1458 = vmatpush1.xpose.msra.mxu0 0.0
        %1459 = vmatprep.subr.mxu0 0.0
        %1460 = vmatpush1.xpose.msra.mxu0 0.0
        %1461 = vmatprep.subr.mxu0 0.0
        %1462 = vmatpush1.xpose.msra.mxu0 0.0
        %1463 = vmatprep.subr.mxu0 0.0
        %1464 = vmatpush1.xpose.msra.mxu0 0.0
        %1465 = vmatprep.subr.mxu0 0.0
        %1466 = vmatpush1.xpose.msra.mxu0 0.0
        %1467 = vmatprep.subr.mxu0 0.0
        %1468 = vmatpush1.xpose.msra.mxu0 0.0
        %1469 = vmatprep.subr.mxu0 0.0
        %1470 = vmatpush1.xpose.msra.mxu0 0.0
        %1471 = vmatprep.subr.mxu0 0.0
        %1472 = vmatpush1.xpose.msra.mxu0 0.0
        %1473 = vmatprep.subr.mxu0 0.0
        %1474 = vmatpush1.xpose.msra.mxu0 0.0
        %1475 = vmatprep.subr.mxu0 0.0
        %1476 = vmatpush1.xpose.msra.mxu0 0.0
        %1477 = vmatprep.subr.mxu0 0.0
        %1478 = vmatpush1.xpose.msra.mxu0 0.0
        %1479 = vmatprep.subr.mxu0 0.0
        %1480 = vmatpush1.xpose.msra.mxu0 0.0
        %1481 = vmatprep.subr.mxu0 0.0
        %1482 = vmatpush1.xpose.msra.mxu0 0.0
        %1483 = vmatprep.subr.mxu0 0.0
        %1484 = vmatpush1.xpose.msra.mxu0 0.0
        %1485 = vmatprep.subr.mxu0 0.0
        %1486 = vmatpush1.xpose.msra.mxu0 0.0
        %1487 = vmatprep.subr.mxu0 0.0
        %1488 = vmatpush1.xpose.msra.mxu0 0.0
        %1489 = vmatprep.subr.mxu0 0.0
        %1490 = vmatpush1.xpose.msra.mxu0 0.0
        %1491 = vmatprep.subr.mxu0 0.0
        %1492 = vmatpush1.xpose.msra.mxu0 0.0
        %1493 = vmatprep.subr.mxu0 0.0
        %1494 = vmatpush1.xpose.msra.mxu0 0.0
        %1495 = vmatprep.mubr.f32.mxu0 0.0
        %1496 = vmatmul.mubr.f32.gmra.mrb[0].mxu0 %v1427
        %v1497 = vpop.f32.mrb[0].mxu0
        %v1498 = vadd.f32 0.0, %v1497
        %v1499 = vpop.f32.mrb[0].mxu0
        %1500 = vdwg.mxu0
        %1501 = vrot.lane.b32.xlu0 %v577, 120
        %v1502 = vpop.permute.xlu0 %1501
        %1503 = vrot.lane.b32.xlu0 %v667, 120
        %v1504 = vpop.permute.xlu0 %1503
        %v1505 = vsel %vm756, %v1502, 0
        %v1507 = vsel %vm756, %v1504, 0
        %1509 = vmatprep.subr.mxu0 0.0
        %1510 = vmatpush1.xpose.msra.mxu0 %v1507
        %1511 = vmatprep.subr.mxu0 0.0
        %1512 = vmatpush1.xpose.msra.mxu0 0.0
        %1513 = vmatprep.subr.mxu0 0.0
        %1514 = vmatpush1.xpose.msra.mxu0 0.0
        %1515 = vmatprep.subr.mxu0 0.0
        %1516 = vmatpush1.xpose.msra.mxu0 0.0
        %1517 = vmatprep.subr.mxu0 0.0
        %1518 = vmatpush1.xpose.msra.mxu0 0.0
        %1519 = vmatprep.subr.mxu0 0.0
        %1520 = vmatpush1.xpose.msra.mxu0 0.0
        %1521 = vmatprep.subr.mxu0 0.0
        %1522 = vmatpush1.xpose.msra.mxu0 0.0
        %1523 = vmatprep.subr.mxu0 0.0
        %1524 = vmatpush1.xpose.msra.mxu0 0.0
        %1525 = vmatprep.subr.mxu0 0.0
        %1526 = vmatpush1.xpose.msra.mxu0 0.0
        %1527 = vmatprep.subr.mxu0 0.0
        %1528 = vmatpush1.xpose.msra.mxu0 0.0
        %1529 = vmatprep.subr.mxu0 0.0
        %1530 = vmatpush1.xpose.msra.mxu0 0.0
        %1531 = vmatprep.subr.mxu0 0.0
        %1532 = vmatpush1.xpose.msra.mxu0 0.0
        %1533 = vmatprep.subr.mxu0 0.0
        %1534 = vmatpush1.xpose.msra.mxu0 0.0
        %1535 = vmatprep.subr.mxu0 0.0
        %1536 = vmatpush1.xpose.msra.mxu0 0.0
        %1537 = vmatprep.subr.mxu0 0.0
        %1538 = vmatpush1.xpose.msra.mxu0 0.0
        %1539 = vmatprep.subr.mxu0 0.0
        %1540 = vmatpush1.xpose.msra.mxu0 0.0
        %1541 = vmatprep.subr.mxu0 0.0
        %1542 = vmatpush1.xpose.msra.mxu0 0.0
        %1543 = vmatprep.subr.mxu0 0.0
        %1544 = vmatpush1.xpose.msra.mxu0 0.0
        %1545 = vmatprep.subr.mxu0 0.0
        %1546 = vmatpush1.xpose.msra.mxu0 0.0
        %1547 = vmatprep.subr.mxu0 0.0
        %1548 = vmatpush1.xpose.msra.mxu0 0.0
        %1549 = vmatprep.subr.mxu0 0.0
        %1550 = vmatpush1.xpose.msra.mxu0 0.0
        %1551 = vmatprep.subr.mxu0 0.0
        %1552 = vmatpush1.xpose.msra.mxu0 0.0
        %1553 = vmatprep.subr.mxu0 0.0
        %1554 = vmatpush1.xpose.msra.mxu0 0.0
        %1555 = vmatprep.subr.mxu0 0.0
        %1556 = vmatpush1.xpose.msra.mxu0 0.0
        %1557 = vmatprep.subr.mxu0 0.0
        %1558 = vmatpush1.xpose.msra.mxu0 0.0
        %1559 = vmatprep.subr.mxu0 0.0
        %1560 = vmatpush1.xpose.msra.mxu0 0.0
        %1561 = vmatprep.subr.mxu0 0.0
        %1562 = vmatpush1.xpose.msra.mxu0 0.0
        %1563 = vmatprep.subr.mxu0 0.0
        %1564 = vmatpush1.xpose.msra.mxu0 0.0
        %1565 = vmatprep.subr.mxu0 0.0
        %1566 = vmatpush1.xpose.msra.mxu0 0.0
        %1567 = vmatprep.subr.mxu0 0.0
        %1568 = vmatpush1.xpose.msra.mxu0 0.0
        %1569 = vmatprep.subr.mxu0 0.0
        %1570 = vmatpush1.xpose.msra.mxu0 0.0
        %1571 = vmatprep.subr.mxu0 0.0
        %1572 = vmatpush1.xpose.msra.mxu0 0.0
        %1573 = vmatprep.mubr.f32.mxu0 0.0
        %1574 = vmatmul.mubr.f32.gmra.mrb[0].mxu0 %v1505
        %v1575 = vpop.f32.mrb[0].mxu0
        %v1576 = vadd.f32 0.0, %v1575
        %v1577 = vpop.f32.mrb[0].mxu0
        %1578 = vdwg.mxu0
        %v1579 = vsel %vm909, %v1498, -inf
        %1580 = vmax.xlane.f32.xlu0 %v1579
        %v1581 = vpop.xlane.xlu0 %1580
        %v1582 = vsel %vm909, %v1576, -inf
        %1583 = vmax.xlane.f32.xlu0 %v1582
        %v1584 = vpop.xlane.xlu0 %1583
        %v1585 = vsub.f32 %v1498, %v1581
        %v1586 = vsub.f32 %v1576, %v1584
        %v1587 = vmul.f32 %v1585, 1.442695
        %v1588 = vpow.pop %v1587
        %v1589 = vmul.f32 %v1586, 1.442695
        %v1590 = vpow.pop %v1589
        %v1591 = vsel %vm909, %v1588, 0.0
        %1592 = vadd.xlane.f32.xlu0 %v1591
        %v1593 = vpop.xlane.xlu0 %1592
        %v1594 = vsel %vm909, %v1590, 0.0
        %1595 = vadd.xlane.f32.xlu0 %v1594
        %v1596 = vpop.xlane.xlu0 %1595
        %v1597 = vrcp.pop %v1593
        %v1598 = vrcp.pop %v1596
        %v1599 = vmul.f32 %v1588, %v1597
        %v1600 = vmul.f32 %v1590, %v1598
        %1601 = vrot.lane.b32.xlu0 %v748, 120
        %v1602 = vpop.permute.xlu0 %1601
        %v1605 = vsel %vm909, %v1599, 0
        %1607 = vmatprep.subr.mxu0 0.0
        %1608 = vmatpush1.msra.mxu0 %v1602
        %1609 = vmatprep.subr.mxu0 0.0
        %1610 = vmatpush1.msra.mxu0 0.0
        %1611 = vmatprep.subr.mxu0 0.0
        %1612 = vmatpush1.msra.mxu0 0.0
        %1613 = vmatprep.subr.mxu0 0.0
        %1614 = vmatpush1.msra.mxu0 0.0
        %1615 = vmatprep.subr.mxu0 0.0
        %1616 = vmatpush1.msra.mxu0 0.0
        %1617 = vmatprep.subr.mxu0 0.0
        %1618 = vmatpush1.msra.mxu0 0.0
        %1619 = vmatprep.subr.mxu0 0.0
        %1620 = vmatpush1.msra.mxu0 0.0
        %1621 = vmatprep.subr.mxu0 0.0
        %1622 = vmatpush1.msra.mxu0 0.0
        %1623 = vmatprep.subr.mxu0 0.0
        %1624 = vmatpush1.msra.mxu0 0.0
        %1625 = vmatprep.subr.mxu0 0.0
        %1626 = vmatpush1.msra.mxu0 0.0
        %1627 = vmatprep.subr.mxu0 0.0
        %1628 = vmatpush1.msra.mxu0 0.0
        %1629 = vmatprep.subr.mxu0 0.0
        %1630 = vmatpush1.msra.mxu0 0.0
        %1631 = vmatprep.subr.mxu0 0.0
        %1632 = vmatpush1.msra.mxu0 0.0
        %1633 = vmatprep.subr.mxu0 0.0
        %1634 = vmatpush1.msra.mxu0 0.0
        %1635 = vmatprep.subr.mxu0 0.0
        %1636 = vmatpush1.msra.mxu0 0.0
        %1637 = vmatprep.subr.mxu0 0.0
        %1638 = vmatpush1.msra.mxu0 0.0
        %1639 = vmatprep.subr.mxu0 0.0
        %1640 = vmatpush1.msra.mxu0 0.0
        %1641 = vmatprep.subr.mxu0 0.0
        %1642 = vmatpush1.msra.mxu0 0.0
        %1643 = vmatprep.subr.mxu0 0.0
        %1644 = vmatpush1.msra.mxu0 0.0
        %1645 = vmatprep.subr.mxu0 0.0
        %1646 = vmatpush1.msra.mxu0 0.0
        %1647 = vmatprep.subr.mxu0 0.0
        %1648 = vmatpush1.msra.mxu0 0.0
        %1649 = vmatprep.subr.mxu0 0.0
        %1650 = vmatpush1.msra.mxu0 0.0
        %1651 = vmatprep.subr.mxu0 0.0
        %1652 = vmatpush1.msra.mxu0 0.0
        %1653 = vmatprep.subr.mxu0 0.0
        %1654 = vmatpush1.msra.mxu0 0.0
        %1655 = vmatprep.subr.mxu0 0.0
        %1656 = vmatpush1.msra.mxu0 0.0
        %1657 = vmatprep.subr.mxu0 0.0
        %1658 = vmatpush1.msra.mxu0 0.0
        %1659 = vmatprep.subr.mxu0 0.0
        %1660 = vmatpush1.msra.mxu0 0.0
        %1661 = vmatprep.subr.mxu0 0.0
        %1662 = vmatpush1.msra.mxu0 0.0
        %1663 = vmatprep.subr.mxu0 0.0
        %1664 = vmatpush1.msra.mxu0 0.0
        %1665 = vmatprep.subr.mxu0 0.0
        %1666 = vmatpush1.msra.mxu0 0.0
        %1667 = vmatprep.subr.mxu0 0.0
        %1668 = vmatpush1.msra.mxu0 0.0
        %1669 = vmatprep.subr.mxu0 0.0
        %1670 = vmatpush1.msra.mxu0 0.0
        %1671 = vmatprep.mubr.f32.mxu0 0.0
        %1672 = vmatmul.mubr.f32.gmra.mrb[0].mxu0 %v1605
        %v1673 = vpop.f32.mrb[0].mxu0
        %v1674 = vadd.f32 0.0, %v1673
        %v1675 = vpop.f32.mrb[0].mxu0
        %1676 = vdwg.mxu0
        %1677 = vrot.lane.b32.xlu0 %v753, 120
        %v1678 = vpop.permute.xlu0 %1677
        %v1681 = vsel %vm909, %v1600, 0
        %1683 = vmatprep.subr.mxu0 0.0
        %1684 = vmatpush1.msra.mxu0 %v1678
        %1685 = vmatprep.subr.mxu0 0.0
        %1686 = vmatpush1.msra.mxu0 0.0
        %1687 = vmatprep.subr.mxu0 0.0
        %1688 = vmatpush1.msra.mxu0 0.0
        %1689 = vmatprep.subr.mxu0 0.0
        %1690 = vmatpush1.msra.mxu0 0.0
        %1691 = vmatprep.subr.mxu0 0.0
        %1692 = vmatpush1.msra.mxu0 0.0
        %1693 = vmatprep.subr.mxu0 0.0
        %1694 = vmatpush1.msra.mxu0 0.0
        %1695 = vmatprep.subr.mxu0 0.0
        %1696 = vmatpush1.msra.mxu0 0.0
        %1697 = vmatprep.subr.mxu0 0.0
        %1698 = vmatpush1.msra.mxu0 0.0
        %1699 = vmatprep.subr.mxu0 0.0
        %1700 = vmatpush1.msra.mxu0 0.0
        %1701 = vmatprep.subr.mxu0 0.0
        %1702 = vmatpush1.msra.mxu0 0.0
        %1703 = vmatprep.subr.mxu0 0.0
        %1704 = vmatpush1.msra.mxu0 0.0
        %1705 = vmatprep.subr.mxu0 0.0
        %1706 = vmatpush1.msra.mxu0 0.0
        %1707 = vmatprep.subr.mxu0 0.0
        %1708 = vmatpush1.msra.mxu0 0.0
        %1709 = vmatprep.subr.mxu0 0.0
        %1710 = vmatpush1.msra.mxu0 0.0
        %1711 = vmatprep.subr.mxu0 0.0
        %1712 = vmatpush1.msra.mxu0 0.0
        %1713 = vmatprep.subr.mxu0 0.0
        %1714 = vmatpush1.msra.mxu0 0.0
        %1715 = vmatprep.subr.mxu0 0.0
        %1716 = vmatpush1.msra.mxu0 0.0
        %1717 = vmatprep.subr.mxu0 0.0
        %1718 = vmatpush1.msra.mxu0 0.0
        %1719 = vmatprep.subr.mxu0 0.0
        %1720 = vmatpush1.msra.mxu0 0.0
        %1721 = vmatprep.subr.mxu0 0.0
        %1722 = vmatpush1.msra.mxu0 0.0
        %1723 = vmatprep.subr.mxu0 0.0
        %1724 = vmatpush1.msra.mxu0 0.0
        %1725 = vmatprep.subr.mxu0 0.0
        %1726 = vmatpush1.msra.mxu0 0.0
        %1727 = vmatprep.subr.mxu0 0.0
        %1728 = vmatpush1.msra.mxu0 0.0
        %1729 = vmatprep.subr.mxu0 0.0
        %1730 = vmatpush1.msra.mxu0 0.0
        %1731 = vmatprep.subr.mxu0 0.0
        %1732 = vmatpush1.msra.mxu0 0.0
        %1733 = vmatprep.subr.mxu0 0.0
        %1734 = vmatpush1.msra.mxu0 0.0
        %1735 = vmatprep.subr.mxu0 0.0
        %1736 = vmatpush1.msra.mxu0 0.0
        %1737 = vmatprep.subr.mxu0 0.0
        %1738 = vmatpush1.msra.mxu0 0.0
        %1739 = vmatprep.subr.mxu0 0.0
        %1740 = vmatpush1.msra.mxu0 0.0
        %1741 = vmatprep.subr.mxu0 0.0
        %1742 = vmatpush1.msra.mxu0 0.0
        %1743 = vmatprep.subr.mxu0 0.0
        %1744 = vmatpush1.msra.mxu0 0.0
        %1745 = vmatprep.subr.mxu0 0.0
        %1746 = vmatpush1.msra.mxu0 0.0
        %1747 = vmatprep.mubr.f32.mxu0 0.0
        %1748 = vmatmul.mubr.f32.gmra.mrb[0].mxu0 %v1681
        %v1749 = vpop.f32.mrb[0].mxu0
        %v1750 = vadd.f32 0.0, %v1749
        %v1751 = vpop.f32.mrb[0].mxu0
        %1752 = vdwg.mxu0
        %1755 = vrot.lane.b32.xlu0 %v1674, 8
        %v1756 = vpop.permute.xlu0 %1755
        %1757 = vrot.lane.b32.xlu0 %v1750, 8
        %v1758 = vpop.permute.xlu0 %1757
        %vm1761 = vcmask 97344
        %1762 = vst.msk [vmem:[#allocation2] sm:$0xff] %vm1761, %v1756
        %1763 = vst.msk [vmem:[#allocation2 + $0x8] sm:$0xff] %vm1761, %v1758
        %1764 = vrot.lane.b32.xlu0 %v576, 116
        %v1765 = vpop.permute.xlu0 %1764
        %1766 = vrot.lane.b32.xlu0 %v662, 116
        %v1767 = vpop.permute.xlu0 %1766
        %v1768 = vsel %vm756, %v1765, 0
        %v1770 = vsel %vm756, %v1767, 0
        %1772 = vmatprep.subr.mxu0 0.0
        %1773 = vmatpush1.xpose.msra.mxu0 %v1770
        %1774 = vmatprep.subr.mxu0 0.0
        %1775 = vmatpush1.xpose.msra.mxu0 0.0
        %1776 = vmatprep.subr.mxu0 0.0
        %1777 = vmatpush1.xpose.msra.mxu0 0.0
        %1778 = vmatprep.subr.mxu0 0.0
        %1779 = vmatpush1.xpose.msra.mxu0 0.0
        %1780 = vmatprep.subr.mxu0 0.0
        %1781 = vmatpush1.xpose.msra.mxu0 0.0
        %1782 = vmatprep.subr.mxu0 0.0
        %1783 = vmatpush1.xpose.msra.mxu0 0.0
        %1784 = vmatprep.subr.mxu0 0.0
        %1785 = vmatpush1.xpose.msra.mxu0 0.0
        %1786 = vmatprep.subr.mxu0 0.0
        %1787 = vmatpush1.xpose.msra.mxu0 0.0
        %1788 = vmatprep.subr.mxu0 0.0
        %1789 = vmatpush1.xpose.msra.mxu0 0.0
        %1790 = vmatprep.subr.mxu0 0.0
        %1791 = vmatpush1.xpose.msra.mxu0 0.0
        %1792 = vmatprep.subr.mxu0 0.0
        %1793 = vmatpush1.xpose.msra.mxu0 0.0
        %1794 = vmatprep.subr.mxu0 0.0
        %1795 = vmatpush1.xpose.msra.mxu0 0.0
        %1796 = vmatprep.subr.mxu0 0.0
        %1797 = vmatpush1.xpose.msra.mxu0 0.0
        %1798 = vmatprep.subr.mxu0 0.0
        %1799 = vmatpush1.xpose.msra.mxu0 0.0
        %1800 = vmatprep.subr.mxu0 0.0
        %1801 = vmatpush1.xpose.msra.mxu0 0.0
        %1802 = vmatprep.subr.mxu0 0.0
        %1803 = vmatpush1.xpose.msra.mxu0 0.0
        %1804 = vmatprep.subr.mxu0 0.0
        %1805 = vmatpush1.xpose.msra.mxu0 0.0
        %1806 = vmatprep.subr.mxu0 0.0
        %1807 = vmatpush1.xpose.msra.mxu0 0.0
        %1808 = vmatprep.subr.mxu0 0.0
        %1809 = vmatpush1.xpose.msra.mxu0 0.0
        %1810 = vmatprep.subr.mxu0 0.0
        %1811 = vmatpush1.xpose.msra.mxu0 0.0
        %1812 = vmatprep.subr.mxu0 0.0
        %1813 = vmatpush1.xpose.msra.mxu0 0.0
        %1814 = vmatprep.subr.mxu0 0.0
        %1815 = vmatpush1.xpose.msra.mxu0 0.0
        %1816 = vmatprep.subr.mxu0 0.0
        %1817 = vmatpush1.xpose.msra.mxu0 0.0
        %1818 = vmatprep.subr.mxu0 0.0
        %1819 = vmatpush1.xpose.msra.mxu0 0.0
        %1820 = vmatprep.subr.mxu0 0.0
        %1821 = vmatpush1.xpose.msra.mxu0 0.0
        %1822 = vmatprep.subr.mxu0 0.0
        %1823 = vmatpush1.xpose.msra.mxu0 0.0
        %1824 = vmatprep.subr.mxu0 0.0
        %1825 = vmatpush1.xpose.msra.mxu0 0.0
        %1826 = vmatprep.subr.mxu0 0.0
        %1827 = vmatpush1.xpose.msra.mxu0 0.0
        %1828 = vmatprep.subr.mxu0 0.0
        %1829 = vmatpush1.xpose.msra.mxu0 0.0
        %1830 = vmatprep.subr.mxu0 0.0
        %1831 = vmatpush1.xpose.msra.mxu0 0.0
        %1832 = vmatprep.subr.mxu0 0.0
        %1833 = vmatpush1.xpose.msra.mxu0 0.0
        %1834 = vmatprep.subr.mxu0 0.0
        %1835 = vmatpush1.xpose.msra.mxu0 0.0
        %1836 = vmatprep.mubr.f32.mxu0 0.0
        %1837 = vmatmul.mubr.f32.gmra.mrb[0].mxu0 %v1768
        %v1838 = vpop.f32.mrb[0].mxu0
        %v1839 = vadd.f32 0.0, %v1838
        %v1840 = vpop.f32.mrb[0].mxu0
        %1841 = vdwg.mxu0
        %1842 = vrot.lane.b32.xlu0 %v577, 116
        %v1843 = vpop.permute.xlu0 %1842
        %1844 = vrot.lane.b32.xlu0 %v667, 116
        %v1845 = vpop.permute.xlu0 %1844
        %v1846 = vsel %vm756, %v1843, 0
        %v1848 = vsel %vm756, %v1845, 0
        %1850 = vmatprep.subr.mxu0 0.0
        %1851 = vmatpush1.xpose.msra.mxu0 %v1848
        %1852 = vmatprep.subr.mxu0 0.0
        %1853 = vmatpush1.xpose.msra.mxu0 0.0
        %1854 = vmatprep.subr.mxu0 0.0
        %1855 = vmatpush1.xpose.msra.mxu0 0.0
        %1856 = vmatprep.subr.mxu0 0.0
        %1857 = vmatpush1.xpose.msra.mxu0 0.0
        %1858 = vmatprep.subr.mxu0 0.0
        %1859 = vmatpush1.xpose.msra.mxu0 0.0
        %1860 = vmatprep.subr.mxu0 0.0
        %1861 = vmatpush1.xpose.msra.mxu0 0.0
        %1862 = vmatprep.subr.mxu0 0.0
        %1863 = vmatpush1.xpose.msra.mxu0 0.0
        %1864 = vmatprep.subr.mxu0 0.0
        %1865 = vmatpush1.xpose.msra.mxu0 0.0
        %1866 = vmatprep.subr.mxu0 0.0
        %1867 = vmatpush1.xpose.msra.mxu0 0.0
        %1868 = vmatprep.subr.mxu0 0.0
        %1869 = vmatpush1.xpose.msra.mxu0 0.0
        %1870 = vmatprep.subr.mxu0 0.0
        %1871 = vmatpush1.xpose.msra.mxu0 0.0
        %1872 = vmatprep.subr.mxu0 0.0
        %1873 = vmatpush1.xpose.msra.mxu0 0.0
        %1874 = vmatprep.subr.mxu0 0.0
        %1875 = vmatpush1.xpose.msra.mxu0 0.0
        %1876 = vmatprep.subr.mxu0 0.0
        %1877 = vmatpush1.xpose.msra.mxu0 0.0
        %1878 = vmatprep.subr.mxu0 0.0
        %1879 = vmatpush1.xpose.msra.mxu0 0.0
        %1880 = vmatprep.subr.mxu0 0.0
        %1881 = vmatpush1.xpose.msra.mxu0 0.0
        %1882 = vmatprep.subr.mxu0 0.0
        %1883 = vmatpush1.xpose.msra.mxu0 0.0
        %1884 = vmatprep.subr.mxu0 0.0
        %1885 = vmatpush1.xpose.msra.mxu0 0.0
        %1886 = vmatprep.subr.mxu0 0.0
        %1887 = vmatpush1.xpose.msra.mxu0 0.0
        %1888 = vmatprep.subr.mxu0 0.0
        %1889 = vmatpush1.xpose.msra.mxu0 0.0
        %1890 = vmatprep.subr.mxu0 0.0
        %1891 = vmatpush1.xpose.msra.mxu0 0.0
        %1892 = vmatprep.subr.mxu0 0.0
        %1893 = vmatpush1.xpose.msra.mxu0 0.0
        %1894 = vmatprep.subr.mxu0 0.0
        %1895 = vmatpush1.xpose.msra.mxu0 0.0
        %1896 = vmatprep.subr.mxu0 0.0
        %1897 = vmatpush1.xpose.msra.mxu0 0.0
        %1898 = vmatprep.subr.mxu0 0.0
        %1899 = vmatpush1.xpose.msra.mxu0 0.0
        %1900 = vmatprep.subr.mxu0 0.0
        %1901 = vmatpush1.xpose.msra.mxu0 0.0
        %1902 = vmatprep.subr.mxu0 0.0
        %1903 = vmatpush1.xpose.msra.mxu0 0.0
        %1904 = vmatprep.subr.mxu0 0.0
        %1905 = vmatpush1.xpose.msra.mxu0 0.0
        %1906 = vmatprep.subr.mxu0 0.0
        %1907 = vmatpush1.xpose.msra.mxu0 0.0
        %1908 = vmatprep.subr.mxu0 0.0
        %1909 = vmatpush1.xpose.msra.mxu0 0.0
        %1910 = vmatprep.subr.mxu0 0.0
        %1911 = vmatpush1.xpose.msra.mxu0 0.0
        %1912 = vmatprep.subr.mxu0 0.0
        %1913 = vmatpush1.xpose.msra.mxu0 0.0
        %1914 = vmatprep.mubr.f32.mxu0 0.0
        %1915 = vmatmul.mubr.f32.gmra.mrb[0].mxu0 %v1846
        %v1916 = vpop.f32.mrb[0].mxu0
        %v1917 = vadd.f32 0.0, %v1916
        %v1918 = vpop.f32.mrb[0].mxu0
        %1919 = vdwg.mxu0
        %v1920 = vsel %vm909, %v1839, -inf
        %1921 = vmax.xlane.f32.xlu0 %v1920
        %v1922 = vpop.xlane.xlu0 %1921
        %v1923 = vsel %vm909, %v1917, -inf
        %1924 = vmax.xlane.f32.xlu0 %v1923
        %v1925 = vpop.xlane.xlu0 %1924
        %v1926 = vsub.f32 %v1839, %v1922
        %v1927 = vsub.f32 %v1917, %v1925
        %v1928 = vmul.f32 %v1926, 1.442695
        %v1929 = vpow.pop %v1928
        %v1930 = vmul.f32 %v1927, 1.442695
        %v1931 = vpow.pop %v1930
        %v1932 = vsel %vm909, %v1929, 0.0
        %1933 = vadd.xlane.f32.xlu0 %v1932
        %v1934 = vpop.xlane.xlu0 %1933
        %v1935 = vsel %vm909, %v1931, 0.0
        %1936 = vadd.xlane.f32.xlu0 %v1935
        %v1937 = vpop.xlane.xlu0 %1936
        %v1938 = vrcp.pop %v1934
        %v1939 = vrcp.pop %v1937
        %v1940 = vmul.f32 %v1929, %v1938
        %v1941 = vmul.f32 %v1931, %v1939
        %1942 = vrot.lane.b32.xlu0 %v748, 116
        %v1943 = vpop.permute.xlu0 %1942
        %v1946 = vsel %vm909, %v1940, 0
        %1948 = vmatprep.subr.mxu0 0.0
        %1949 = vmatpush1.msra.mxu0 %v1943
        %1950 = vmatprep.subr.mxu0 0.0
        %1951 = vmatpush1.msra.mxu0 0.0
        %1952 = vmatprep.subr.mxu0 0.0
        %1953 = vmatpush1.msra.mxu0 0.0
        %1954 = vmatprep.subr.mxu0 0.0
        %1955 = vmatpush1.msra.mxu0 0.0
        %1956 = vmatprep.subr.mxu0 0.0
        %1957 = vmatpush1.msra.mxu0 0.0
        %1958 = vmatprep.subr.mxu0 0.0
        %1959 = vmatpush1.msra.mxu0 0.0
        %1960 = vmatprep.subr.mxu0 0.0
        %1961 = vmatpush1.msra.mxu0 0.0
        %1962 = vmatprep.subr.mxu0 0.0
        %1963 = vmatpush1.msra.mxu0 0.0
        %1964 = vmatprep.subr.mxu0 0.0
        %1965 = vmatpush1.msra.mxu0 0.0
        %1966 = vmatprep.subr.mxu0 0.0
        %1967 = vmatpush1.msra.mxu0 0.0
        %1968 = vmatprep.subr.mxu0 0.0
        %1969 = vmatpush1.msra.mxu0 0.0
        %1970 = vmatprep.subr.mxu0 0.0
        %1971 = vmatpush1.msra.mxu0 0.0
        %1972 = vmatprep.subr.mxu0 0.0
        %1973 = vmatpush1.msra.mxu0 0.0
        %1974 = vmatprep.subr.mxu0 0.0
        %1975 = vmatpush1.msra.mxu0 0.0
        %1976 = vmatprep.subr.mxu0 0.0
        %1977 = vmatpush1.msra.mxu0 0.0
        %1978 = vmatprep.subr.mxu0 0.0
        %1979 = vmatpush1.msra.mxu0 0.0
        %1980 = vmatprep.subr.mxu0 0.0
        %1981 = vmatpush1.msra.mxu0 0.0
        %1982 = vmatprep.subr.mxu0 0.0
        %1983 = vmatpush1.msra.mxu0 0.0
        %1984 = vmatprep.subr.mxu0 0.0
        %1985 = vmatpush1.msra.mxu0 0.0
        %1986 = vmatprep.subr.mxu0 0.0
        %1987 = vmatpush1.msra.mxu0 0.0
        %1988 = vmatprep.subr.mxu0 0.0
        %1989 = vmatpush1.msra.mxu0 0.0
        %1990 = vmatprep.subr.mxu0 0.0
        %1991 = vmatpush1.msra.mxu0 0.0
        %1992 = vmatprep.subr.mxu0 0.0
        %1993 = vmatpush1.msra.mxu0 0.0
        %1994 = vmatprep.subr.mxu0 0.0
        %1995 = vmatpush1.msra.mxu0 0.0
        %1996 = vmatprep.subr.mxu0 0.0
        %1997 = vmatpush1.msra.mxu0 0.0
        %1998 = vmatprep.subr.mxu0 0.0
        %1999 = vmatpush1.msra.mxu0 0.0
        %2000 = vmatprep.subr.mxu0 0.0
        %2001 = vmatpush1.msra.mxu0 0.0
        %2002 = vmatprep.subr.mxu0 0.0
        %2003 = vmatpush1.msra.mxu0 0.0
        %2004 = vmatprep.subr.mxu0 0.0
        %2005 = vmatpush1.msra.mxu0 0.0
        %2006 = vmatprep.subr.mxu0 0.0
        %2007 = vmatpush1.msra.mxu0 0.0
        %2008 = vmatprep.subr.mxu0 0.0
        %2009 = vmatpush1.msra.mxu0 0.0
        %2010 = vmatprep.subr.mxu0 0.0
        %2011 = vmatpush1.msra.mxu0 0.0
        %2012 = vmatprep.mubr.f32.mxu0 0.0
        %2013 = vmatmul.mubr.f32.gmra.mrb[0].mxu0 %v1946
        %v2014 = vpop.f32.mrb[0].mxu0
        %v2015 = vadd.f32 0.0, %v2014
        %v2016 = vpop.f32.mrb[0].mxu0
        %2017 = vdwg.mxu0
        %2018 = vrot.lane.b32.xlu0 %v753, 116
        %v2019 = vpop.permute.xlu0 %2018
        %v2022 = vsel %vm909, %v1941, 0
        %2024 = vmatprep.subr.mxu0 0.0
        %2025 = vmatpush1.msra.mxu0 %v2019
        %2026 = vmatprep.subr.mxu0 0.0
        %2027 = vmatpush1.msra.mxu0 0.0
        %2028 = vmatprep.subr.mxu0 0.0
        %2029 = vmatpush1.msra.mxu0 0.0
        %2030 = vmatprep.subr.mxu0 0.0
        %2031 = vmatpush1.msra.mxu0 0.0
        %2032 = vmatprep.subr.mxu0 0.0
        %2033 = vmatpush1.msra.mxu0 0.0
        %2034 = vmatprep.subr.mxu0 0.0
        %2035 = vmatpush1.msra.mxu0 0.0
        %2036 = vmatprep.subr.mxu0 0.0
        %2037 = vmatpush1.msra.mxu0 0.0
        %2038 = vmatprep.subr.mxu0 0.0
        %2039 = vmatpush1.msra.mxu0 0.0
        %2040 = vmatprep.subr.mxu0 0.0
        %2041 = vmatpush1.msra.mxu0 0.0
        %2042 = vmatprep.subr.mxu0 0.0
        %2043 = vmatpush1.msra.mxu0 0.0
        %2044 = vmatprep.subr.mxu0 0.0
        %2045 = vmatpush1.msra.mxu0 0.0
        %2046 = vmatprep.subr.mxu0 0.0
        %2047 = vmatpush1.msra.mxu0 0.0
        %2048 = vmatprep.subr.mxu0 0.0
        %2049 = vmatpush1.msra.mxu0 0.0
        %2050 = vmatprep.subr.mxu0 0.0
        %2051 = vmatpush1.msra.mxu0 0.0
        %2052 = vmatprep.subr.mxu0 0.0
        %2053 = vmatpush1.msra.mxu0 0.0
        %2054 = vmatprep.subr.mxu0 0.0
        %2055 = vmatpush1.msra.mxu0 0.0
        %2056 = vmatprep.subr.mxu0 0.0
        %2057 = vmatpush1.msra.mxu0 0.0
        %2058 = vmatprep.subr.mxu0 0.0
        %2059 = vmatpush1.msra.mxu0 0.0
        %2060 = vmatprep.subr.mxu0 0.0
        %2061 = vmatpush1.msra.mxu0 0.0
        %2062 = vmatprep.subr.mxu0 0.0
        %2063 = vmatpush1.msra.mxu0 0.0
        %2064 = vmatprep.subr.mxu0 0.0
        %2065 = vmatpush1.msra.mxu0 0.0
        %2066 = vmatprep.subr.mxu0 0.0
        %2067 = vmatpush1.msra.mxu0 0.0
        %2068 = vmatprep.subr.mxu0 0.0
        %2069 = vmatpush1.msra.mxu0 0.0
        %2070 = vmatprep.subr.mxu0 0.0
        %2071 = vmatpush1.msra.mxu0 0.0
        %2072 = vmatprep.subr.mxu0 0.0
        %2073 = vmatpush1.msra.mxu0 0.0
        %2074 = vmatprep.subr.mxu0 0.0
        %2075 = vmatpush1.msra.mxu0 0.0
        %2076 = vmatprep.subr.mxu0 0.0
        %2077 = vmatpush1.msra.mxu0 0.0
        %2078 = vmatprep.subr.mxu0 0.0
        %2079 = vmatpush1.msra.mxu0 0.0
        %2080 = vmatprep.subr.mxu0 0.0
        %2081 = vmatpush1.msra.mxu0 0.0
        %2082 = vmatprep.subr.mxu0 0.0
        %2083 = vmatpush1.msra.mxu0 0.0
        %2084 = vmatprep.subr.mxu0 0.0
        %2085 = vmatpush1.msra.mxu0 0.0
        %2086 = vmatprep.subr.mxu0 0.0
        %2087 = vmatpush1.msra.mxu0 0.0
        %2088 = vmatprep.mubr.f32.mxu0 0.0
        %2089 = vmatmul.mubr.f32.gmra.mrb[0].mxu0 %v2022
        %v2090 = vpop.f32.mrb[0].mxu0
        %v2091 = vadd.f32 0.0, %v2090
        %v2092 = vpop.f32.mrb[0].mxu0
        %2093 = vdwg.mxu0
        %2096 = vrot.lane.b32.xlu0 %v2015, 12
        %v2097 = vpop.permute.xlu0 %2096
        %2098 = vrot.lane.b32.xlu0 %v2091, 12
        %v2099 = vpop.permute.xlu0 %2098
        %vm2102 = vcmask 130144
        %2103 = vst.msk [vmem:[#allocation2] sm:$0xff] %vm2102, %v2097
        %2104 = vst.msk [vmem:[#allocation2 + $0x8] sm:$0xff] %vm2102, %v2099
        %2105 = vrot.lane.b32.xlu0 %v576, 112
        %v2106 = vpop.permute.xlu0 %2105
        %2107 = vrot.lane.b32.xlu0 %v662, 112
        %v2108 = vpop.permute.xlu0 %2107
        %v2109 = vsel %vm756, %v2106, 0
        %v2111 = vsel %vm756, %v2108, 0
        %2113 = vmatprep.subr.mxu0 0.0
        %2114 = vmatpush1.xpose.msra.mxu0 %v2111
        %2115 = vmatprep.subr.mxu0 0.0
        %2116 = vmatpush1.xpose.msra.mxu0 0.0
        %2117 = vmatprep.subr.mxu0 0.0
        %2118 = vmatpush1.xpose.msra.mxu0 0.0
        %2119 = vmatprep.subr.mxu0 0.0
        %2120 = vmatpush1.xpose.msra.mxu0 0.0
        %2121 = vmatprep.subr.mxu0 0.0
        %2122 = vmatpush1.xpose.msra.mxu0 0.0
        %2123 = vmatprep.subr.mxu0 0.0
        %2124 = vmatpush1.xpose.msra.mxu0 0.0
        %2125 = vmatprep.subr.mxu0 0.0
        %2126 = vmatpush1.xpose.msra.mxu0 0.0
        %2127 = vmatprep.subr.mxu0 0.0
        %2128 = vmatpush1.xpose.msra.mxu0 0.0
        %2129 = vmatprep.subr.mxu0 0.0
        %2130 = vmatpush1.xpose.msra.mxu0 0.0
        %2131 = vmatprep.subr.mxu0 0.0
        %2132 = vmatpush1.xpose.msra.mxu0 0.0
        %2133 = vmatprep.subr.mxu0 0.0
        %2134 = vmatpush1.xpose.msra.mxu0 0.0
        %2135 = vmatprep.subr.mxu0 0.0
        %2136 = vmatpush1.xpose.msra.mxu0 0.0
        %2137 = vmatprep.subr.mxu0 0.0
        %2138 = vmatpush1.xpose.msra.mxu0 0.0
        %2139 = vmatprep.subr.mxu0 0.0
        %2140 = vmatpush1.xpose.msra.mxu0 0.0
        %2141 = vmatprep.subr.mxu0 0.0
        %2142 = vmatpush1.xpose.msra.mxu0 0.0
        %2143 = vmatprep.subr.mxu0 0.0
        %2144 = vmatpush1.xpose.msra.mxu0 0.0
        %2145 = vmatprep.subr.mxu0 0.0
        %2146 = vmatpush1.xpose.msra.mxu0 0.0
        %2147 = vmatprep.subr.mxu0 0.0
        %2148 = vmatpush1.xpose.msra.mxu0 0.0
        %2149 = vmatprep.subr.mxu0 0.0
        %2150 = vmatpush1.xpose.msra.mxu0 0.0
        %2151 = vmatprep.subr.mxu0 0.0
        %2152 = vmatpush1.xpose.msra.mxu0 0.0
        %2153 = vmatprep.subr.mxu0 0.0
        %2154 = vmatpush1.xpose.msra.mxu0 0.0
        %2155 = vmatprep.subr.mxu0 0.0
        %2156 = vmatpush1.xpose.msra.mxu0 0.0
        %2157 = vmatprep.subr.mxu0 0.0
        %2158 = vmatpush1.xpose.msra.mxu0 0.0
        %2159 = vmatprep.subr.mxu0 0.0
        %2160 = vmatpush1.xpose.msra.mxu0 0.0
        %2161 = vmatprep.subr.mxu0 0.0
        %2162 = vmatpush1.xpose.msra.mxu0 0.0
        %2163 = vmatprep.subr.mxu0 0.0
        %2164 = vmatpush1.xpose.msra.mxu0 0.0
        %2165 = vmatprep.subr.mxu0 0.0
        %2166 = vmatpush1.xpose.msra.mxu0 0.0
        %2167 = vmatprep.subr.mxu0 0.0
        %2168 = vmatpush1.xpose.msra.mxu0 0.0
        %2169 = vmatprep.subr.mxu0 0.0
        %2170 = vmatpush1.xpose.msra.mxu0 0.0
        %2171 = vmatprep.subr.mxu0 0.0
        %2172 = vmatpush1.xpose.msra.mxu0 0.0
        %2173 = vmatprep.subr.mxu0 0.0
        %2174 = vmatpush1.xpose.msra.mxu0 0.0
        %2175 = vmatprep.subr.mxu0 0.0
        %2176 = vmatpush1.xpose.msra.mxu0 0.0
        %2177 = vmatprep.mubr.f32.mxu0 0.0
        %2178 = vmatmul.mubr.f32.gmra.mrb[0].mxu0 %v2109
        %v2179 = vpop.f32.mrb[0].mxu0
        %v2180 = vadd.f32 0.0, %v2179
        %v2181 = vpop.f32.mrb[0].mxu0
        %2182 = vdwg.mxu0
        %2183 = vrot.lane.b32.xlu0 %v577, 112
        %v2184 = vpop.permute.xlu0 %2183
        %2185 = vrot.lane.b32.xlu0 %v667, 112
        %v2186 = vpop.permute.xlu0 %2185
        %v2187 = vsel %vm756, %v2184, 0
        %v2189 = vsel %vm756, %v2186, 0
        %2191 = vmatprep.subr.mxu0 0.0
        %2192 = vmatpush1.xpose.msra.mxu0 %v2189
        %2193 = vmatprep.subr.mxu0 0.0
        %2194 = vmatpush1.xpose.msra.mxu0 0.0
        %2195 = vmatprep.subr.mxu0 0.0
        %2196 = vmatpush1.xpose.msra.mxu0 0.0
        %2197 = vmatprep.subr.mxu0 0.0
        %2198 = vmatpush1.xpose.msra.mxu0 0.0
        %2199 = vmatprep.subr.mxu0 0.0
        %2200 = vmatpush1.xpose.msra.mxu0 0.0
        %2201 = vmatprep.subr.mxu0 0.0
        %2202 = vmatpush1.xpose.msra.mxu0 0.0
        %2203 = vmatprep.subr.mxu0 0.0
        %2204 = vmatpush1.xpose.msra.mxu0 0.0
        %2205 = vmatprep.subr.mxu0 0.0
        %2206 = vmatpush1.xpose.msra.mxu0 0.0
        %2207 = vmatprep.subr.mxu0 0.0
        %2208 = vmatpush1.xpose.msra.mxu0 0.0
        %2209 = vmatprep.subr.mxu0 0.0
        %2210 = vmatpush1.xpose.msra.mxu0 0.0
        %2211 = vmatprep.subr.mxu0 0.0
        %2212 = vmatpush1.xpose.msra.mxu0 0.0
        %2213 = vmatprep.subr.mxu0 0.0
        %2214 = vmatpush1.xpose.msra.mxu0 0.0
        %2215 = vmatprep.subr.mxu0 0.0
        %2216 = vmatpush1.xpose.msra.mxu0 0.0
        %2217 = vmatprep.subr.mxu0 0.0
        %2218 = vmatpush1.xpose.msra.mxu0 0.0
        %2219 = vmatprep.subr.mxu0 0.0
        %2220 = vmatpush1.xpose.msra.mxu0 0.0
        %2221 = vmatprep.subr.mxu0 0.0
        %2222 = vmatpush1.xpose.msra.mxu0 0.0
        %2223 = vmatprep.subr.mxu0 0.0
        %2224 = vmatpush1.xpose.msra.mxu0 0.0
        %2225 = vmatprep.subr.mxu0 0.0
        %2226 = vmatpush1.xpose.msra.mxu0 0.0
        %2227 = vmatprep.subr.mxu0 0.0
        %2228 = vmatpush1.xpose.msra.mxu0 0.0
        %2229 = vmatprep.subr.mxu0 0.0
        %2230 = vmatpush1.xpose.msra.mxu0 0.0
        %2231 = vmatprep.subr.mxu0 0.0
        %2232 = vmatpush1.xpose.msra.mxu0 0.0
        %2233 = vmatprep.subr.mxu0 0.0
        %2234 = vmatpush1.xpose.msra.mxu0 0.0
        %2235 = vmatprep.subr.mxu0 0.0
        %2236 = vmatpush1.xpose.msra.mxu0 0.0
        %2237 = vmatprep.subr.mxu0 0.0
        %2238 = vmatpush1.xpose.msra.mxu0 0.0
        %2239 = vmatprep.subr.mxu0 0.0
        %2240 = vmatpush1.xpose.msra.mxu0 0.0
        %2241 = vmatprep.subr.mxu0 0.0
        %2242 = vmatpush1.xpose.msra.mxu0 0.0
        %2243 = vmatprep.subr.mxu0 0.0
        %2244 = vmatpush1.xpose.msra.mxu0 0.0
        %2245 = vmatprep.subr.mxu0 0.0
        %2246 = vmatpush1.xpose.msra.mxu0 0.0
        %2247 = vmatprep.subr.mxu0 0.0
        %2248 = vmatpush1.xpose.msra.mxu0 0.0
        %2249 = vmatprep.subr.mxu0 0.0
        %2250 = vmatpush1.xpose.msra.mxu0 0.0
        %2251 = vmatprep.subr.mxu0 0.0
        %2252 = vmatpush1.xpose.msra.mxu0 0.0
        %2253 = vmatprep.subr.mxu0 0.0
        %2254 = vmatpush1.xpose.msra.mxu0 0.0
        %2255 = vmatprep.mubr.f32.mxu0 0.0
        %2256 = vmatmul.mubr.f32.gmra.mrb[0].mxu0 %v2187
        %v2257 = vpop.f32.mrb[0].mxu0
        %v2258 = vadd.f32 0.0, %v2257
        %v2259 = vpop.f32.mrb[0].mxu0
        %2260 = vdwg.mxu0
        %v2261 = vsel %vm909, %v2180, -inf
        %2262 = vmax.xlane.f32.xlu0 %v2261
        %v2263 = vpop.xlane.xlu0 %2262
        %v2264 = vsel %vm909, %v2258, -inf
        %2265 = vmax.xlane.f32.xlu0 %v2264
        %v2266 = vpop.xlane.xlu0 %2265
        %v2267 = vsub.f32 %v2180, %v2263
        %v2268 = vsub.f32 %v2258, %v2266
        %v2269 = vmul.f32 %v2267, 1.442695
        %v2270 = vpow.pop %v2269
        %v2271 = vmul.f32 %v2268, 1.442695
        %v2272 = vpow.pop %v2271
        %v2273 = vsel %vm909, %v2270, 0.0
        %2274 = vadd.xlane.f32.xlu0 %v2273
        %v2275 = vpop.xlane.xlu0 %2274
        %v2276 = vsel %vm909, %v2272, 0.0
        %2277 = vadd.xlane.f32.xlu0 %v2276
        %v2278 = vpop.xlane.xlu0 %2277
        %v2279 = vrcp.pop %v2275
        %v2280 = vrcp.pop %v2278
        %v2281 = vmul.f32 %v2270, %v2279
        %v2282 = vmul.f32 %v2272, %v2280
        %2283 = vrot.lane.b32.xlu0 %v748, 112
        %v2284 = vpop.permute.xlu0 %2283
        %v2287 = vsel %vm909, %v2281, 0
        %2289 = vmatprep.subr.mxu0 0.0
        %2290 = vmatpush1.msra.mxu0 %v2284
        %2291 = vmatprep.subr.mxu0 0.0
        %2292 = vmatpush1.msra.mxu0 0.0
        %2293 = vmatprep.subr.mxu0 0.0
        %2294 = vmatpush1.msra.mxu0 0.0
        %2295 = vmatprep.subr.mxu0 0.0
        %2296 = vmatpush1.msra.mxu0 0.0
        %2297 = vmatprep.subr.mxu0 0.0
        %2298 = vmatpush1.msra.mxu0 0.0
        %2299 = vmatprep.subr.mxu0 0.0
        %2300 = vmatpush1.msra.mxu0 0.0
        %2301 = vmatprep.subr.mxu0 0.0
        %2302 = vmatpush1.msra.mxu0 0.0
        %2303 = vmatprep.subr.mxu0 0.0
        %2304 = vmatpush1.msra.mxu0 0.0
        %2305 = vmatprep.subr.mxu0 0.0
        %2306 = vmatpush1.msra.mxu0 0.0
        %2307 = vmatprep.subr.mxu0 0.0
        %2308 = vmatpush1.msra.mxu0 0.0
        %2309 = vmatprep.subr.mxu0 0.0
        %2310 = vmatpush1.msra.mxu0 0.0
        %2311 = vmatprep.subr.mxu0 0.0
        %2312 = vmatpush1.msra.mxu0 0.0
        %2313 = vmatprep.subr.mxu0 0.0
        %2314 = vmatpush1.msra.mxu0 0.0
        %2315 = vmatprep.subr.mxu0 0.0
        %2316 = vmatpush1.msra.mxu0 0.0
        %2317 = vmatprep.subr.mxu0 0.0
        %2318 = vmatpush1.msra.mxu0 0.0
        %2319 = vmatprep.subr.mxu0 0.0
        %2320 = vmatpush1.msra.mxu0 0.0
        %2321 = vmatprep.subr.mxu0 0.0
        %2322 = vmatpush1.msra.mxu0 0.0
        %2323 = vmatprep.subr.mxu0 0.0
        %2324 = vmatpush1.msra.mxu0 0.0
        %2325 = vmatprep.subr.mxu0 0.0
        %2326 = vmatpush1.msra.mxu0 0.0
        %2327 = vmatprep.subr.mxu0 0.0
        %2328 = vmatpush1.msra.mxu0 0.0
        %2329 = vmatprep.subr.mxu0 0.0
        %2330 = vmatpush1.msra.mxu0 0.0
        %2331 = vmatprep.subr.mxu0 0.0
        %2332 = vmatpush1.msra.mxu0 0.0
        %2333 = vmatprep.subr.mxu0 0.0
        %2334 = vmatpush1.msra.mxu0 0.0
        %2335 = vmatprep.subr.mxu0 0.0
        %2336 = vmatpush1.msra.mxu0 0.0
        %2337 = vmatprep.subr.mxu0 0.0
        %2338 = vmatpush1.msra.mxu0 0.0
        %2339 = vmatprep.subr.mxu0 0.0
        %2340 = vmatpush1.msra.mxu0 0.0
        %2341 = vmatprep.subr.mxu0 0.0
        %2342 = vmatpush1.msra.mxu0 0.0
        %2343 = vmatprep.subr.mxu0 0.0
        %2344 = vmatpush1.msra.mxu0 0.0
        %2345 = vmatprep.subr.mxu0 0.0
        %2346 = vmatpush1.msra.mxu0 0.0
        %2347 = vmatprep.subr.mxu0 0.0
        %2348 = vmatpush1.msra.mxu0 0.0
        %2349 = vmatprep.subr.mxu0 0.0
        %2350 = vmatpush1.msra.mxu0 0.0
        %2351 = vmatprep.subr.mxu0 0.0
        %2352 = vmatpush1.msra.mxu0 0.0
        %2353 = vmatprep.mubr.f32.mxu0 0.0
        %2354 = vmatmul.mubr.f32.gmra.mrb[0].mxu0 %v2287
        %v2355 = vpop.f32.mrb[0].mxu0
        %v2356 = vadd.f32 0.0, %v2355
        %v2357 = vpop.f32.mrb[0].mxu0
        %2358 = vdwg.mxu0
        %2359 = vrot.lane.b32.xlu0 %v753, 112
        %v2360 = vpop.permute.xlu0 %2359
        %v2363 = vsel %vm909, %v2282, 0
        %2365 = vmatprep.subr.mxu0 0.0
        %2366 = vmatpush1.msra.mxu0 %v2360
        %2367 = vmatprep.subr.mxu0 0.0
        %2368 = vmatpush1.msra.mxu0 0.0
        %2369 = vmatprep.subr.mxu0 0.0
        %2370 = vmatpush1.msra.mxu0 0.0
        %2371 = vmatprep.subr.mxu0 0.0
        %2372 = vmatpush1.msra.mxu0 0.0
        %2373 = vmatprep.subr.mxu0 0.0
        %2374 = vmatpush1.msra.mxu0 0.0
        %2375 = vmatprep.subr.mxu0 0.0
        %2376 = vmatpush1.msra.mxu0 0.0
        %2377 = vmatprep.subr.mxu0 0.0
        %2378 = vmatpush1.msra.mxu0 0.0
        %2379 = vmatprep.subr.mxu0 0.0
        %2380 = vmatpush1.msra.mxu0 0.0
        %2381 = vmatprep.subr.mxu0 0.0
        %2382 = vmatpush1.msra.mxu0 0.0
        %2383 = vmatprep.subr.mxu0 0.0
        %2384 = vmatpush1.msra.mxu0 0.0
        %2385 = vmatprep.subr.mxu0 0.0
        %2386 = vmatpush1.msra.mxu0 0.0
        %2387 = vmatprep.subr.mxu0 0.0
        %2388 = vmatpush1.msra.mxu0 0.0
        %2389 = vmatprep.subr.mxu0 0.0
        %2390 = vmatpush1.msra.mxu0 0.0
        %2391 = vmatprep.subr.mxu0 0.0
        %2392 = vmatpush1.msra.mxu0 0.0
        %2393 = vmatprep.subr.mxu0 0.0
        %2394 = vmatpush1.msra.mxu0 0.0
        %2395 = vmatprep.subr.mxu0 0.0
        %2396 = vmatpush1.msra.mxu0 0.0
        %2397 = vmatprep.subr.mxu0 0.0
        %2398 = vmatpush1.msra.mxu0 0.0
        %2399 = vmatprep.subr.mxu0 0.0
        %2400 = vmatpush1.msra.mxu0 0.0
        %2401 = vmatprep.subr.mxu0 0.0
        %2402 = vmatpush1.msra.mxu0 0.0
        %2403 = vmatprep.subr.mxu0 0.0
        %2404 = vmatpush1.msra.mxu0 0.0
        %2405 = vmatprep.subr.mxu0 0.0
        %2406 = vmatpush1.msra.mxu0 0.0
        %2407 = vmatprep.subr.mxu0 0.0
        %2408 = vmatpush1.msra.mxu0 0.0
        %2409 = vmatprep.subr.mxu0 0.0
        %2410 = vmatpush1.msra.mxu0 0.0
        %2411 = vmatprep.subr.mxu0 0.0
        %2412 = vmatpush1.msra.mxu0 0.0
        %2413 = vmatprep.subr.mxu0 0.0
        %2414 = vmatpush1.msra.mxu0 0.0
        %2415 = vmatprep.subr.mxu0 0.0
        %2416 = vmatpush1.msra.mxu0 0.0
        %2417 = vmatprep.subr.mxu0 0.0
        %2418 = vmatpush1.msra.mxu0 0.0
        %2419 = vmatprep.subr.mxu0 0.0
        %2420 = vmatpush1.msra.mxu0 0.0
        %2421 = vmatprep.subr.mxu0 0.0
        %2422 = vmatpush1.msra.mxu0 0.0
        %2423 = vmatprep.subr.mxu0 0.0
        %2424 = vmatpush1.msra.mxu0 0.0
        %2425 = vmatprep.subr.mxu0 0.0
        %2426 = vmatpush1.msra.mxu0 0.0
        %2427 = vmatprep.subr.mxu0 0.0
        %2428 = vmatpush1.msra.mxu0 0.0
        %2429 = vmatprep.mubr.f32.mxu0 0.0
        %2430 = vmatmul.mubr.f32.gmra.mrb[0].mxu0 %v2363
        %v2431 = vpop.f32.mrb[0].mxu0
        %v2432 = vadd.f32 0.0, %v2431
        %v2433 = vpop.f32.mrb[0].mxu0
        %2434 = vdwg.mxu0
        %2437 = vrot.lane.b32.xlu0 %v2356, 16
        %v2438 = vpop.permute.xlu0 %2437
        %2439 = vrot.lane.b32.xlu0 %v2432, 16
        %v2440 = vpop.permute.xlu0 %2439
        %vm2443 = vcmask 162944
        %2444 = vst.msk [vmem:[#allocation2] sm:$0xff] %vm2443, %v2438
        %2445 = vst.msk [vmem:[#allocation2 + $0x8] sm:$0xff] %vm2443, %v2440
        %2446 = vrot.lane.b32.xlu0 %v576, 108
        %v2447 = vpop.permute.xlu0 %2446
        %2448 = vrot.lane.b32.xlu0 %v662, 108
        %v2449 = vpop.permute.xlu0 %2448
        %v2450 = vsel %vm756, %v2447, 0
        %v2452 = vsel %vm756, %v2449, 0
        %2454 = vmatprep.subr.mxu0 0.0
        %2455 = vmatpush1.xpose.msra.mxu0 %v2452
        %2456 = vmatprep.subr.mxu0 0.0
        %2457 = vmatpush1.xpose.msra.mxu0 0.0
        %2458 = vmatprep.subr.mxu0 0.0
        %2459 = vmatpush1.xpose.msra.mxu0 0.0
        %2460 = vmatprep.subr.mxu0 0.0
        %2461 = vmatpush1.xpose.msra.mxu0 0.0
        %2462 = vmatprep.subr.mxu0 0.0
        %2463 = vmatpush1.xpose.msra.mxu0 0.0
        %2464 = vmatprep.subr.mxu0 0.0
        %2465 = vmatpush1.xpose.msra.mxu0 0.0
        %2466 = vmatprep.subr.mxu0 0.0
        %2467 = vmatpush1.xpose.msra.mxu0 0.0
        %2468 = vmatprep.subr.mxu0 0.0
        %2469 = vmatpush1.xpose.msra.mxu0 0.0
        %2470 = vmatprep.subr.mxu0 0.0
        %2471 = vmatpush1.xpose.msra.mxu0 0.0
        %2472 = vmatprep.subr.mxu0 0.0
        %2473 = vmatpush1.xpose.msra.mxu0 0.0
        %2474 = vmatprep.subr.mxu0 0.0
        %2475 = vmatpush1.xpose.msra.mxu0 0.0
        %2476 = vmatprep.subr.mxu0 0.0
        %2477 = vmatpush1.xpose.msra.mxu0 0.0
        %2478 = vmatprep.subr.mxu0 0.0
        %2479 = vmatpush1.xpose.msra.mxu0 0.0
        %2480 = vmatprep.subr.mxu0 0.0
        %2481 = vmatpush1.xpose.msra.mxu0 0.0
        %2482 = vmatprep.subr.mxu0 0.0
        %2483 = vmatpush1.xpose.msra.mxu0 0.0
        %2484 = vmatprep.subr.mxu0 0.0
        %2485 = vmatpush1.xpose.msra.mxu0 0.0
        %2486 = vmatprep.subr.mxu0 0.0
        %2487 = vmatpush1.xpose.msra.mxu0 0.0
        %2488 = vmatprep.subr.mxu0 0.0
        %2489 = vmatpush1.xpose.msra.mxu0 0.0
        %2490 = vmatprep.subr.mxu0 0.0
        %2491 = vmatpush1.xpose.msra.mxu0 0.0
        %2492 = vmatprep.subr.mxu0 0.0
        %2493 = vmatpush1.xpose.msra.mxu0 0.0
        %2494 = vmatprep.subr.mxu0 0.0
        %2495 = vmatpush1.xpose.msra.mxu0 0.0
        %2496 = vmatprep.subr.mxu0 0.0
        %2497 = vmatpush1.xpose.msra.mxu0 0.0
        %2498 = vmatprep.subr.mxu0 0.0
        %2499 = vmatpush1.xpose.msra.mxu0 0.0
        %2500 = vmatprep.subr.mxu0 0.0
        %2501 = vmatpush1.xpose.msra.mxu0 0.0
        %2502 = vmatprep.subr.mxu0 0.0
        %2503 = vmatpush1.xpose.msra.mxu0 0.0
        %2504 = vmatprep.subr.mxu0 0.0
        %2505 = vmatpush1.xpose.msra.mxu0 0.0
        %2506 = vmatprep.subr.mxu0 0.0
        %2507 = vmatpush1.xpose.msra.mxu0 0.0
        %2508 = vmatprep.subr.mxu0 0.0
        %2509 = vmatpush1.xpose.msra.mxu0 0.0
        %2510 = vmatprep.subr.mxu0 0.0
        %2511 = vmatpush1.xpose.msra.mxu0 0.0
        %2512 = vmatprep.subr.mxu0 0.0
        %2513 = vmatpush1.xpose.msra.mxu0 0.0
        %2514 = vmatprep.subr.mxu0 0.0
        %2515 = vmatpush1.xpose.msra.mxu0 0.0
        %2516 = vmatprep.subr.mxu0 0.0
        %2517 = vmatpush1.xpose.msra.mxu0 0.0
        %2518 = vmatprep.mubr.f32.mxu0 0.0
        %2519 = vmatmul.mubr.f32.gmra.mrb[0].mxu0 %v2450
        %v2520 = vpop.f32.mrb[0].mxu0
        %v2521 = vadd.f32 0.0, %v2520
        %v2522 = vpop.f32.mrb[0].mxu0
        %2523 = vdwg.mxu0
        %2524 = vrot.lane.b32.xlu0 %v577, 108
        %v2525 = vpop.permute.xlu0 %2524
        %2526 = vrot.lane.b32.xlu0 %v667, 108
        %v2527 = vpop.permute.xlu0 %2526
        %v2528 = vsel %vm756, %v2525, 0
        %v2530 = vsel %vm756, %v2527, 0
        %2532 = vmatprep.subr.mxu0 0.0
        %2533 = vmatpush1.xpose.msra.mxu0 %v2530
        %2534 = vmatprep.subr.mxu0 0.0
        %2535 = vmatpush1.xpose.msra.mxu0 0.0
        %2536 = vmatprep.subr.mxu0 0.0
        %2537 = vmatpush1.xpose.msra.mxu0 0.0
        %2538 = vmatprep.subr.mxu0 0.0
        %2539 = vmatpush1.xpose.msra.mxu0 0.0
        %2540 = vmatprep.subr.mxu0 0.0
        %2541 = vmatpush1.xpose.msra.mxu0 0.0
        %2542 = vmatprep.subr.mxu0 0.0
        %2543 = vmatpush1.xpose.msra.mxu0 0.0
        %2544 = vmatprep.subr.mxu0 0.0
        %2545 = vmatpush1.xpose.msra.mxu0 0.0
        %2546 = vmatprep.subr.mxu0 0.0
        %2547 = vmatpush1.xpose.msra.mxu0 0.0
        %2548 = vmatprep.subr.mxu0 0.0
        %2549 = vmatpush1.xpose.msra.mxu0 0.0
        %2550 = vmatprep.subr.mxu0 0.0
        %2551 = vmatpush1.xpose.msra.mxu0 0.0
        %2552 = vmatprep.subr.mxu0 0.0
        %2553 = vmatpush1.xpose.msra.mxu0 0.0
        %2554 = vmatprep.subr.mxu0 0.0
        %2555 = vmatpush1.xpose.msra.mxu0 0.0
        %2556 = vmatprep.subr.mxu0 0.0
        %2557 = vmatpush1.xpose.msra.mxu0 0.0
        %2558 = vmatprep.subr.mxu0 0.0
        %2559 = vmatpush1.xpose.msra.mxu0 0.0
        %2560 = vmatprep.subr.mxu0 0.0
        %2561 = vmatpush1.xpose.msra.mxu0 0.0
        %2562 = vmatprep.subr.mxu0 0.0
        %2563 = vmatpush1.xpose.msra.mxu0 0.0
        %2564 = vmatprep.subr.mxu0 0.0
        %2565 = vmatpush1.xpose.msra.mxu0 0.0
        %2566 = vmatprep.subr.mxu0 0.0
        %2567 = vmatpush1.xpose.msra.mxu0 0.0
        %2568 = vmatprep.subr.mxu0 0.0
        %2569 = vmatpush1.xpose.msra.mxu0 0.0
        %2570 = vmatprep.subr.mxu0 0.0
        %2571 = vmatpush1.xpose.msra.mxu0 0.0
        %2572 = vmatprep.subr.mxu0 0.0
        %2573 = vmatpush1.xpose.msra.mxu0 0.0
        %2574 = vmatprep.subr.mxu0 0.0
        %2575 = vmatpush1.xpose.msra.mxu0 0.0
        %2576 = vmatprep.subr.mxu0 0.0
        %2577 = vmatpush1.xpose.msra.mxu0 0.0
        %2578 = vmatprep.subr.mxu0 0.0
        %2579 = vmatpush1.xpose.msra.mxu0 0.0
        %2580 = vmatprep.subr.mxu0 0.0
        %2581 = vmatpush1.xpose.msra.mxu0 0.0
        %2582 = vmatprep.subr.mxu0 0.0
        %2583 = vmatpush1.xpose.msra.mxu0 0.0
        %2584 = vmatprep.subr.mxu0 0.0
        %2585 = vmatpush1.xpose.msra.mxu0 0.0
        %2586 = vmatprep.subr.mxu0 0.0
        %2587 = vmatpush1.xpose.msra.mxu0 0.0
        %2588 = vmatprep.subr.mxu0 0.0
        %2589 = vmatpush1.xpose.msra.mxu0 0.0
        %2590 = vmatprep.subr.mxu0 0.0
        %2591 = vmatpush1.xpose.msra.mxu0 0.0
        %2592 = vmatprep.subr.mxu0 0.0
        %2593 = vmatpush1.xpose.msra.mxu0 0.0
        %2594 = vmatprep.subr.mxu0 0.0
        %2595 = vmatpush1.xpose.msra.mxu0 0.0
        %2596 = vmatprep.mubr.f32.mxu0 0.0
        %2597 = vmatmul.mubr.f32.gmra.mrb[0].mxu0 %v2528
        %v2598 = vpop.f32.mrb[0].mxu0
        %v2599 = vadd.f32 0.0, %v2598
        %v2600 = vpop.f32.mrb[0].mxu0
        %2601 = vdwg.mxu0
        %v2602 = vsel %vm909, %v2521, -inf
        %2603 = vmax.xlane.f32.xlu0 %v2602
        %v2604 = vpop.xlane.xlu0 %2603
        %v2605 = vsel %vm909, %v2599, -inf
        %2606 = vmax.xlane.f32.xlu0 %v2605
        %v2607 = vpop.xlane.xlu0 %2606
        %v2608 = vsub.f32 %v2521, %v2604
        %v2609 = vsub.f32 %v2599, %v2607
        %v2610 = vmul.f32 %v2608, 1.442695
        %v2611 = vpow.pop %v2610
        %v2612 = vmul.f32 %v2609, 1.442695
        %v2613 = vpow.pop %v2612
        %v2614 = vsel %vm909, %v2611, 0.0
        %2615 = vadd.xlane.f32.xlu0 %v2614
        %v2616 = vpop.xlane.xlu0 %2615
        %v2617 = vsel %vm909, %v2613, 0.0
        %2618 = vadd.xlane.f32.xlu0 %v2617
        %v2619 = vpop.xlane.xlu0 %2618
        %v2620 = vrcp.pop %v2616
        %v2621 = vrcp.pop %v2619
        %v2622 = vmul.f32 %v2611, %v2620
        %v2623 = vmul.f32 %v2613, %v2621
        %2624 = vrot.lane.b32.xlu0 %v748, 108
        %v2625 = vpop.permute.xlu0 %2624
        %v2628 = vsel %vm909, %v2622, 0
        %2630 = vmatprep.subr.mxu0 0.0
        %2631 = vmatpush1.msra.mxu0 %v2625
        %2632 = vmatprep.subr.mxu0 0.0
        %2633 = vmatpush1.msra.mxu0 0.0
        %2634 = vmatprep.subr.mxu0 0.0
        %2635 = vmatpush1.msra.mxu0 0.0
        %2636 = vmatprep.subr.mxu0 0.0
        %2637 = vmatpush1.msra.mxu0 0.0
        %2638 = vmatprep.subr.mxu0 0.0
        %2639 = vmatpush1.msra.mxu0 0.0
        %2640 = vmatprep.subr.mxu0 0.0
        %2641 = vmatpush1.msra.mxu0 0.0
        %2642 = vmatprep.subr.mxu0 0.0
        %2643 = vmatpush1.msra.mxu0 0.0
        %2644 = vmatprep.subr.mxu0 0.0
        %2645 = vmatpush1.msra.mxu0 0.0
        %2646 = vmatprep.subr.mxu0 0.0
        %2647 = vmatpush1.msra.mxu0 0.0
        %2648 = vmatprep.subr.mxu0 0.0
        %2649 = vmatpush1.msra.mxu0 0.0
        %2650 = vmatprep.subr.mxu0 0.0
        %2651 = vmatpush1.msra.mxu0 0.0
        %2652 = vmatprep.subr.mxu0 0.0
        %2653 = vmatpush1.msra.mxu0 0.0
        %2654 = vmatprep.subr.mxu0 0.0
        %2655 = vmatpush1.msra.mxu0 0.0
        %2656 = vmatprep.subr.mxu0 0.0
        %2657 = vmatpush1.msra.mxu0 0.0
        %2658 = vmatprep.subr.mxu0 0.0
        %2659 = vmatpush1.msra.mxu0 0.0
        %2660 = vmatprep.subr.mxu0 0.0
        %2661 = vmatpush1.msra.mxu0 0.0
        %2662 = vmatprep.subr.mxu0 0.0
        %2663 = vmatpush1.msra.mxu0 0.0
        %2664 = vmatprep.subr.mxu0 0.0
        %2665 = vmatpush1.msra.mxu0 0.0
        %2666 = vmatprep.subr.mxu0 0.0
        %2667 = vmatpush1.msra.mxu0 0.0
        %2668 = vmatprep.subr.mxu0 0.0
        %2669 = vmatpush1.msra.mxu0 0.0
        %2670 = vmatprep.subr.mxu0 0.0
        %2671 = vmatpush1.msra.mxu0 0.0
        %2672 = vmatprep.subr.mxu0 0.0
        %2673 = vmatpush1.msra.mxu0 0.0
        %2674 = vmatprep.subr.mxu0 0.0
        %2675 = vmatpush1.msra.mxu0 0.0
        %2676 = vmatprep.subr.mxu0 0.0
        %2677 = vmatpush1.msra.mxu0 0.0
        %2678 = vmatprep.subr.mxu0 0.0
        %2679 = vmatpush1.msra.mxu0 0.0
        %2680 = vmatprep.subr.mxu0 0.0
        %2681 = vmatpush1.msra.mxu0 0.0
        %2682 = vmatprep.subr.mxu0 0.0
        %2683 = vmatpush1.msra.mxu0 0.0
        %2684 = vmatprep.subr.mxu0 0.0
        %2685 = vmatpush1.msra.mxu0 0.0
        %2686 = vmatprep.subr.mxu0 0.0
        %2687 = vmatpush1.msra.mxu0 0.0
        %2688 = vmatprep.subr.mxu0 0.0
        %2689 = vmatpush1.msra.mxu0 0.0
        %2690 = vmatprep.subr.mxu0 0.0
        %2691 = vmatpush1.msra.mxu0 0.0
        %2692 = vmatprep.subr.mxu0 0.0
        %2693 = vmatpush1.msra.mxu0 0.0
        %2694 = vmatprep.mubr.f32.mxu0 0.0
        %2695 = vmatmul.mubr.f32.gmra.mrb[0].mxu0 %v2628
        %v2696 = vpop.f32.mrb[0].mxu0
        %v2697 = vadd.f32 0.0, %v2696
        %v2698 = vpop.f32.mrb[0].mxu0
        %2699 = vdwg.mxu0
        %2700 = vrot.lane.b32.xlu0 %v753, 108
        %v2701 = vpop.permute.xlu0 %2700
        %v2704 = vsel %vm909, %v2623, 0
        %2706 = vmatprep.subr.mxu0 0.0
        %2707 = vmatpush1.msra.mxu0 %v2701
        %2708 = vmatprep.subr.mxu0 0.0
        %2709 = vmatpush1.msra.mxu0 0.0
        %2710 = vmatprep.subr.mxu0 0.0
        %2711 = vmatpush1.msra.mxu0 0.0
        %2712 = vmatprep.subr.mxu0 0.0
        %2713 = vmatpush1.msra.mxu0 0.0
        %2714 = vmatprep.subr.mxu0 0.0
        %2715 = vmatpush1.msra.mxu0 0.0
        %2716 = vmatprep.subr.mxu0 0.0
        %2717 = vmatpush1.msra.mxu0 0.0
        %2718 = vmatprep.subr.mxu0 0.0
        %2719 = vmatpush1.msra.mxu0 0.0
        %2720 = vmatprep.subr.mxu0 0.0
        %2721 = vmatpush1.msra.mxu0 0.0
        %2722 = vmatprep.subr.mxu0 0.0
        %2723 = vmatpush1.msra.mxu0 0.0
        %2724 = vmatprep.subr.mxu0 0.0
        %2725 = vmatpush1.msra.mxu0 0.0
        %2726 = vmatprep.subr.mxu0 0.0
        %2727 = vmatpush1.msra.mxu0 0.0
        %2728 = vmatprep.subr.mxu0 0.0
        %2729 = vmatpush1.msra.mxu0 0.0
        %2730 = vmatprep.subr.mxu0 0.0
        %2731 = vmatpush1.msra.mxu0 0.0
        %2732 = vmatprep.subr.mxu0 0.0
        %2733 = vmatpush1.msra.mxu0 0.0
        %2734 = vmatprep.subr.mxu0 0.0
        %2735 = vmatpush1.msra.mxu0 0.0
        %2736 = vmatprep.subr.mxu0 0.0
        %2737 = vmatpush1.msra.mxu0 0.0
        %2738 = vmatprep.subr.mxu0 0.0
        %2739 = vmatpush1.msra.mxu0 0.0
        %2740 = vmatprep.subr.mxu0 0.0
        %2741 = vmatpush1.msra.mxu0 0.0
        %2742 = vmatprep.subr.mxu0 0.0
        %2743 = vmatpush1.msra.mxu0 0.0
        %2744 = vmatprep.subr.mxu0 0.0
        %2745 = vmatpush1.msra.mxu0 0.0
        %2746 = vmatprep.subr.mxu0 0.0
        %2747 = vmatpush1.msra.mxu0 0.0
        %2748 = vmatprep.subr.mxu0 0.0
        %2749 = vmatpush1.msra.mxu0 0.0
        %2750 = vmatprep.subr.mxu0 0.0
        %2751 = vmatpush1.msra.mxu0 0.0
        %2752 = vmatprep.subr.mxu0 0.0
        %2753 = vmatpush1.msra.mxu0 0.0
        %2754 = vmatprep.subr.mxu0 0.0
        %2755 = vmatpush1.msra.mxu0 0.0
        %2756 = vmatprep.subr.mxu0 0.0
        %2757 = vmatpush1.msra.mxu0 0.0
        %2758 = vmatprep.subr.mxu0 0.0
        %2759 = vmatpush1.msra.mxu0 0.0
        %2760 = vmatprep.subr.mxu0 0.0
        %2761 = vmatpush1.msra.mxu0 0.0
        %2762 = vmatprep.subr.mxu0 0.0
        %2763 = vmatpush1.msra.mxu0 0.0
        %2764 = vmatprep.subr.mxu0 0.0
        %2765 = vmatpush1.msra.mxu0 0.0
        %2766 = vmatprep.subr.mxu0 0.0
        %2767 = vmatpush1.msra.mxu0 0.0
        %2768 = vmatprep.subr.mxu0 0.0
        %2769 = vmatpush1.msra.mxu0 0.0
        %2770 = vmatprep.mubr.f32.mxu0 0.0
        %2771 = vmatmul.mubr.f32.gmra.mrb[0].mxu0 %v2704
        %v2772 = vpop.f32.mrb[0].mxu0
        %v2773 = vadd.f32 0.0, %v2772
        %v2774 = vpop.f32.mrb[0].mxu0
        %2775 = vdwg.mxu0
        %2778 = vrot.lane.b32.xlu0 %v2697, 20
        %v2779 = vpop.permute.xlu0 %2778
        %2780 = vrot.lane.b32.xlu0 %v2773, 20
        %v2781 = vpop.permute.xlu0 %2780
        %vm2784 = vcmask 195744
        %2785 = vst.msk [vmem:[#allocation2] sm:$0xff] %vm2784, %v2779
        %2786 = vst.msk [vmem:[#allocation2 + $0x8] sm:$0xff] %vm2784, %v2781
        %2787 = vrot.lane.b32.xlu0 %v576, 104
        %v2788 = vpop.permute.xlu0 %2787
        %2789 = vrot.lane.b32.xlu0 %v662, 104
        %v2790 = vpop.permute.xlu0 %2789
        %v2791 = vsel %vm756, %v2788, 0
        %v2793 = vsel %vm756, %v2790, 0
        %2795 = vmatprep.subr.mxu0 0.0
        %2796 = vmatpush1.xpose.msra.mxu0 %v2793
        %2797 = vmatprep.subr.mxu0 0.0
        %2798 = vmatpush1.xpose.msra.mxu0 0.0
        %2799 = vmatprep.subr.mxu0 0.0
        %2800 = vmatpush1.xpose.msra.mxu0 0.0
        %2801 = vmatprep.subr.mxu0 0.0
        %2802 = vmatpush1.xpose.msra.mxu0 0.0
        %2803 = vmatprep.subr.mxu0 0.0
        %2804 = vmatpush1.xpose.msra.mxu0 0.0
        %2805 = vmatprep.subr.mxu0 0.0
        %2806 = vmatpush1.xpose.msra.mxu0 0.0
        %2807 = vmatprep.subr.mxu0 0.0
        %2808 = vmatpush1.xpose.msra.mxu0 0.0
        %2809 = vmatprep.subr.mxu0 0.0
        %2810 = vmatpush1.xpose.msra.mxu0 0.0
        %2811 = vmatprep.subr.mxu0 0.0
        %2812 = vmatpush1.xpose.msra.mxu0 0.0
        %2813 = vmatprep.subr.mxu0 0.0
        %2814 = vmatpush1.xpose.msra.mxu0 0.0
        %2815 = vmatprep.subr.mxu0 0.0
        %2816 = vmatpush1.xpose.msra.mxu0 0.0
        %2817 = vmatprep.subr.mxu0 0.0
        %2818 = vmatpush1.xpose.msra.mxu0 0.0
        %2819 = vmatprep.subr.mxu0 0.0
        %2820 = vmatpush1.xpose.msra.mxu0 0.0
        %2821 = vmatprep.subr.mxu0 0.0
        %2822 = vmatpush1.xpose.msra.mxu0 0.0
        %2823 = vmatprep.subr.mxu0 0.0
        %2824 = vmatpush1.xpose.msra.mxu0 0.0
        %2825 = vmatprep.subr.mxu0 0.0
        %2826 = vmatpush1.xpose.msra.mxu0 0.0
        %2827 = vmatprep.subr.mxu0 0.0
        %2828 = vmatpush1.xpose.msra.mxu0 0.0
        %2829 = vmatprep.subr.mxu0 0.0
        %2830 = vmatpush1.xpose.msra.mxu0 0.0
        %2831 = vmatprep.subr.mxu0 0.0
        %2832 = vmatpush1.xpose.msra.mxu0 0.0
        %2833 = vmatprep.subr.mxu0 0.0
        %2834 = vmatpush1.xpose.msra.mxu0 0.0
        %2835 = vmatprep.subr.mxu0 0.0
        %2836 = vmatpush1.xpose.msra.mxu0 0.0
        %2837 = vmatprep.subr.mxu0 0.0
        %2838 = vmatpush1.xpose.msra.mxu0 0.0
        %2839 = vmatprep.subr.mxu0 0.0
        %2840 = vmatpush1.xpose.msra.mxu0 0.0
        %2841 = vmatprep.subr.mxu0 0.0
        %2842 = vmatpush1.xpose.msra.mxu0 0.0
        %2843 = vmatprep.subr.mxu0 0.0
        %2844 = vmatpush1.xpose.msra.mxu0 0.0
        %2845 = vmatprep.subr.mxu0 0.0
        %2846 = vmatpush1.xpose.msra.mxu0 0.0
        %2847 = vmatprep.subr.mxu0 0.0
        %2848 = vmatpush1.xpose.msra.mxu0 0.0
        %2849 = vmatprep.subr.mxu0 0.0
        %2850 = vmatpush1.xpose.msra.mxu0 0.0
        %2851 = vmatprep.subr.mxu0 0.0
        %2852 = vmatpush1.xpose.msra.mxu0 0.0
        %2853 = vmatprep.subr.mxu0 0.0
        %2854 = vmatpush1.xpose.msra.mxu0 0.0
        %2855 = vmatprep.subr.mxu0 0.0
        %2856 = vmatpush1.xpose.msra.mxu0 0.0
        %2857 = vmatprep.subr.mxu0 0.0
        %2858 = vmatpush1.xpose.msra.mxu0 0.0
        %2859 = vmatprep.mubr.f32.mxu0 0.0
        %2860 = vmatmul.mubr.f32.gmra.mrb[0].mxu0 %v2791
        %v2861 = vpop.f32.mrb[0].mxu0
        %v2862 = vadd.f32 0.0, %v2861
        %v2863 = vpop.f32.mrb[0].mxu0
        %2864 = vdwg.mxu0
        %2865 = vrot.lane.b32.xlu0 %v577, 104
        %v2866 = vpop.permute.xlu0 %2865
        %2867 = vrot.lane.b32.xlu0 %v667, 104
        %v2868 = vpop.permute.xlu0 %2867
        %v2869 = vsel %vm756, %v2866, 0
        %v2871 = vsel %vm756, %v2868, 0
        %2873 = vmatprep.subr.mxu0 0.0
        %2874 = vmatpush1.xpose.msra.mxu0 %v2871
        %2875 = vmatprep.subr.mxu0 0.0
        %2876 = vmatpush1.xpose.msra.mxu0 0.0
        %2877 = vmatprep.subr.mxu0 0.0
        %2878 = vmatpush1.xpose.msra.mxu0 0.0
        %2879 = vmatprep.subr.mxu0 0.0
        %2880 = vmatpush1.xpose.msra.mxu0 0.0
        %2881 = vmatprep.subr.mxu0 0.0
        %2882 = vmatpush1.xpose.msra.mxu0 0.0
        %2883 = vmatprep.subr.mxu0 0.0
        %2884 = vmatpush1.xpose.msra.mxu0 0.0
        %2885 = vmatprep.subr.mxu0 0.0
        %2886 = vmatpush1.xpose.msra.mxu0 0.0
        %2887 = vmatprep.subr.mxu0 0.0
        %2888 = vmatpush1.xpose.msra.mxu0 0.0
        %2889 = vmatprep.subr.mxu0 0.0
        %2890 = vmatpush1.xpose.msra.mxu0 0.0
        %2891 = vmatprep.subr.mxu0 0.0
        %2892 = vmatpush1.xpose.msra.mxu0 0.0
        %2893 = vmatprep.subr.mxu0 0.0
        %2894 = vmatpush1.xpose.msra.mxu0 0.0
        %2895 = vmatprep.subr.mxu0 0.0
        %2896 = vmatpush1.xpose.msra.mxu0 0.0
        %2897 = vmatprep.subr.mxu0 0.0
        %2898 = vmatpush1.xpose.msra.mxu0 0.0
        %2899 = vmatprep.subr.mxu0 0.0
        %2900 = vmatpush1.xpose.msra.mxu0 0.0
        %2901 = vmatprep.subr.mxu0 0.0
        %2902 = vmatpush1.xpose.msra.mxu0 0.0
        %2903 = vmatprep.subr.mxu0 0.0
        %2904 = vmatpush1.xpose.msra.mxu0 0.0
        %2905 = vmatprep.subr.mxu0 0.0
        %2906 = vmatpush1.xpose.msra.mxu0 0.0
        %2907 = vmatprep.subr.mxu0 0.0
        %2908 = vmatpush1.xpose.msra.mxu0 0.0
        %2909 = vmatprep.subr.mxu0 0.0
        %2910 = vmatpush1.xpose.msra.mxu0 0.0
        %2911 = vmatprep.subr.mxu0 0.0
        %2912 = vmatpush1.xpose.msra.mxu0 0.0
        %2913 = vmatprep.subr.mxu0 0.0
        %2914 = vmatpush1.xpose.msra.mxu0 0.0
        %2915 = vmatprep.subr.mxu0 0.0
        %2916 = vmatpush1.xpose.msra.mxu0 0.0
        %2917 = vmatprep.subr.mxu0 0.0
        %2918 = vmatpush1.xpose.msra.mxu0 0.0
        %2919 = vmatprep.subr.mxu0 0.0
        %2920 = vmatpush1.xpose.msra.mxu0 0.0
        %2921 = vmatprep.subr.mxu0 0.0
        %2922 = vmatpush1.xpose.msra.mxu0 0.0
        %2923 = vmatprep.subr.mxu0 0.0
        %2924 = vmatpush1.xpose.msra.mxu0 0.0
        %2925 = vmatprep.subr.mxu0 0.0
        %2926 = vmatpush1.xpose.msra.mxu0 0.0
        %2927 = vmatprep.subr.mxu0 0.0
        %2928 = vmatpush1.xpose.msra.mxu0 0.0
        %2929 = vmatprep.subr.mxu0 0.0
        %2930 = vmatpush1.xpose.msra.mxu0 0.0
        %2931 = vmatprep.subr.mxu0 0.0
        %2932 = vmatpush1.xpose.msra.mxu0 0.0
        %2933 = vmatprep.subr.mxu0 0.0
        %2934 = vmatpush1.xpose.msra.mxu0 0.0
        %2935 = vmatprep.subr.mxu0 0.0
        %2936 = vmatpush1.xpose.msra.mxu0 0.0
        %2937 = vmatprep.mubr.f32.mxu0 0.0
        %2938 = vmatmul.mubr.f32.gmra.mrb[0].mxu0 %v2869
        %v2939 = vpop.f32.mrb[0].mxu0
        %v2940 = vadd.f32 0.0, %v2939
        %v2941 = vpop.f32.mrb[0].mxu0
        %2942 = vdwg.mxu0
        %v2943 = vsel %vm909, %v2862, -inf
        %2944 = vmax.xlane.f32.xlu0 %v2943
        %v2945 = vpop.xlane.xlu0 %2944
        %v2946 = vsel %vm909, %v2940, -inf
        %2947 = vmax.xlane.f32.xlu0 %v2946
        %v2948 = vpop.xlane.xlu0 %2947
        %v2949 = vsub.f32 %v2862, %v2945
        %v2950 = vsub.f32 %v2940, %v2948
        %v2951 = vmul.f32 %v2949, 1.442695
        %v2952 = vpow.pop %v2951
        %v2953 = vmul.f32 %v2950, 1.442695
        %v2954 = vpow.pop %v2953
        %v2955 = vsel %vm909, %v2952, 0.0
        %2956 = vadd.xlane.f32.xlu0 %v2955
        %v2957 = vpop.xlane.xlu0 %2956
        %v2958 = vsel %vm909, %v2954, 0.0
        %2959 = vadd.xlane.f32.xlu0 %v2958
        %v2960 = vpop.xlane.xlu0 %2959
        %v2961 = vrcp.pop %v2957
        %v2962 = vrcp.pop %v2960
        %v2963 = vmul.f32 %v2952, %v2961
        %v2964 = vmul.f32 %v2954, %v2962
        %2965 = vrot.lane.b32.xlu0 %v748, 104
        %v2966 = vpop.permute.xlu0 %2965
        %v2969 = vsel %vm909, %v2963, 0
        %2971 = vmatprep.subr.mxu0 0.0
        %2972 = vmatpush1.msra.mxu0 %v2966
        %2973 = vmatprep.subr.mxu0 0.0
        %2974 = vmatpush1.msra.mxu0 0.0
        %2975 = vmatprep.subr.mxu0 0.0
        %2976 = vmatpush1.msra.mxu0 0.0
        %2977 = vmatprep.subr.mxu0 0.0
        %2978 = vmatpush1.msra.mxu0 0.0
        %2979 = vmatprep.subr.mxu0 0.0
        %2980 = vmatpush1.msra.mxu0 0.0
        %2981 = vmatprep.subr.mxu0 0.0
        %2982 = vmatpush1.msra.mxu0 0.0
        %2983 = vmatprep.subr.mxu0 0.0
        %2984 = vmatpush1.msra.mxu0 0.0
        %2985 = vmatprep.subr.mxu0 0.0
        %2986 = vmatpush1.msra.mxu0 0.0
        %2987 = vmatprep.subr.mxu0 0.0
        %2988 = vmatpush1.msra.mxu0 0.0
        %2989 = vmatprep.subr.mxu0 0.0
        %2990 = vmatpush1.msra.mxu0 0.0
        %2991 = vmatprep.subr.mxu0 0.0
        %2992 = vmatpush1.msra.mxu0 0.0
        %2993 = vmatprep.subr.mxu0 0.0
        %2994 = vmatpush1.msra.mxu0 0.0
        %2995 = vmatprep.subr.mxu0 0.0
        %2996 = vmatpush1.msra.mxu0 0.0
        %2997 = vmatprep.subr.mxu0 0.0
        %2998 = vmatpush1.msra.mxu0 0.0
        %2999 = vmatprep.subr.mxu0 0.0
        %3000 = vmatpush1.msra.mxu0 0.0
        %3001 = vmatprep.subr.mxu0 0.0
        %3002 = vmatpush1.msra.mxu0 0.0
        %3003 = vmatprep.subr.mxu0 0.0
        %3004 = vmatpush1.msra.mxu0 0.0
        %3005 = vmatprep.subr.mxu0 0.0
        %3006 = vmatpush1.msra.mxu0 0.0
        %3007 = vmatprep.subr.mxu0 0.0
        %3008 = vmatpush1.msra.mxu0 0.0
        %3009 = vmatprep.subr.mxu0 0.0
        %3010 = vmatpush1.msra.mxu0 0.0
        %3011 = vmatprep.subr.mxu0 0.0
        %3012 = vmatpush1.msra.mxu0 0.0
        %3013 = vmatprep.subr.mxu0 0.0
        %3014 = vmatpush1.msra.mxu0 0.0
        %3015 = vmatprep.subr.mxu0 0.0
        %3016 = vmatpush1.msra.mxu0 0.0
        %3017 = vmatprep.subr.mxu0 0.0
        %3018 = vmatpush1.msra.mxu0 0.0
        %3019 = vmatprep.subr.mxu0 0.0
        %3020 = vmatpush1.msra.mxu0 0.0
        %3021 = vmatprep.subr.mxu0 0.0
        %3022 = vmatpush1.msra.mxu0 0.0
        %3023 = vmatprep.subr.mxu0 0.0
        %3024 = vmatpush1.msra.mxu0 0.0
        %3025 = vmatprep.subr.mxu0 0.0
        %3026 = vmatpush1.msra.mxu0 0.0
        %3027 = vmatprep.subr.mxu0 0.0
        %3028 = vmatpush1.msra.mxu0 0.0
        %3029 = vmatprep.subr.mxu0 0.0
        %3030 = vmatpush1.msra.mxu0 0.0
        %3031 = vmatprep.subr.mxu0 0.0
        %3032 = vmatpush1.msra.mxu0 0.0
        %3033 = vmatprep.subr.mxu0 0.0
        %3034 = vmatpush1.msra.mxu0 0.0
        %3035 = vmatprep.mubr.f32.mxu0 0.0
        %3036 = vmatmul.mubr.f32.gmra.mrb[0].mxu0 %v2969
        %v3037 = vpop.f32.mrb[0].mxu0
        %v3038 = vadd.f32 0.0, %v3037
        %v3039 = vpop.f32.mrb[0].mxu0
        %3040 = vdwg.mxu0
        %3041 = vrot.lane.b32.xlu0 %v753, 104
        %v3042 = vpop.permute.xlu0 %3041
        %v3045 = vsel %vm909, %v2964, 0
        %3047 = vmatprep.subr.mxu0 0.0
        %3048 = vmatpush1.msra.mxu0 %v3042
        %3049 = vmatprep.subr.mxu0 0.0
        %3050 = vmatpush1.msra.mxu0 0.0
        %3051 = vmatprep.subr.mxu0 0.0
        %3052 = vmatpush1.msra.mxu0 0.0
        %3053 = vmatprep.subr.mxu0 0.0
        %3054 = vmatpush1.msra.mxu0 0.0
        %3055 = vmatprep.subr.mxu0 0.0
        %3056 = vmatpush1.msra.mxu0 0.0
        %3057 = vmatprep.subr.mxu0 0.0
        %3058 = vmatpush1.msra.mxu0 0.0
        %3059 = vmatprep.subr.mxu0 0.0
        %3060 = vmatpush1.msra.mxu0 0.0
        %3061 = vmatprep.subr.mxu0 0.0
        %3062 = vmatpush1.msra.mxu0 0.0
        %3063 = vmatprep.subr.mxu0 0.0
        %3064 = vmatpush1.msra.mxu0 0.0
        %3065 = vmatprep.subr.mxu0 0.0
        %3066 = vmatpush1.msra.mxu0 0.0
        %3067 = vmatprep.subr.mxu0 0.0
        %3068 = vmatpush1.msra.mxu0 0.0
        %3069 = vmatprep.subr.mxu0 0.0
        %3070 = vmatpush1.msra.mxu0 0.0
        %3071 = vmatprep.subr.mxu0 0.0
        %3072 = vmatpush1.msra.mxu0 0.0
        %3073 = vmatprep.subr.mxu0 0.0
        %3074 = vmatpush1.msra.mxu0 0.0
        %3075 = vmatprep.subr.mxu0 0.0
        %3076 = vmatpush1.msra.mxu0 0.0
        %3077 = vmatprep.subr.mxu0 0.0
        %3078 = vmatpush1.msra.mxu0 0.0
        %3079 = vmatprep.subr.mxu0 0.0
        %3080 = vmatpush1.msra.mxu0 0.0
        %3081 = vmatprep.subr.mxu0 0.0
        %3082 = vmatpush1.msra.mxu0 0.0
        %3083 = vmatprep.subr.mxu0 0.0
        %3084 = vmatpush1.msra.mxu0 0.0
        %3085 = vmatprep.subr.mxu0 0.0
        %3086 = vmatpush1.msra.mxu0 0.0
        %3087 = vmatprep.subr.mxu0 0.0
        %3088 = vmatpush1.msra.mxu0 0.0
        %3089 = vmatprep.subr.mxu0 0.0
        %3090 = vmatpush1.msra.mxu0 0.0
        %3091 = vmatprep.subr.mxu0 0.0
        %3092 = vmatpush1.msra.mxu0 0.0
        %3093 = vmatprep.subr.mxu0 0.0
        %3094 = vmatpush1.msra.mxu0 0.0
        %3095 = vmatprep.subr.mxu0 0.0
        %3096 = vmatpush1.msra.mxu0 0.0
        %3097 = vmatprep.subr.mxu0 0.0
        %3098 = vmatpush1.msra.mxu0 0.0
        %3099 = vmatprep.subr.mxu0 0.0
        %3100 = vmatpush1.msra.mxu0 0.0
        %3101 = vmatprep.subr.mxu0 0.0
        %3102 = vmatpush1.msra.mxu0 0.0
        %3103 = vmatprep.subr.mxu0 0.0
        %3104 = vmatpush1.msra.mxu0 0.0
        %3105 = vmatprep.subr.mxu0 0.0
        %3106 = vmatpush1.msra.mxu0 0.0
        %3107 = vmatprep.subr.mxu0 0.0
        %3108 = vmatpush1.msra.mxu0 0.0
        %3109 = vmatprep.subr.mxu0 0.0
        %3110 = vmatpush1.msra.mxu0 0.0
        %3111 = vmatprep.mubr.f32.mxu0 0.0
        %3112 = vmatmul.mubr.f32.gmra.mrb[0].mxu0 %v3045
        %v3113 = vpop.f32.mrb[0].mxu0
        %v3114 = vadd.f32 0.0, %v3113
        %v3115 = vpop.f32.mrb[0].mxu0
        %3116 = vdwg.mxu0
        %3119 = vrot.lane.b32.xlu0 %v3038, 24
        %v3120 = vpop.permute.xlu0 %3119
        %3121 = vrot.lane.b32.xlu0 %v3114, 24
        %v3122 = vpop.permute.xlu0 %3121
        %vm3125 = vcmask 228544
        %3126 = vst.msk [vmem:[#allocation2] sm:$0xff] %vm3125, %v3120
        %3127 = vst.msk [vmem:[#allocation2 + $0x8] sm:$0xff] %vm3125, %v3122
        %3128 = vrot.lane.b32.xlu0 %v576, 100
        %v3129 = vpop.permute.xlu0 %3128
        %3130 = vrot.lane.b32.xlu0 %v662, 100
        %v3131 = vpop.permute.xlu0 %3130
        %v3132 = vsel %vm756, %v3129, 0
        %v3134 = vsel %vm756, %v3131, 0
        %3136 = vmatprep.subr.mxu0 0.0
        %3137 = vmatpush1.xpose.msra.mxu0 %v3134
        %3138 = vmatprep.subr.mxu0 0.0
        %3139 = vmatpush1.xpose.msra.mxu0 0.0
        %3140 = vmatprep.subr.mxu0 0.0
        %3141 = vmatpush1.xpose.msra.mxu0 0.0
        %3142 = vmatprep.subr.mxu0 0.0
        %3143 = vmatpush1.xpose.msra.mxu0 0.0
        %3144 = vmatprep.subr.mxu0 0.0
        %3145 = vmatpush1.xpose.msra.mxu0 0.0
        %3146 = vmatprep.subr.mxu0 0.0
        %3147 = vmatpush1.xpose.msra.mxu0 0.0
        %3148 = vmatprep.subr.mxu0 0.0
        %3149 = vmatpush1.xpose.msra.mxu0 0.0
        %3150 = vmatprep.subr.mxu0 0.0
        %3151 = vmatpush1.xpose.msra.mxu0 0.0
        %3152 = vmatprep.subr.mxu0 0.0
        %3153 = vmatpush1.xpose.msra.mxu0 0.0
        %3154 = vmatprep.subr.mxu0 0.0
        %3155 = vmatpush1.xpose.msra.mxu0 0.0
        %3156 = vmatprep.subr.mxu0 0.0
        %3157 = vmatpush1.xpose.msra.mxu0 0.0
        %3158 = vmatprep.subr.mxu0 0.0
        %3159 = vmatpush1.xpose.msra.mxu0 0.0
        %3160 = vmatprep.subr.mxu0 0.0
        %3161 = vmatpush1.xpose.msra.mxu0 0.0
        %3162 = vmatprep.subr.mxu0 0.0
        %3163 = vmatpush1.xpose.msra.mxu0 0.0
        %3164 = vmatprep.subr.mxu0 0.0
        %3165 = vmatpush1.xpose.msra.mxu0 0.0
        %3166 = vmatprep.subr.mxu0 0.0
        %3167 = vmatpush1.xpose.msra.mxu0 0.0
        %3168 = vmatprep.subr.mxu0 0.0
        %3169 = vmatpush1.xpose.msra.mxu0 0.0
        %3170 = vmatprep.subr.mxu0 0.0
        %3171 = vmatpush1.xpose.msra.mxu0 0.0
        %3172 = vmatprep.subr.mxu0 0.0
        %3173 = vmatpush1.xpose.msra.mxu0 0.0
        %3174 = vmatprep.subr.mxu0 0.0
        %3175 = vmatpush1.xpose.msra.mxu0 0.0
        %3176 = vmatprep.subr.mxu0 0.0
        %3177 = vmatpush1.xpose.msra.mxu0 0.0
        %3178 = vmatprep.subr.mxu0 0.0
        %3179 = vmatpush1.xpose.msra.mxu0 0.0
        %3180 = vmatprep.subr.mxu0 0.0
        %3181 = vmatpush1.xpose.msra.mxu0 0.0
        %3182 = vmatprep.subr.mxu0 0.0
        %3183 = vmatpush1.xpose.msra.mxu0 0.0
        %3184 = vmatprep.subr.mxu0 0.0
        %3185 = vmatpush1.xpose.msra.mxu0 0.0
        %3186 = vmatprep.subr.mxu0 0.0
        %3187 = vmatpush1.xpose.msra.mxu0 0.0
        %3188 = vmatprep.subr.mxu0 0.0
        %3189 = vmatpush1.xpose.msra.mxu0 0.0
        %3190 = vmatprep.subr.mxu0 0.0
        %3191 = vmatpush1.xpose.msra.mxu0 0.0
        %3192 = vmatprep.subr.mxu0 0.0
        %3193 = vmatpush1.xpose.msra.mxu0 0.0
        %3194 = vmatprep.subr.mxu0 0.0
        %3195 = vmatpush1.xpose.msra.mxu0 0.0
        %3196 = vmatprep.subr.mxu0 0.0
        %3197 = vmatpush1.xpose.msra.mxu0 0.0
        %3198 = vmatprep.subr.mxu0 0.0
        %3199 = vmatpush1.xpose.msra.mxu0 0.0
        %3200 = vmatprep.mubr.f32.mxu0 0.0
        %3201 = vmatmul.mubr.f32.gmra.mrb[0].mxu0 %v3132
        %v3202 = vpop.f32.mrb[0].mxu0
        %v3203 = vadd.f32 0.0, %v3202
        %v3204 = vpop.f32.mrb[0].mxu0
        %3205 = vdwg.mxu0
        %3206 = vrot.lane.b32.xlu0 %v577, 100
        %v3207 = vpop.permute.xlu0 %3206
        %3208 = vrot.lane.b32.xlu0 %v667, 100
        %v3209 = vpop.permute.xlu0 %3208
        %v3210 = vsel %vm756, %v3207, 0
        %v3212 = vsel %vm756, %v3209, 0
        %3214 = vmatprep.subr.mxu0 0.0
        %3215 = vmatpush1.xpose.msra.mxu0 %v3212
        %3216 = vmatprep.subr.mxu0 0.0
        %3217 = vmatpush1.xpose.msra.mxu0 0.0
        %3218 = vmatprep.subr.mxu0 0.0
        %3219 = vmatpush1.xpose.msra.mxu0 0.0
        %3220 = vmatprep.subr.mxu0 0.0
        %3221 = vmatpush1.xpose.msra.mxu0 0.0
        %3222 = vmatprep.subr.mxu0 0.0
        %3223 = vmatpush1.xpose.msra.mxu0 0.0
        %3224 = vmatprep.subr.mxu0 0.0
        %3225 = vmatpush1.xpose.msra.mxu0 0.0
        %3226 = vmatprep.subr.mxu0 0.0
        %3227 = vmatpush1.xpose.msra.mxu0 0.0
        %3228 = vmatprep.subr.mxu0 0.0
        %3229 = vmatpush1.xpose.msra.mxu0 0.0
        %3230 = vmatprep.subr.mxu0 0.0
        %3231 = vmatpush1.xpose.msra.mxu0 0.0
        %3232 = vmatprep.subr.mxu0 0.0
        %3233 = vmatpush1.xpose.msra.mxu0 0.0
        %3234 = vmatprep.subr.mxu0 0.0
        %3235 = vmatpush1.xpose.msra.mxu0 0.0
        %3236 = vmatprep.subr.mxu0 0.0
        %3237 = vmatpush1.xpose.msra.mxu0 0.0
        %3238 = vmatprep.subr.mxu0 0.0
        %3239 = vmatpush1.xpose.msra.mxu0 0.0
        %3240 = vmatprep.subr.mxu0 0.0
        %3241 = vmatpush1.xpose.msra.mxu0 0.0
        %3242 = vmatprep.subr.mxu0 0.0
        %3243 = vmatpush1.xpose.msra.mxu0 0.0
        %3244 = vmatprep.subr.mxu0 0.0
        %3245 = vmatpush1.xpose.msra.mxu0 0.0
        %3246 = vmatprep.subr.mxu0 0.0
        %3247 = vmatpush1.xpose.msra.mxu0 0.0
        %3248 = vmatprep.subr.mxu0 0.0
        %3249 = vmatpush1.xpose.msra.mxu0 0.0
        %3250 = vmatprep.subr.mxu0 0.0
        %3251 = vmatpush1.xpose.msra.mxu0 0.0
        %3252 = vmatprep.subr.mxu0 0.0
        %3253 = vmatpush1.xpose.msra.mxu0 0.0
        %3254 = vmatprep.subr.mxu0 0.0
        %3255 = vmatpush1.xpose.msra.mxu0 0.0
        %3256 = vmatprep.subr.mxu0 0.0
        %3257 = vmatpush1.xpose.msra.mxu0 0.0
        %3258 = vmatprep.subr.mxu0 0.0
        %3259 = vmatpush1.xpose.msra.mxu0 0.0
        %3260 = vmatprep.subr.mxu0 0.0
        %3261 = vmatpush1.xpose.msra.mxu0 0.0
        %3262 = vmatprep.subr.mxu0 0.0
        %3263 = vmatpush1.xpose.msra.mxu0 0.0
        %3264 = vmatprep.subr.mxu0 0.0
        %3265 = vmatpush1.xpose.msra.mxu0 0.0
        %3266 = vmatprep.subr.mxu0 0.0
        %3267 = vmatpush1.xpose.msra.mxu0 0.0
        %3268 = vmatprep.subr.mxu0 0.0
        %3269 = vmatpush1.xpose.msra.mxu0 0.0
        %3270 = vmatprep.subr.mxu0 0.0
        %3271 = vmatpush1.xpose.msra.mxu0 0.0
        %3272 = vmatprep.subr.mxu0 0.0
        %3273 = vmatpush1.xpose.msra.mxu0 0.0
        %3274 = vmatprep.subr.mxu0 0.0
        %3275 = vmatpush1.xpose.msra.mxu0 0.0
        %3276 = vmatprep.subr.mxu0 0.0
        %3277 = vmatpush1.xpose.msra.mxu0 0.0
        %3278 = vmatprep.mubr.f32.mxu0 0.0
        %3279 = vmatmul.mubr.f32.gmra.mrb[0].mxu0 %v3210
        %v3280 = vpop.f32.mrb[0].mxu0
        %v3281 = vadd.f32 0.0, %v3280
        %v3282 = vpop.f32.mrb[0].mxu0
        %3283 = vdwg.mxu0
        %v3284 = vsel %vm909, %v3203, -inf
        %3285 = vmax.xlane.f32.xlu0 %v3284
        %v3286 = vpop.xlane.xlu0 %3285
        %v3287 = vsel %vm909, %v3281, -inf
        %3288 = vmax.xlane.f32.xlu0 %v3287
        %v3289 = vpop.xlane.xlu0 %3288
        %v3290 = vsub.f32 %v3203, %v3286
        %v3291 = vsub.f32 %v3281, %v3289
        %v3292 = vmul.f32 %v3290, 1.442695
        %v3293 = vpow.pop %v3292
        %v3294 = vmul.f32 %v3291, 1.442695
        %v3295 = vpow.pop %v3294
        %v3296 = vsel %vm909, %v3293, 0.0
        %3297 = vadd.xlane.f32.xlu0 %v3296
        %v3298 = vpop.xlane.xlu0 %3297
        %v3299 = vsel %vm909, %v3295, 0.0
        %3300 = vadd.xlane.f32.xlu0 %v3299
        %v3301 = vpop.xlane.xlu0 %3300
        %v3302 = vrcp.pop %v3298
        %v3303 = vrcp.pop %v3301
        %v3304 = vmul.f32 %v3293, %v3302
        %v3305 = vmul.f32 %v3295, %v3303
        %3306 = vrot.lane.b32.xlu0 %v748, 100
        %v3307 = vpop.permute.xlu0 %3306
        %v3310 = vsel %vm909, %v3304, 0
        %3312 = vmatprep.subr.mxu0 0.0
        %3313 = vmatpush1.msra.mxu0 %v3307
        %3314 = vmatprep.subr.mxu0 0.0
        %3315 = vmatpush1.msra.mxu0 0.0
        %3316 = vmatprep.subr.mxu0 0.0
        %3317 = vmatpush1.msra.mxu0 0.0
        %3318 = vmatprep.subr.mxu0 0.0
        %3319 = vmatpush1.msra.mxu0 0.0
        %3320 = vmatprep.subr.mxu0 0.0
        %3321 = vmatpush1.msra.mxu0 0.0
        %3322 = vmatprep.subr.mxu0 0.0
        %3323 = vmatpush1.msra.mxu0 0.0
        %3324 = vmatprep.subr.mxu0 0.0
        %3325 = vmatpush1.msra.mxu0 0.0
        %3326 = vmatprep.subr.mxu0 0.0
        %3327 = vmatpush1.msra.mxu0 0.0
        %3328 = vmatprep.subr.mxu0 0.0
        %3329 = vmatpush1.msra.mxu0 0.0
        %3330 = vmatprep.subr.mxu0 0.0
        %3331 = vmatpush1.msra.mxu0 0.0
        %3332 = vmatprep.subr.mxu0 0.0
        %3333 = vmatpush1.msra.mxu0 0.0
        %3334 = vmatprep.subr.mxu0 0.0
        %3335 = vmatpush1.msra.mxu0 0.0
        %3336 = vmatprep.subr.mxu0 0.0
        %3337 = vmatpush1.msra.mxu0 0.0
        %3338 = vmatprep.subr.mxu0 0.0
        %3339 = vmatpush1.msra.mxu0 0.0
        %3340 = vmatprep.subr.mxu0 0.0
        %3341 = vmatpush1.msra.mxu0 0.0
        %3342 = vmatprep.subr.mxu0 0.0
        %3343 = vmatpush1.msra.mxu0 0.0
        %3344 = vmatprep.subr.mxu0 0.0
        %3345 = vmatpush1.msra.mxu0 0.0
        %3346 = vmatprep.subr.mxu0 0.0
        %3347 = vmatpush1.msra.mxu0 0.0
        %3348 = vmatprep.subr.mxu0 0.0
        %3349 = vmatpush1.msra.mxu0 0.0
        %3350 = vmatprep.subr.mxu0 0.0
        %3351 = vmatpush1.msra.mxu0 0.0
        %3352 = vmatprep.subr.mxu0 0.0
        %3353 = vmatpush1.msra.mxu0 0.0
        %3354 = vmatprep.subr.mxu0 0.0
        %3355 = vmatpush1.msra.mxu0 0.0
        %3356 = vmatprep.subr.mxu0 0.0
        %3357 = vmatpush1.msra.mxu0 0.0
        %3358 = vmatprep.subr.mxu0 0.0
        %3359 = vmatpush1.msra.mxu0 0.0
        %3360 = vmatprep.subr.mxu0 0.0
        %3361 = vmatpush1.msra.mxu0 0.0
        %3362 = vmatprep.subr.mxu0 0.0
        %3363 = vmatpush1.msra.mxu0 0.0
        %3364 = vmatprep.subr.mxu0 0.0
        %3365 = vmatpush1.msra.mxu0 0.0
        %3366 = vmatprep.subr.mxu0 0.0
        %3367 = vmatpush1.msra.mxu0 0.0
        %3368 = vmatprep.subr.mxu0 0.0
        %3369 = vmatpush1.msra.mxu0 0.0
        %3370 = vmatprep.subr.mxu0 0.0
        %3371 = vmatpush1.msra.mxu0 0.0
        %3372 = vmatprep.subr.mxu0 0.0
        %3373 = vmatpush1.msra.mxu0 0.0
        %3374 = vmatprep.subr.mxu0 0.0
        %3375 = vmatpush1.msra.mxu0 0.0
        %3376 = vmatprep.mubr.f32.mxu0 0.0
        %3377 = vmatmul.mubr.f32.gmra.mrb[0].mxu0 %v3310
        %v3378 = vpop.f32.mrb[0].mxu0
        %v3379 = vadd.f32 0.0, %v3378
        %v3380 = vpop.f32.mrb[0].mxu0
        %3381 = vdwg.mxu0
        %3382 = vrot.lane.b32.xlu0 %v753, 100
        %v3383 = vpop.permute.xlu0 %3382
        %v3386 = vsel %vm909, %v3305, 0
        %3388 = vmatprep.subr.mxu0 0.0
        %3389 = vmatpush1.msra.mxu0 %v3383
        %3390 = vmatprep.subr.mxu0 0.0
        %3391 = vmatpush1.msra.mxu0 0.0
        %3392 = vmatprep.subr.mxu0 0.0
        %3393 = vmatpush1.msra.mxu0 0.0
        %3394 = vmatprep.subr.mxu0 0.0
        %3395 = vmatpush1.msra.mxu0 0.0
        %3396 = vmatprep.subr.mxu0 0.0
        %3397 = vmatpush1.msra.mxu0 0.0
        %3398 = vmatprep.subr.mxu0 0.0
        %3399 = vmatpush1.msra.mxu0 0.0
        %3400 = vmatprep.subr.mxu0 0.0
        %3401 = vmatpush1.msra.mxu0 0.0
        %3402 = vmatprep.subr.mxu0 0.0
        %3403 = vmatpush1.msra.mxu0 0.0
        %3404 = vmatprep.subr.mxu0 0.0
        %3405 = vmatpush1.msra.mxu0 0.0
        %3406 = vmatprep.subr.mxu0 0.0
        %3407 = vmatpush1.msra.mxu0 0.0
        %3408 = vmatprep.subr.mxu0 0.0
        %3409 = vmatpush1.msra.mxu0 0.0
        %3410 = vmatprep.subr.mxu0 0.0
        %3411 = vmatpush1.msra.mxu0 0.0
        %3412 = vmatprep.subr.mxu0 0.0
        %3413 = vmatpush1.msra.mxu0 0.0
        %3414 = vmatprep.subr.mxu0 0.0
        %3415 = vmatpush1.msra.mxu0 0.0
        %3416 = vmatprep.subr.mxu0 0.0
        %3417 = vmatpush1.msra.mxu0 0.0
        %3418 = vmatprep.subr.mxu0 0.0
        %3419 = vmatpush1.msra.mxu0 0.0
        %3420 = vmatprep.subr.mxu0 0.0
        %3421 = vmatpush1.msra.mxu0 0.0
        %3422 = vmatprep.subr.mxu0 0.0
        %3423 = vmatpush1.msra.mxu0 0.0
        %3424 = vmatprep.subr.mxu0 0.0
        %3425 = vmatpush1.msra.mxu0 0.0
        %3426 = vmatprep.subr.mxu0 0.0
        %3427 = vmatpush1.msra.mxu0 0.0
        %3428 = vmatprep.subr.mxu0 0.0
        %3429 = vmatpush1.msra.mxu0 0.0
        %3430 = vmatprep.subr.mxu0 0.0
        %3431 = vmatpush1.msra.mxu0 0.0
        %3432 = vmatprep.subr.mxu0 0.0
        %3433 = vmatpush1.msra.mxu0 0.0
        %3434 = vmatprep.subr.mxu0 0.0
        %3435 = vmatpush1.msra.mxu0 0.0
        %3436 = vmatprep.subr.mxu0 0.0
        %3437 = vmatpush1.msra.mxu0 0.0
        %3438 = vmatprep.subr.mxu0 0.0
        %3439 = vmatpush1.msra.mxu0 0.0
        %3440 = vmatprep.subr.mxu0 0.0
        %3441 = vmatpush1.msra.mxu0 0.0
        %3442 = vmatprep.subr.mxu0 0.0
        %3443 = vmatpush1.msra.mxu0 0.0
        %3444 = vmatprep.subr.mxu0 0.0
        %3445 = vmatpush1.msra.mxu0 0.0
        %3446 = vmatprep.subr.mxu0 0.0
        %3447 = vmatpush1.msra.mxu0 0.0
        %3448 = vmatprep.subr.mxu0 0.0
        %3449 = vmatpush1.msra.mxu0 0.0
        %3450 = vmatprep.subr.mxu0 0.0
        %3451 = vmatpush1.msra.mxu0 0.0
        %3452 = vmatprep.mubr.f32.mxu0 0.0
        %3453 = vmatmul.mubr.f32.gmra.mrb[0].mxu0 %v3386
        %v3454 = vpop.f32.mrb[0].mxu0
        %v3455 = vadd.f32 0.0, %v3454
        %v3456 = vpop.f32.mrb[0].mxu0
        %3457 = vdwg.mxu0
        %3460 = vrot.lane.b32.xlu0 %v3379, 28
        %v3461 = vpop.permute.xlu0 %3460
        %3462 = vrot.lane.b32.xlu0 %v3455, 28
        %v3463 = vpop.permute.xlu0 %3462
        %vm3466 = vcmask 261344
        %3467 = vst.msk [vmem:[#allocation2] sm:$0xff] %vm3466, %v3461
        %3468 = vst.msk [vmem:[#allocation2 + $0x8] sm:$0xff] %vm3466, %v3463
        %v3469 = vld [vmem:[#allocation2] sm:$0xff]
        %v3470 = vld [vmem:[#allocation2 + $0x8] sm:$0xff]
        %v3471 = vld [vmem:[#allocation12] sm:$0xff]
        %v3472 = vld [vmem:[#allocation12 + $0x8] sm:$0xff]
        %v3473 = vld [vmem:[#allocation12 + $0x10] sm:$0xff]
        %v3474 = vld [vmem:[#allocation12 + $0x18] sm:$0xff]
        %v3475 = vld [vmem:[%s9] sm:$0x1]
        %v3477 = vlaneseq
        %v3478 = vshrl.u32 %v3477, 7
        %v3479 = vsub.s32 0, %v3478
        %v3480 = vrot.slane %v3475, %v3479
        %v3483 = vsel %vm494, %v3469, 0
        %v3486 = vsel %vm494, %v3470, 0
        %3488 = vmatprep.subr.mxu0 0.0
        %3489 = vmatpush1.msra.mxu0 %v3471
        %3490 = vmatprep.subr.mxu0 0.0
        %3491 = vmatpush1.msra.mxu0 %v3472
        %3492 = vmatprep.subr.mxu0 0.0
        %3493 = vmatpush1.msra.mxu0 %v3473
        %3494 = vmatprep.subr.mxu0 0.0
        %3495 = vmatpush1.msra.mxu0 %v3474
        %3496 = vmatprep.subr.mxu0 0.0
        %3497 = vmatpush1.msra.mxu0 0.0
        %3498 = vmatprep.subr.mxu0 0.0
        %3499 = vmatpush1.msra.mxu0 0.0
        %3500 = vmatprep.subr.mxu0 0.0
        %3501 = vmatpush1.msra.mxu0 0.0
        %3502 = vmatprep.subr.mxu0 0.0
        %3503 = vmatpush1.msra.mxu0 0.0
        %3504 = vmatprep.subr.mxu0 0.0
        %3505 = vmatpush1.msra.mxu0 0.0
        %3506 = vmatprep.subr.mxu0 0.0
        %3507 = vmatpush1.msra.mxu0 0.0
        %3508 = vmatprep.subr.mxu0 0.0
        %3509 = vmatpush1.msra.mxu0 0.0
        %3510 = vmatprep.subr.mxu0 0.0
        %3511 = vmatpush1.msra.mxu0 0.0
        %3512 = vmatprep.subr.mxu0 0.0
        %3513 = vmatpush1.msra.mxu0 0.0
        %3514 = vmatprep.subr.mxu0 0.0
        %3515 = vmatpush1.msra.mxu0 0.0
        %3516 = vmatprep.subr.mxu0 0.0
        %3517 = vmatpush1.msra.mxu0 0.0
        %3518 = vmatprep.subr.mxu0 0.0
        %3519 = vmatpush1.msra.mxu0 0.0
        %3520 = vmatprep.subr.mxu0 0.0
        %3521 = vmatpush1.msra.mxu0 0.0
        %3522 = vmatprep.subr.mxu0 0.0
        %3523 = vmatpush1.msra.mxu0 0.0
        %3524 = vmatprep.subr.mxu0 0.0
        %3525 = vmatpush1.msra.mxu0 0.0
        %3526 = vmatprep.subr.mxu0 0.0
        %3527 = vmatpush1.msra.mxu0 0.0
        %3528 = vmatprep.subr.mxu0 0.0
        %3529 = vmatpush1.msra.mxu0 0.0
        %3530 = vmatprep.subr.mxu0 0.0
        %3531 = vmatpush1.msra.mxu0 0.0
        %3532 = vmatprep.subr.mxu0 0.0
        %3533 = vmatpush1.msra.mxu0 0.0
        %3534 = vmatprep.subr.mxu0 0.0
        %3535 = vmatpush1.msra.mxu0 0.0
        %3536 = vmatprep.subr.mxu0 0.0
        %3537 = vmatpush1.msra.mxu0 0.0
        %3538 = vmatprep.subr.mxu0 0.0
        %3539 = vmatpush1.msra.mxu0 0.0
        %3540 = vmatprep.subr.mxu0 0.0
        %3541 = vmatpush1.msra.mxu0 0.0
        %3542 = vmatprep.subr.mxu0 0.0
        %3543 = vmatpush1.msra.mxu0 0.0
        %3544 = vmatprep.subr.mxu0 0.0
        %3545 = vmatpush1.msra.mxu0 0.0
        %3546 = vmatprep.subr.mxu0 0.0
        %3547 = vmatpush1.msra.mxu0 0.0
        %3548 = vmatprep.subr.mxu0 0.0
        %3549 = vmatpush1.msra.mxu0 0.0
        %3550 = vmatprep.subr.mxu0 0.0
        %3551 = vmatpush1.msra.mxu0 0.0
        %3552 = vmatprep.mubr.f32.mxu0 0.0
        %3553 = vmatmul.mubr.f32.gmra.mrb[0].mxu0 %v3483
        %v3554 = vpop.f32.mrb[0].mxu0
        %v3555 = vadd.f32 %v3480, %v3554
        %v3556 = vpop.f32.mrb[0].mxu0
        %3557 = vmatprep.mubr.f32.mxu0 0.0
        %3558 = vmatmul.mubr.f32.gmra.mrb[0].mxu0 %v3486
        %v3559 = vpop.f32.mrb[0].mxu0
        %v3560 = vadd.f32 %v3480, %v3559
        %v3561 = vpop.f32.mrb[0].mxu0
        %3562 = vdwg.mxu0
        %3563 = vst.msk [vmem:[%s475] sm:$0xff] %vm494, %v3555
        %3564 = vst.msk [vmem:[%s475 + $0x8] sm:$0xff] %vm494, %v3560
        %s3565 = sand.u32 %s260, 1
        %s3566 = scalar_lea.sflag [#allocation5], %s3565
        %s3567 = sand.u32 %s260, 1
        %s3568 = smul.addr %s3567, 16
        %s3569 = scalar_lea.vmem [#allocation14], %s3568
        // Predicated region
        $region85: #{tpu_custom_call.1} parent=59 // pred_check
          %p3570 = pneg %p270
        $region86: #{tpu_custom_call.1} parent=59 // pred_check_branch
          %3572 = sbr.rel (%p3570) target = $region88
        $region87: #{tpu_custom_call.1} parent=59 // pred_region
          %s3573 = smul.u32 2, %s32
          %s3575 = ssub.s32 256, 256
          %3576 = vsyncadd %s3566, %s3575
          %s3577 = smul.addr %s3573, 128
          %s3578 = scalar_lea.hbm %s10, %s3577
          %s3579 = sshll.u32 %s3569, 4
          %s3580 = int_to_ptr.vmem [resolvable:$true] %s3579
          %3585 = dma.vmem_to_hbm [thread:$0]  %s3580, 256, %s3578, %s3566, 128, 128, 8
        $region88: #{tpu_custom_call.1} parent=59 // pred_fallthru
          _
      $region60: #{tpu_custom_call.1} parent=5 // pred_fallthru
        _
      %p3586 = scmp.le.s32.totalorder 2, %s27
      // Predicated region
      $region89: #{tpu_custom_call.1} parent=5 // pred_check
        %p3587 = pneg %p3586
      $region90: #{tpu_custom_call.1} parent=5 // pred_check_branch
        %3589 = sbr.rel (%p3587) target = $region92
      $region91: #{tpu_custom_call.1} parent=5 // pred_region
        %s3590 = ssub.s32 %s27, 2
        // Predicated region
        $region93: #{tpu_custom_call.1} parent=91 // pred_check
          %p3591 = pneg %p276
        $region94: #{tpu_custom_call.1} parent=91 // pred_check_branch
          %3593 = sbr.rel (%p3591) target = $region96
        $region95: #{tpu_custom_call.1} parent=91 // pred_region
          %s3594 = sand.u32 %s261, 1
          %s3595 = scalar_lea.sflag [#allocation5], %s3594
          %s3596 = sand.u32 %s261, 1
          %s3597 = smul.addr %s3596, 16
          %s3598 = scalar_lea.vmem [#allocation14], %s3597
          %3599 = dma.done %s3595, 256
        $region96: #{tpu_custom_call.1} parent=91 // pred_fallthru
          _
      $region92: #{tpu_custom_call.1} parent=5 // pred_fallthru
        _
    $region6: #{tpu_custom_call.1} parent=1 // loop_footer
      %s31 = sadd.s32 1, %s27
    $region7: #{tpu_custom_call.1} parent=1 // loop_footer_branch
      %26 = sbr.rel target = $region3
    $region8: #{tpu_custom_call.1} parent=1 // loop_exit
      _
    %3600 = vsyncpa [#allocation4], 1
    %s3601 = scalar_lea.sflag [#allocation4], 1
    %3602 = vsyncpa %s3601, 1
    %3603 = vsyncpa [#allocation7], 1
    %s3604 = scalar_lea.sflag [#allocation7], 1
    %3605 = vsyncpa %s3604, 1
    %3606 = vsyncpa [#allocation10], 1
    %3607 = vsyncpa [#allocation13], 1
    %3608 = vsyncpa [#allocation5], 1
    %s3609 = scalar_lea.sflag [#allocation5], 1
    %3610 = vsyncpa %s3609, 1

</llo_original>
